<compile_context>
chip_gen: v5e
topology: v5e:2x2
jax: 0.10.0
libtpu: 0.0.40
codegen_flags: <defaults>
</compile_context>

<pallas_src>
import functools

import jax
import jax.numpy as jnp
from jax.experimental import pallas as pl
from jax.experimental.pallas import tpu as pltpu

_LANE = 128  # left/right halo width of the flattened spatial (lane) axis


# ----------------------------------------------------------------------------
# Fused kernel: one grid step per batch *group* (bb images), channel-major.
# ----------------------------------------------------------------------------
def _residual_block_kernel(x_ref, w1_ref, bn1s_ref, bn1b_ref, w2_ref,
                           bn2s_ref, bn2b_ref, sew1_ref, sew2t_ref,
                           maskl_ref, maskr_ref, *rest, H, W, bb, has_proj):
    if has_proj:
        (wsc_ref, scs_ref, scb_ref, o_ref,
         xpad_s, apad_s, patch_s) = rest
    else:
        o_ref, xpad_s, apad_s, patch_s = rest

    HW = H * W
    Cin = x_ref.shape[1]
    Cout = o_ref.shape[1]

    # Lane masks killing taps whose left/right neighbour is outside the image
    # (the flattened-spatial shift would otherwise wrap across image rows).
    mask_keep = {0: maskl_ref[...], 2: maskr_ref[...]}     # bf16 (1, HW)

    # Zero ONLY the halo borders; the interior is fully overwritten below.
    # (Done every step, not just step 0, so megacore-sharded grids stay
    # correct — each core's scratch must have zero halos.)
    for pad_s, c in ((xpad_s, Cin), (apad_s, Cout)):
        zero = jnp.zeros((bb, c, _LANE), jnp.bfloat16)
        pad_s[:, :, 0:_LANE] = zero
        pad_s[:, :, _LANE + HW:] = zero

    def build_patches(pad_s, c):
        # pad_s: (bb, c, _LANE + HW + _LANE) bf16; image b lives at lanes
        # [_LANE, _LANE + HW).  Writes the 9 im2col taps (straight bf16
        # copies, boundary mask on dx=0/2) into patch_s[:9*c, :bb*HW].
        for b in range(bb):
            for dy in range(3):
                for dx in range(3):
                    s0 = _LANE + (dy - 1) * W + (dx - 1)   # static offset
                    tap = pad_s[b, :, s0:s0 + HW]          # (c, HW) bf16
                    if dx in mask_keep:
                        tap = tap * mask_keep[dx]
                    t = dy * 3 + dx
                    patch_s[t * c:(t + 1) * c, b * HW:(b + 1) * HW] = tap

    # ---- conv1 (3x3, pad 1) + BN1 + ReLU ------------------------------------
    for b in range(bb):
        xpad_s[b, :, _LANE:_LANE + HW] = x_ref[b].astype(jnp.bfloat16)
    build_patches(xpad_s, Cin)
    out1 = jnp.dot(w1_ref[...], patch_s[0:9 * Cin, :],
                   preferred_element_type=jnp.float32)     # (Cout, bb*HW)
    out1 = jnp.maximum(out1 * bn1s_ref[...] + bn1b_ref[...], 0.0)

    # ---- projection shortcut -------------------------------------------------
    # Uses the unshifted centre tap of the conv1 patches (= bf16 x, all bb
    # images concatenated) before patch_s is overwritten by conv2.
    if has_proj:
        sc = jnp.dot(wsc_ref[...], patch_s[4 * Cin:5 * Cin, :],
                     preferred_element_type=jnp.float32)   # (Cout, bb*HW)
        sc = sc * scs_ref[...] + scb_ref[...]

    # ---- conv2 (3x3, pad 1) + BN2 -------------------------------------------
    for b in range(bb):
        apad_s[b, :, _LANE:_LANE + HW] = (
            out1[:, b * HW:(b + 1) * HW].astype(jnp.bfloat16))
    build_patches(apad_s, Cout)
    out2 = jnp.dot(w2_ref[...], patch_s[0:9 * Cout, :],
                   preferred_element_type=jnp.float32)     # (Cout, bb*HW)
    out2 = out2 * bn2s_ref[...] + bn2b_ref[...]

    # ---- Squeeze-and-Excitation (VPU/XLU) + residual + final ReLU -----------
    for b in range(bb):
        o2 = out2[:, b * HW:(b + 1) * HW]                  # (Cout, HW)
        pooled = jnp.mean(o2, axis=1, keepdims=True)       # (Cout, 1)
        h = jnp.maximum(
            jnp.sum(sew1_ref[...] * pooled, axis=0, keepdims=True), 0.0)
        gate = jax.nn.sigmoid(
            jnp.sum(sew2t_ref[...] * h, axis=1, keepdims=True))  # (Cout, 1)
        if has_proj:
            res = sc[:, b * HW:(b + 1) * HW]
        else:
            res = x_ref[b]                                 # f32, Cin == Cout
        o_ref[b] = jnp.maximum(o2 * gate + res, 0.0)


# ----------------------------------------------------------------------------
# One-time parameter preparation (outside the jitted forward).
# ----------------------------------------------------------------------------
def prepare_params(p):
    Cin = p["w_conv1"].shape[2]
    Cout = p["w_conv1"].shape[3]
    kp = {
        # (3,3,Cin,Cout) HWIO -> (Cout, 9*C), tap order (dy, dx, c); bf16 MXU.
        "w1": jnp.transpose(p["w_conv1"], (3, 0, 1, 2))
              .reshape(Cout, 9 * Cin).astype(jnp.bfloat16),
        "w2": jnp.transpose(p["w_conv2"], (3, 0, 1, 2))
              .reshape(Cout, 9 * Cout).astype(jnp.bfloat16),
        "bn1s": p["bn1_scale"].reshape(Cout, 1).astype(jnp.float32),
        "bn1b": p["bn1_bias"].reshape(Cout, 1).astype(jnp.float32),
        "bn2s": p["bn2_scale"].reshape(Cout, 1).astype(jnp.float32),
        "bn2b": p["bn2_bias"].reshape(Cout, 1).astype(jnp.float32),
        "se_w1": p["se_w1"].astype(jnp.float32),            # (Cout, Cr)
        "se_w2t": p["se_w2"].T.astype(jnp.float32),          # (Cout, Cr)
    }
    if Cin != Cout:
        kp["wsc"] = p["w_sc"].T.astype(jnp.bfloat16)         # (Cout, Cin)
        kp["scs"] = p["sc_scale"].reshape(Cout, 1).astype(jnp.float32)
        kp["scb"] = p["sc_bias"].reshape(Cout, 1).astype(jnp.float32)
    return kp


def _pick_batch_tile(batch, cap=8):
    bb = 1
    for d in range(2, min(batch, cap) + 1):
        if batch % d == 0:
            bb = d
    return bb


# ----------------------------------------------------------------------------
# Wrapper: NCHW in/out, channel-major (free reshapes, no transposes).
# ----------------------------------------------------------------------------
def residual_block_forward(x_nchw, kp, *, batch_tile=None):
    B, Cin, H, W = x_nchw.shape
    Cout = kp["w1"].shape[0]
    Cr = kp["se_w1"].shape[1]
    HW = H * W
    has_proj = "wsc" in kp

    assert kp["w1"].shape[1] == 9 * Cin
    assert HW % _LANE == 0, "H*W must be a multiple of 128 (lane-dense blocks)"
    assert W + 1 <= _LANE, "W too large for the fixed halo pad"
    # bf16 patch rows start at sublane offsets t*C -> need the bf16 sublane
    # granule (16), not just 8.
    assert Cin % 16 == 0 and Cout % 16 == 0, "channels must be multiples of 16"

    bb = batch_tile if batch_tile is not None else _pick_batch_tile(B)
    assert B % bb == 0

    x_flat = x_nchw.reshape(B, Cin, HW)   # free: NCHW is already channel-major

    # Boundary masks for the dx=0 / dx=2 taps (zero where w==0 / w==W-1),
    # bf16 so the masked-tap multiply runs in bf16 on the VPU.
    w_idx = jnp.arange(HW, dtype=jnp.int32) % W
    mask_l = (w_idx != 0).astype(jnp.bfloat16).reshape(1, HW)
    mask_r = (w_idx != (W - 1)).astype(jnp.bfloat16).reshape(1, HW)

    inputs = [x_flat, kp["w1"], kp["bn1s"], kp["bn1b"], kp["w2"],
              kp["bn2s"], kp["bn2b"], kp["se_w1"], kp["se_w2t"],
              mask_l, mask_r]
    in_specs = [
        pl.BlockSpec((bb, Cin, HW), lambda g: (g, 0, 0)),
        pl.BlockSpec((Cout, 9 * Cin), lambda g: (0, 0)),
        pl.BlockSpec((Cout, 1), lambda g: (0, 0)),
        pl.BlockSpec((Cout, 1), lambda g: (0, 0)),
        pl.BlockSpec((Cout, 9 * Cout), lambda g: (0, 0)),
        pl.BlockSpec((Cout, 1), lambda g: (0, 0)),
        pl.BlockSpec((Cout, 1), lambda g: (0, 0)),
        pl.BlockSpec((Cout, Cr), lambda g: (0, 0)),
        pl.BlockSpec((Cout, Cr), lambda g: (0, 0)),
        pl.BlockSpec((1, HW), lambda g: (0, 0)),
        pl.BlockSpec((1, HW), lambda g: (0, 0)),
    ]
    if has_proj:
        inputs += [kp["wsc"], kp["scs"], kp["scb"]]
        in_specs += [
            pl.BlockSpec((Cout, Cin), lambda g: (0, 0)),
            pl.BlockSpec((Cout, 1), lambda g: (0, 0)),
            pl.BlockSpec((Cout, 1), lambda g: (0, 0)),
        ]

    pad_w = _LANE + HW + _LANE
    max_c = max(Cin, Cout)

    # VMEM working-set estimate: double-buffered x/out blocks, bf16 pad and
    # patch scratch, bf16 weights (x2 buffers), f32 matmul-result temporaries.
    est = (2 * bb * Cin * HW * 4 + 2 * bb * Cout * HW * 4
           + bb * Cin * pad_w * 2 + bb * Cout * pad_w * 2
           + 9 * max_c * bb * HW * 2
           + 2 * 2 * (Cout * 9 * Cin + Cout * 9 * Cout + Cout * Cin)
           + 3 * Cout * bb * HW * 4)
    vmem_limit = min(max(int(est * 1.5) + (4 << 20), 32 << 20), 64 << 20)

    kernel = functools.partial(_residual_block_kernel, H=H, W=W, bb=bb,
                               has_proj=has_proj)
    out = pl.pallas_call(
        kernel,
        out_shape=jax.ShapeDtypeStruct((B, Cout, HW), jnp.float32),
        grid=(B // bb,),
        in_specs=in_specs,
        out_specs=pl.BlockSpec((bb, Cout, HW), lambda g: (g, 0, 0)),
        scratch_shapes=[
            pltpu.VMEM((bb, Cin, pad_w), jnp.bfloat16),        # padded x
            pltpu.VMEM((bb, Cout, pad_w), jnp.bfloat16),       # padded conv1 act
            pltpu.VMEM((9 * max_c, bb * HW), jnp.bfloat16),    # im2col patches
        ],
        compiler_params=pltpu.CompilerParams(
            dimension_semantics=("parallel",),
            vmem_limit_bytes=vmem_limit),
    )(*inputs)
    return out.reshape(B, Cout, H, W)


# ----------------------------------------------------------------------------
# Pure-JAX reference (f32, HIGHEST precision) for correctness checking.
# ----------------------------------------------------------------------------
def reference_forward(x_nchw, p):
    x = jnp.transpose(x_nchw, (0, 2, 3, 1))

    def conv3x3(inp, w):
        return jax.lax.conv_general_dilated(
            inp, w, (1, 1), ((1, 1), (1, 1)),
            dimension_numbers=("NHWC", "HWIO", "NHWC"),
            precision=jax.lax.Precision.HIGHEST)

    out = conv3x3(x, p["w_conv1"]) * p["bn1_scale"] + p["bn1_bias"]
    out = jax.nn.relu(out)
    out = conv3x3(out, p["w_conv2"]) * p["bn2_scale"] + p["bn2_bias"]
    y = jnp.mean(out, axis=(1, 2))                                # (B, Cout)
    h = jax.nn.relu(y @ p["se_w1"])
    s = jax.nn.sigmoid(h @ p["se_w2"])
    if x.shape[-1] != out.shape[-1]:
        sc = (jnp.einsum("bhwc,cd->bhwd", x, p["w_sc"],
                         precision=jax.lax.Precision.HIGHEST)
              * p["sc_scale"] + p["sc_bias"])
    else:
        sc = x
    out = jax.nn.relu(out * s[:, None, None, :] + sc)
    return jnp.transpose(out, (0, 3, 1, 2))


def _fold_bn(kg, kb, km, kv, C, eps=1e-5):
    gamma = jax.random.uniform(kg, (C,), minval=0.5, maxval=1.5)
    beta = jax.random.normal(kb, (C,)) * 0.1
    mean = jax.random.normal(km, (C,)) * 0.1
    var = jax.random.uniform(kv, (C,), minval=0.5, maxval=1.5)
    scale = gamma / jnp.sqrt(var + eps)
    bias = beta - mean * scale
    return scale.astype(jnp.float32), bias.astype(jnp.float32)


if __name__ == "__main__":
    key = jax.random.PRNGKey(0)

    def make_params(ks, Cin, Cout, red=16):
        Cr = max(Cout // red, 1)
        p = {}
        p["w_conv1"] = jax.random.normal(ks[1], (3, 3, Cin, Cout)) * 0.1
        p["bn1_scale"], p["bn1_bias"] = _fold_bn(ks[2], ks[3], ks[4], ks[5], Cout)
        p["w_conv2"] = jax.random.normal(ks[6], (3, 3, Cout, Cout)) * 0.1
        p["bn2_scale"], p["bn2_bias"] = _fold_bn(ks[7], ks[8], ks[9], ks[10], Cout)
        p["se_w1"] = jax.random.normal(ks[11], (Cout, Cr)) * 0.2
        p["se_w2"] = jax.random.normal(ks[12], (Cr, Cout)) * 0.2
        if Cin != Cout:
            p["w_sc"] = jax.random.normal(ks[13], (Cin, Cout)) * 0.1
            p["sc_scale"], p["sc_bias"] = _fold_bn(ks[14], ks[15], ks[16],
                                                   ks[17], Cout)
        return {k: v.astype(jnp.float32) for k, v in p.items()}

    fwd = jax.jit(residual_block_forward)

    # Test both the projection-shortcut path (Cin != Cout) and the identity path.
    for (Cin, Cout) in ((16, 32), (32, 32)):
        B, H, W = 2, 16, 16
        ks = jax.random.split(key, 20)
        x_nchw = jax.random.normal(ks[0], (B, Cin, H, W), jnp.float32)
        params = make_params(ks, Cin, Cout)
        kp = prepare_params(params)            # one-time weight prep (outside jit)

        out = jax.block_until_ready(fwd(x_nchw, kp))
        ref = jax.block_until_ready(reference_forward(x_nchw, params))

        assert out.shape == (B, Cout, H, W), out.shape
        # bf16 MXU inputs with f32 accumulation vs a HIGHEST-precision f32
        # reference: typical max abs error ~1e-2 at these magnitudes.
        max_err = float(jnp.max(jnp.abs(out - ref)))
        assert max_err < 1e-1, f"Cin={Cin} Cout={Cout}: max abs error {max_err}"

    print("KERNEL_OK")
</pallas_src>

<mosaic_0001>
module attributes {stable_mosaic.version = 11 : i64} {
  func.func @_residual_block_kernel(%arg0: i32, %arg1: memref<2x16x256xf32, #tpu.memory_space<vmem>>, %arg2: memref<32x144xbf16, #tpu.memory_space<vmem>>, %arg3: memref<32x1xf32, #tpu.memory_space<vmem>>, %arg4: memref<32x1xf32, #tpu.memory_space<vmem>>, %arg5: memref<32x288xbf16, #tpu.memory_space<vmem>>, %arg6: memref<32x1xf32, #tpu.memory_space<vmem>>, %arg7: memref<32x1xf32, #tpu.memory_space<vmem>>, %arg8: memref<32x2xf32, #tpu.memory_space<vmem>>, %arg9: memref<32x2xf32, #tpu.memory_space<vmem>>, %arg10: memref<1x256xbf16, #tpu.memory_space<vmem>>, %arg11: memref<1x256xbf16, #tpu.memory_space<vmem>>, %arg12: memref<32x16xbf16, #tpu.memory_space<vmem>>, %arg13: memref<32x1xf32, #tpu.memory_space<vmem>>, %arg14: memref<32x1xf32, #tpu.memory_space<vmem>>, %arg15: memref<2x32x256xf32, #tpu.memory_space<vmem>>, %arg16: memref<2x16x512xbf16, #tpu.memory_space<vmem>>, %arg17: memref<2x32x512xbf16, #tpu.memory_space<vmem>>, %arg18: memref<288x512xbf16, #tpu.memory_space<vmem>>) attributes {dimension_semantics = [#tpu.dimension_semantics<parallel>], iteration_bounds = array<i64: 1>, scalar_prefetch = 0 : i64, scratch_operands = 3 : i64, tpu.core_type = #tpu.core_type<tc>, window_params = [{transform_indices = @transform_0, window_bounds = array<i64: 2, 16, 256>}, {pipeline_mode = #tpu.pipeline_mode<synchronous>, transform_indices = @transform_1, window_bounds = array<i64: 32, 144>}, {pipeline_mode = #tpu.pipeline_mode<synchronous>, transform_indices = @transform_2, window_bounds = array<i64: 32, 1>}, {pipeline_mode = #tpu.pipeline_mode<synchronous>, transform_indices = @transform_3, window_bounds = array<i64: 32, 1>}, {pipeline_mode = #tpu.pipeline_mode<synchronous>, transform_indices = @transform_4, window_bounds = array<i64: 32, 288>}, {pipeline_mode = #tpu.pipeline_mode<synchronous>, transform_indices = @transform_5, window_bounds = array<i64: 32, 1>}, {pipeline_mode = #tpu.pipeline_mode<synchronous>, transform_indices = @transform_6, window_bounds = array<i64: 32, 1>}, {pipeline_mode = #tpu.pipeline_mode<synchronous>, transform_indices = @transform_7, window_bounds = array<i64: 32, 2>}, {pipeline_mode = #tpu.pipeline_mode<synchronous>, transform_indices = @transform_8, window_bounds = array<i64: 32, 2>}, {pipeline_mode = #tpu.pipeline_mode<synchronous>, transform_indices = @transform_9, window_bounds = array<i64: 1, 256>}, {pipeline_mode = #tpu.pipeline_mode<synchronous>, transform_indices = @transform_10, window_bounds = array<i64: 1, 256>}, {pipeline_mode = #tpu.pipeline_mode<synchronous>, transform_indices = @transform_11, window_bounds = array<i64: 32, 16>}, {pipeline_mode = #tpu.pipeline_mode<synchronous>, transform_indices = @transform_12, window_bounds = array<i64: 32, 1>}, {pipeline_mode = #tpu.pipeline_mode<synchronous>, transform_indices = @transform_13, window_bounds = array<i64: 32, 1>}, {transform_indices = @transform_14, window_bounds = array<i64: 2, 32, 256>}]} {
    %c0 = arith.constant 0 : index
    %c0_0 = arith.constant 0 : index
    %0 = vector.load %arg10[%c0, %c0_0] : memref<1x256xbf16, #tpu.memory_space<vmem>>, vector<1x256xbf16>
    %c0_1 = arith.constant 0 : index
    %c0_2 = arith.constant 0 : index
    %1 = vector.load %arg11[%c0_1, %c0_2] : memref<1x256xbf16, #tpu.memory_space<vmem>>, vector<1x256xbf16>
    %cst = arith.constant 0.000000e+00 : bf16
    %2 = vector.broadcast %cst : bf16 to vector<2x16x128xbf16>
    %c0_3 = arith.constant 0 : index
    %c0_4 = arith.constant 0 : index
    %c0_5 = arith.constant 0 : index
    %3 = vector.load %arg16[%c0_3, %c0_4, %c0_5] : memref<2x16x512xbf16, #tpu.memory_space<vmem>>, vector<2x16x128xbf16>
    tpu.vector_store %arg16[%c0_3, %c0_4, %c0_5], %2 {strides = array<i32>} : memref<2x16x512xbf16, #tpu.memory_space<vmem>>, vector<2x16x128xbf16>,
    %c0_6 = arith.constant 0 : index
    %c0_7 = arith.constant 0 : index
    %c384 = arith.constant 384 : index
    %4 = vector.load %arg16[%c0_6, %c0_7, %c384] : memref<2x16x512xbf16, #tpu.memory_space<vmem>>, vector<2x16x128xbf16>
    tpu.vector_store %arg16[%c0_6, %c0_7, %c384], %2 {strides = array<i32>} : memref<2x16x512xbf16, #tpu.memory_space<vmem>>, vector<2x16x128xbf16>,
    %cst_8 = arith.constant 0.000000e+00 : bf16
    %5 = vector.broadcast %cst_8 : bf16 to vector<2x32x128xbf16>
    %c0_9 = arith.constant 0 : index
    %c0_10 = arith.constant 0 : index
    %c0_11 = arith.constant 0 : index
    %6 = vector.load %arg17[%c0_9, %c0_10, %c0_11] : memref<2x32x512xbf16, #tpu.memory_space<vmem>>, vector<2x32x128xbf16>
    tpu.vector_store %arg17[%c0_9, %c0_10, %c0_11], %5 {strides = array<i32>} : memref<2x32x512xbf16, #tpu.memory_space<vmem>>, vector<2x32x128xbf16>,
    %c0_12 = arith.constant 0 : index
    %c0_13 = arith.constant 0 : index
    %c384_14 = arith.constant 384 : index
    %7 = vector.load %arg17[%c0_12, %c0_13, %c384_14] : memref<2x32x512xbf16, #tpu.memory_space<vmem>>, vector<2x32x128xbf16>
    tpu.vector_store %arg17[%c0_12, %c0_13, %c384_14], %5 {strides = array<i32>} : memref<2x32x512xbf16, #tpu.memory_space<vmem>>, vector<2x32x128xbf16>,
    %c0_15 = arith.constant 0 : index
    %c0_16 = arith.constant 0 : index
    %c0_17 = arith.constant 0 : index
    %8 = vector.load %arg1[%c0_15, %c0_16, %c0_17] : memref<2x16x256xf32, #tpu.memory_space<vmem>>, vector<1x16x256xf32>
    %9 = vector.shape_cast %8 : vector<1x16x256xf32> to vector<16x256xf32>
    %10 = arith.truncf %9 : vector<16x256xf32> to vector<16x256xbf16>
    %c0_18 = arith.constant 0 : index
    %c0_19 = arith.constant 0 : index
    %c128 = arith.constant 128 : index
    %11 = vector.load %arg16[%c0_18, %c0_19, %c128] : memref<2x16x512xbf16, #tpu.memory_space<vmem>>, vector<1x16x256xbf16>
    %12 = vector.shape_cast %11 : vector<1x16x256xbf16> to vector<16x256xbf16>
    %13 = vector.shape_cast %10 : vector<16x256xbf16> to vector<1x16x256xbf16>
    tpu.vector_store %arg16[%c0_18, %c0_19, %c128], %13 {strides = array<i32>} : memref<2x16x512xbf16, #tpu.memory_space<vmem>>, vector<1x16x256xbf16>,
    %c1 = arith.constant 1 : index
    %c0_20 = arith.constant 0 : index
    %c0_21 = arith.constant 0 : index
    %14 = vector.load %arg1[%c1, %c0_20, %c0_21] : memref<2x16x256xf32, #tpu.memory_space<vmem>>, vector<1x16x256xf32>
    %15 = vector.shape_cast %14 : vector<1x16x256xf32> to vector<16x256xf32>
    %16 = arith.truncf %15 : vector<16x256xf32> to vector<16x256xbf16>
    %c1_22 = arith.constant 1 : index
    %c0_23 = arith.constant 0 : index
    %c128_24 = arith.constant 128 : index
    %17 = vector.load %arg16[%c1_22, %c0_23, %c128_24] : memref<2x16x512xbf16, #tpu.memory_space<vmem>>, vector<1x16x256xbf16>
    %18 = vector.shape_cast %17 : vector<1x16x256xbf16> to vector<16x256xbf16>
    %19 = vector.shape_cast %16 : vector<16x256xbf16> to vector<1x16x256xbf16>
    tpu.vector_store %arg16[%c1_22, %c0_23, %c128_24], %19 {strides = array<i32>} : memref<2x16x512xbf16, #tpu.memory_space<vmem>>, vector<1x16x256xbf16>,
    %c0_25 = arith.constant 0 : index
    %c0_26 = arith.constant 0 : index
    %c111 = arith.constant 111 : index
    %20 = vector.load %arg16[%c0_25, %c0_26, %c111] : memref<2x16x512xbf16, #tpu.memory_space<vmem>>, vector<1x16x256xbf16>
    %21 = vector.shape_cast %20 : vector<1x16x256xbf16> to vector<16x256xbf16>
    %22 = vector.broadcast %0 : vector<1x256xbf16> to vector<16x256xbf16>
    %23 = arith.mulf %21, %22 : vector<16x256xbf16>
    %c0_27 = arith.constant 0 : index
    %c0_28 = arith.constant 0 : index
    %24 = vector.load %arg18[%c0_27, %c0_28] : memref<288x512xbf16, #tpu.memory_space<vmem>>, vector<16x256xbf16>
    tpu.vector_store %arg18[%c0_27, %c0_28], %23 {strides = array<i32>} : memref<288x512xbf16, #tpu.memory_space<vmem>>, vector<16x256xbf16>,
    %c0_29 = arith.constant 0 : index
    %c0_30 = arith.constant 0 : index
    %c112 = arith.constant 112 : index
    %25 = vector.load %arg16[%c0_29, %c0_30, %c112] : memref<2x16x512xbf16, #tpu.memory_space<vmem>>, vector<1x16x256xbf16>
    %26 = vector.shape_cast %25 : vector<1x16x256xbf16> to vector<16x256xbf16>
    %c16 = arith.constant 16 : index
    %c0_31 = arith.constant 0 : index
    %27 = vector.load %arg18[%c16, %c0_31] : memref<288x512xbf16, #tpu.memory_space<vmem>>, vector<16x256xbf16>
    tpu.vector_store %arg18[%c16, %c0_31], %26 {strides = array<i32>} : memref<288x512xbf16, #tpu.memory_space<vmem>>, vector<16x256xbf16>,
    %c0_32 = arith.constant 0 : index
    %c0_33 = arith.constant 0 : index
    %c113 = arith.constant 113 : index
    %28 = vector.load %arg16[%c0_32, %c0_33, %c113] : memref<2x16x512xbf16, #tpu.memory_space<vmem>>, vector<1x16x256xbf16>
    %29 = vector.shape_cast %28 : vector<1x16x256xbf16> to vector<16x256xbf16>
    %30 = vector.broadcast %1 : vector<1x256xbf16> to vector<16x256xbf16>
    %31 = arith.mulf %29, %30 : vector<16x256xbf16>
    %c32 = arith.constant 32 : index
    %c0_34 = arith.constant 0 : index
    %32 = vector.load %arg18[%c32, %c0_34] : memref<288x512xbf16, #tpu.memory_space<vmem>>, vector<16x256xbf16>
    tpu.vector_store %arg18[%c32, %c0_34], %31 {strides = array<i32>} : memref<288x512xbf16, #tpu.memory_space<vmem>>, vector<16x256xbf16>,
    %c0_35 = arith.constant 0 : index
    %c0_36 = arith.constant 0 : index
    %c127 = arith.constant 127 : index
    %33 = vector.load %arg16[%c0_35, %c0_36, %c127] : memref<2x16x512xbf16, #tpu.memory_space<vmem>>, vector<1x16x256xbf16>
    %34 = vector.shape_cast %33 : vector<1x16x256xbf16> to vector<16x256xbf16>
    %35 = vector.broadcast %0 : vector<1x256xbf16> to vector<16x256xbf16>
    %36 = arith.mulf %34, %35 : vector<16x256xbf16>
    %c48 = arith.constant 48 : index
    %c0_37 = arith.constant 0 : index
    %37 = vector.load %arg18[%c48, %c0_37] : memref<288x512xbf16, #tpu.memory_space<vmem>>, vector<16x256xbf16>
    tpu.vector_store %arg18[%c48, %c0_37], %36 {strides = array<i32>} : memref<288x512xbf16, #tpu.memory_space<vmem>>, vector<16x256xbf16>,
    %c0_38 = arith.constant 0 : index
    %c0_39 = arith.constant 0 : index
    %c128_40 = arith.constant 128 : index
    %38 = vector.load %arg16[%c0_38, %c0_39, %c128_40] : memref<2x16x512xbf16, #tpu.memory_space<vmem>>, vector<1x16x256xbf16>
    %39 = vector.shape_cast %38 : vector<1x16x256xbf16> to vector<16x256xbf16>
    %c64 = arith.constant 64 : index
    %c0_41 = arith.constant 0 : index
    %40 = vector.load %arg18[%c64, %c0_41] : memref<288x512xbf16, #tpu.memory_space<vmem>>, vector<16x256xbf16>
    tpu.vector_store %arg18[%c64, %c0_41], %39 {strides = array<i32>} : memref<288x512xbf16, #tpu.memory_space<vmem>>, vector<16x256xbf16>,
    %c0_42 = arith.constant 0 : index
    %c0_43 = arith.constant 0 : index
    %c129 = arith.constant 129 : index
    %41 = vector.load %arg16[%c0_42, %c0_43, %c129] : memref<2x16x512xbf16, #tpu.memory_space<vmem>>, vector<1x16x256xbf16>
    %42 = vector.shape_cast %41 : vector<1x16x256xbf16> to vector<16x256xbf16>
    %43 = vector.broadcast %1 : vector<1x256xbf16> to vector<16x256xbf16>
    %44 = arith.mulf %42, %43 : vector<16x256xbf16>
    %c80 = arith.constant 80 : index
    %c0_44 = arith.constant 0 : index
    %45 = vector.load %arg18[%c80, %c0_44] : memref<288x512xbf16, #tpu.memory_space<vmem>>, vector<16x256xbf16>
    tpu.vector_store %arg18[%c80, %c0_44], %44 {strides = array<i32>} : memref<288x512xbf16, #tpu.memory_space<vmem>>, vector<16x256xbf16>,
    %c0_45 = arith.constant 0 : index
    %c0_46 = arith.constant 0 : index
    %c143 = arith.constant 143 : index
    %46 = vector.load %arg16[%c0_45, %c0_46, %c143] : memref<2x16x512xbf16, #tpu.memory_space<vmem>>, vector<1x16x256xbf16>
    %47 = vector.shape_cast %46 : vector<1x16x256xbf16> to vector<16x256xbf16>
    %48 = vector.broadcast %0 : vector<1x256xbf16> to vector<16x256xbf16>
    %49 = arith.mulf %47, %48 : vector<16x256xbf16>
    %c96 = arith.constant 96 : index
    %c0_47 = arith.constant 0 : index
    %50 = vector.load %arg18[%c96, %c0_47] : memref<288x512xbf16, #tpu.memory_space<vmem>>, vector<16x256xbf16>
    tpu.vector_store %arg18[%c96, %c0_47], %49 {strides = array<i32>} : memref<288x512xbf16, #tpu.memory_space<vmem>>, vector<16x256xbf16>,
    %c0_48 = arith.constant 0 : index
    %c0_49 = arith.constant 0 : index
    %c144 = arith.constant 144 : index
    %51 = vector.load %arg16[%c0_48, %c0_49, %c144] : memref<2x16x512xbf16, #tpu.memory_space<vmem>>, vector<1x16x256xbf16>
    %52 = vector.shape_cast %51 : vector<1x16x256xbf16> to vector<16x256xbf16>
    %c112_50 = arith.constant 112 : index
    %c0_51 = arith.constant 0 : index
    %53 = vector.load %arg18[%c112_50, %c0_51] : memref<288x512xbf16, #tpu.memory_space<vmem>>, vector<16x256xbf16>
    tpu.vector_store %arg18[%c112_50, %c0_51], %52 {strides = array<i32>} : memref<288x512xbf16, #tpu.memory_space<vmem>>, vector<16x256xbf16>,
    %c0_52 = arith.constant 0 : index
    %c0_53 = arith.constant 0 : index
    %c145 = arith.constant 145 : index
    %54 = vector.load %arg16[%c0_52, %c0_53, %c145] : memref<2x16x512xbf16, #tpu.memory_space<vmem>>, vector<1x16x256xbf16>
    %55 = vector.shape_cast %54 : vector<1x16x256xbf16> to vector<16x256xbf16>
    %56 = vector.broadcast %1 : vector<1x256xbf16> to vector<16x256xbf16>
    %57 = arith.mulf %55, %56 : vector<16x256xbf16>
    %c128_54 = arith.constant 128 : index
    %c0_55 = arith.constant 0 : index
    %58 = vector.load %arg18[%c128_54, %c0_55] : memref<288x512xbf16, #tpu.memory_space<vmem>>, vector<16x256xbf16>
    tpu.vector_store %arg18[%c128_54, %c0_55], %57 {strides = array<i32>} : memref<288x512xbf16, #tpu.memory_space<vmem>>, vector<16x256xbf16>,
    %c1_56 = arith.constant 1 : index
    %c0_57 = arith.constant 0 : index
    %c111_58 = arith.constant 111 : index
    %59 = vector.load %arg16[%c1_56, %c0_57, %c111_58] : memref<2x16x512xbf16, #tpu.memory_space<vmem>>, vector<1x16x256xbf16>
    %60 = vector.shape_cast %59 : vector<1x16x256xbf16> to vector<16x256xbf16>
    %61 = vector.broadcast %0 : vector<1x256xbf16> to vector<16x256xbf16>
    %62 = arith.mulf %60, %61 : vector<16x256xbf16>
    %c0_59 = arith.constant 0 : index
    %c256 = arith.constant 256 : index
    %63 = vector.load %arg18[%c0_59, %c256] : memref<288x512xbf16, #tpu.memory_space<vmem>>, vector<16x256xbf16>
    tpu.vector_store %arg18[%c0_59, %c256], %62 {strides = array<i32>} : memref<288x512xbf16, #tpu.memory_space<vmem>>, vector<16x256xbf16>,
    %c1_60 = arith.constant 1 : index
    %c0_61 = arith.constant 0 : index
    %c112_62 = arith.constant 112 : index
    %64 = vector.load %arg16[%c1_60, %c0_61, %c112_62] : memref<2x16x512xbf16, #tpu.memory_space<vmem>>, vector<1x16x256xbf16>
    %65 = vector.shape_cast %64 : vector<1x16x256xbf16> to vector<16x256xbf16>
    %c16_63 = arith.constant 16 : index
    %c256_64 = arith.constant 256 : index
    %66 = vector.load %arg18[%c16_63, %c256_64] : memref<288x512xbf16, #tpu.memory_space<vmem>>, vector<16x256xbf16>
    tpu.vector_store %arg18[%c16_63, %c256_64], %65 {strides = array<i32>} : memref<288x512xbf16, #tpu.memory_space<vmem>>, vector<16x256xbf16>,
    %c1_65 = arith.constant 1 : index
    %c0_66 = arith.constant 0 : index
    %c113_67 = arith.constant 113 : index
    %67 = vector.load %arg16[%c1_65, %c0_66, %c113_67] : memref<2x16x512xbf16, #tpu.memory_space<vmem>>, vector<1x16x256xbf16>
    %68 = vector.shape_cast %67 : vector<1x16x256xbf16> to vector<16x256xbf16>
    %69 = vector.broadcast %1 : vector<1x256xbf16> to vector<16x256xbf16>
    %70 = arith.mulf %68, %69 : vector<16x256xbf16>
    %c32_68 = arith.constant 32 : index
    %c256_69 = arith.constant 256 : index
    %71 = vector.load %arg18[%c32_68, %c256_69] : memref<288x512xbf16, #tpu.memory_space<vmem>>, vector<16x256xbf16>
    tpu.vector_store %arg18[%c32_68, %c256_69], %70 {strides = array<i32>} : memref<288x512xbf16, #tpu.memory_space<vmem>>, vector<16x256xbf16>,
    %c1_70 = arith.constant 1 : index
    %c0_71 = arith.constant 0 : index
    %c127_72 = arith.constant 127 : index
    %72 = vector.load %arg16[%c1_70, %c0_71, %c127_72] : memref<2x16x512xbf16, #tpu.memory_space<vmem>>, vector<1x16x256xbf16>
    %73 = vector.shape_cast %72 : vector<1x16x256xbf16> to vector<16x256xbf16>
    %74 = vector.broadcast %0 : vector<1x256xbf16> to vector<16x256xbf16>
    %75 = arith.mulf %73, %74 : vector<16x256xbf16>
    %c48_73 = arith.constant 48 : index
    %c256_74 = arith.constant 256 : index
    %76 = vector.load %arg18[%c48_73, %c256_74] : memref<288x512xbf16, #tpu.memory_space<vmem>>, vector<16x256xbf16>
    tpu.vector_store %arg18[%c48_73, %c256_74], %75 {strides = array<i32>} : memref<288x512xbf16, #tpu.memory_space<vmem>>, vector<16x256xbf16>,
    %c1_75 = arith.constant 1 : index
    %c0_76 = arith.constant 0 : index
    %c128_77 = arith.constant 128 : index
    %77 = vector.load %arg16[%c1_75, %c0_76, %c128_77] : memref<2x16x512xbf16, #tpu.memory_space<vmem>>, vector<1x16x256xbf16>
    %78 = vector.shape_cast %77 : vector<1x16x256xbf16> to vector<16x256xbf16>
    %c64_78 = arith.constant 64 : index
    %c256_79 = arith.constant 256 : index
    %79 = vector.load %arg18[%c64_78, %c256_79] : memref<288x512xbf16, #tpu.memory_space<vmem>>, vector<16x256xbf16>
    tpu.vector_store %arg18[%c64_78, %c256_79], %78 {strides = array<i32>} : memref<288x512xbf16, #tpu.memory_space<vmem>>, vector<16x256xbf16>,
    %c1_80 = arith.constant 1 : index
    %c0_81 = arith.constant 0 : index
    %c129_82 = arith.constant 129 : index
    %80 = vector.load %arg16[%c1_80, %c0_81, %c129_82] : memref<2x16x512xbf16, #tpu.memory_space<vmem>>, vector<1x16x256xbf16>
    %81 = vector.shape_cast %80 : vector<1x16x256xbf16> to vector<16x256xbf16>
    %82 = vector.broadcast %1 : vector<1x256xbf16> to vector<16x256xbf16>
    %83 = arith.mulf %81, %82 : vector<16x256xbf16>
    %c80_83 = arith.constant 80 : index
    %c256_84 = arith.constant 256 : index
    %84 = vector.load %arg18[%c80_83, %c256_84] : memref<288x512xbf16, #tpu.memory_space<vmem>>, vector<16x256xbf16>
    tpu.vector_store %arg18[%c80_83, %c256_84], %83 {strides = array<i32>} : memref<288x512xbf16, #tpu.memory_space<vmem>>, vector<16x256xbf16>,
    %c1_85 = arith.constant 1 : index
    %c0_86 = arith.constant 0 : index
    %c143_87 = arith.constant 143 : index
    %85 = vector.load %arg16[%c1_85, %c0_86, %c143_87] : memref<2x16x512xbf16, #tpu.memory_space<vmem>>, vector<1x16x256xbf16>
    %86 = vector.shape_cast %85 : vector<1x16x256xbf16> to vector<16x256xbf16>
    %87 = vector.broadcast %0 : vector<1x256xbf16> to vector<16x256xbf16>
    %88 = arith.mulf %86, %87 : vector<16x256xbf16>
    %c96_88 = arith.constant 96 : index
    %c256_89 = arith.constant 256 : index
    %89 = vector.load %arg18[%c96_88, %c256_89] : memref<288x512xbf16, #tpu.memory_space<vmem>>, vector<16x256xbf16>
    tpu.vector_store %arg18[%c96_88, %c256_89], %88 {strides = array<i32>} : memref<288x512xbf16, #tpu.memory_space<vmem>>, vector<16x256xbf16>,
    %c1_90 = arith.constant 1 : index
    %c0_91 = arith.constant 0 : index
    %c144_92 = arith.constant 144 : index
    %90 = vector.load %arg16[%c1_90, %c0_91, %c144_92] : memref<2x16x512xbf16, #tpu.memory_space<vmem>>, vector<1x16x256xbf16>
    %91 = vector.shape_cast %90 : vector<1x16x256xbf16> to vector<16x256xbf16>
    %c112_93 = arith.constant 112 : index
    %c256_94 = arith.constant 256 : index
    %92 = vector.load %arg18[%c112_93, %c256_94] : memref<288x512xbf16, #tpu.memory_space<vmem>>, vector<16x256xbf16>
    tpu.vector_store %arg18[%c112_93, %c256_94], %91 {strides = array<i32>} : memref<288x512xbf16, #tpu.memory_space<vmem>>, vector<16x256xbf16>,
    %c1_95 = arith.constant 1 : index
    %c0_96 = arith.constant 0 : index
    %c145_97 = arith.constant 145 : index
    %93 = vector.load %arg16[%c1_95, %c0_96, %c145_97] : memref<2x16x512xbf16, #tpu.memory_space<vmem>>, vector<1x16x256xbf16>
    %94 = vector.shape_cast %93 : vector<1x16x256xbf16> to vector<16x256xbf16>
    %95 = vector.broadcast %1 : vector<1x256xbf16> to vector<16x256xbf16>
    %96 = arith.mulf %94, %95 : vector<16x256xbf16>
    %c128_98 = arith.constant 128 : index
    %c256_99 = arith.constant 256 : index
    %97 = vector.load %arg18[%c128_98, %c256_99] : memref<288x512xbf16, #tpu.memory_space<vmem>>, vector<16x256xbf16>
    tpu.vector_store %arg18[%c128_98, %c256_99], %96 {strides = array<i32>} : memref<288x512xbf16, #tpu.memory_space<vmem>>, vector<16x256xbf16>,
    %c0_100 = arith.constant 0 : index
    %c0_101 = arith.constant 0 : index
    %98 = vector.load %arg2[%c0_100, %c0_101] : memref<32x144xbf16, #tpu.memory_space<vmem>>, vector<32x144xbf16>
    %c0_102 = arith.constant 0 : index
    %c0_103 = arith.constant 0 : index
    %99 = vector.load %arg18[%c0_102, %c0_103] : memref<288x512xbf16, #tpu.memory_space<vmem>>, vector<144x512xbf16>
    %cst_104 = arith.constant dense<0.000000e+00> : vector<32x512xf32>
    %100 = tpu.matmul %98, %99, %cst_104 {dimension_numbers = #tpu.dot_dimension_numbers<[1], [0], [0], [1], [0, 0, 1, 1], [], []>} : vector<32x144xbf16>, vector<144x512xbf16>, vector<32x512xf32> -> vector<32x512xf32>
    %c0_105 = arith.constant 0 : index
    %c0_106 = arith.constant 0 : index
    %101 = vector.load %arg3[%c0_105, %c0_106] : memref<32x1xf32, #tpu.memory_space<vmem>>, vector<32x1xf32>
    %102 = vector.broadcast %101 : vector<32x1xf32> to vector<32x512xf32>
    %103 = arith.mulf %100, %102 : vector<32x512xf32>
    %c0_107 = arith.constant 0 : index
    %c0_108 = arith.constant 0 : index
    %104 = vector.load %arg4[%c0_107, %c0_108] : memref<32x1xf32, #tpu.memory_space<vmem>>, vector<32x1xf32>
    %105 = vector.broadcast %104 : vector<32x1xf32> to vector<32x512xf32>
    %106 = arith.addf %103, %105 : vector<32x512xf32>
    %cst_109 = arith.constant 0.000000e+00 : f32
    %107 = vector.broadcast %cst_109 : f32 to vector<32x512xf32>
    %108 = arith.maximumf %106, %107 : vector<32x512xf32>
    %c0_110 = arith.constant 0 : index
    %c0_111 = arith.constant 0 : index
    %109 = vector.load %arg12[%c0_110, %c0_111] : memref<32x16xbf16, #tpu.memory_space<vmem>>, vector<32x16xbf16>
    %c64_112 = arith.constant 64 : index
    %c0_113 = arith.constant 0 : index
    %110 = vector.load %arg18[%c64_112, %c0_113] : memref<288x512xbf16, #tpu.memory_space<vmem>>, vector<16x512xbf16>
    %cst_114 = arith.constant dense<0.000000e+00> : vector<32x512xf32>
    %111 = tpu.matmul %109, %110, %cst_114 {dimension_numbers = #tpu.dot_dimension_numbers<[1], [0], [0], [1], [0, 0, 1, 1], [], []>} : vector<32x16xbf16>, vector<16x512xbf16>, vector<32x512xf32> -> vector<32x512xf32>
    %c0_115 = arith.constant 0 : index
    %c0_116 = arith.constant 0 : index
    %112 = vector.load %arg13[%c0_115, %c0_116] : memref<32x1xf32, #tpu.memory_space<vmem>>, vector<32x1xf32>
    %113 = vector.broadcast %112 : vector<32x1xf32> to vector<32x512xf32>
    %114 = arith.mulf %111, %113 : vector<32x512xf32>
    %c0_117 = arith.constant 0 : index
    %c0_118 = arith.constant 0 : index
    %115 = vector.load %arg14[%c0_117, %c0_118] : memref<32x1xf32, #tpu.memory_space<vmem>>, vector<32x1xf32>
    %116 = vector.broadcast %115 : vector<32x1xf32> to vector<32x512xf32>
    %117 = arith.addf %114, %116 : vector<32x512xf32>
    %118 = vector.extract_strided_slice %108 {offsets = [0, 0], sizes = [32, 256], strides = [1, 1]} : vector<32x512xf32> to vector<32x256xf32>
    %119 = arith.truncf %118 : vector<32x256xf32> to vector<32x256xbf16>
    %c0_119 = arith.constant 0 : index
    %c0_120 = arith.constant 0 : index
    %c128_121 = arith.constant 128 : index
    %120 = vector.load %arg17[%c0_119, %c0_120, %c128_121] : memref<2x32x512xbf16, #tpu.memory_space<vmem>>, vector<1x32x256xbf16>
    %121 = vector.shape_cast %120 : vector<1x32x256xbf16> to vector<32x256xbf16>
    %122 = vector.shape_cast %119 : vector<32x256xbf16> to vector<1x32x256xbf16>
    tpu.vector_store %arg17[%c0_119, %c0_120, %c128_121], %122 {strides = array<i32>} : memref<2x32x512xbf16, #tpu.memory_space<vmem>>, vector<1x32x256xbf16>,
    %123 = vector.extract_strided_slice %108 {offsets = [0, 256], sizes = [32, 256], strides = [1, 1]} : vector<32x512xf32> to vector<32x256xf32>
    %124 = arith.truncf %123 : vector<32x256xf32> to vector<32x256xbf16>
    %c1_122 = arith.constant 1 : index
    %c0_123 = arith.constant 0 : index
    %c128_124 = arith.constant 128 : index
    %125 = vector.load %arg17[%c1_122, %c0_123, %c128_124] : memref<2x32x512xbf16, #tpu.memory_space<vmem>>, vector<1x32x256xbf16>
    %126 = vector.shape_cast %125 : vector<1x32x256xbf16> to vector<32x256xbf16>
    %127 = vector.shape_cast %124 : vector<32x256xbf16> to vector<1x32x256xbf16>
    tpu.vector_store %arg17[%c1_122, %c0_123, %c128_124], %127 {strides = array<i32>} : memref<2x32x512xbf16, #tpu.memory_space<vmem>>, vector<1x32x256xbf16>,
    %c0_125 = arith.constant 0 : index
    %c0_126 = arith.constant 0 : index
    %c111_127 = arith.constant 111 : index
    %128 = vector.load %arg17[%c0_125, %c0_126, %c111_127] : memref<2x32x512xbf16, #tpu.memory_space<vmem>>, vector<1x32x256xbf16>
    %129 = vector.shape_cast %128 : vector<1x32x256xbf16> to vector<32x256xbf16>
    %130 = vector.broadcast %0 : vector<1x256xbf16> to vector<32x256xbf16>
    %131 = arith.mulf %129, %130 : vector<32x256xbf16>
    %c0_128 = arith.constant 0 : index
    %c0_129 = arith.constant 0 : index
    %132 = vector.load %arg18[%c0_128, %c0_129] : memref<288x512xbf16, #tpu.memory_space<vmem>>, vector<32x256xbf16>
    tpu.vector_store %arg18[%c0_128, %c0_129], %131 {strides = array<i32>} : memref<288x512xbf16, #tpu.memory_space<vmem>>, vector<32x256xbf16>,
    %c0_130 = arith.constant 0 : index
    %c0_131 = arith.constant 0 : index
    %c112_132 = arith.constant 112 : index
    %133 = vector.load %arg17[%c0_130, %c0_131, %c112_132] : memref<2x32x512xbf16, #tpu.memory_space<vmem>>, vector<1x32x256xbf16>
    %134 = vector.shape_cast %133 : vector<1x32x256xbf16> to vector<32x256xbf16>
    %c32_133 = arith.constant 32 : index
    %c0_134 = arith.constant 0 : index
    %135 = vector.load %arg18[%c32_133, %c0_134] : memref<288x512xbf16, #tpu.memory_space<vmem>>, vector<32x256xbf16>
    tpu.vector_store %arg18[%c32_133, %c0_134], %134 {strides = array<i32>} : memref<288x512xbf16, #tpu.memory_space<vmem>>, vector<32x256xbf16>,
    %c0_135 = arith.constant 0 : index
    %c0_136 = arith.constant 0 : index
    %c113_137 = arith.constant 113 : index
    %136 = vector.load %arg17[%c0_135, %c0_136, %c113_137] : memref<2x32x512xbf16, #tpu.memory_space<vmem>>, vector<1x32x256xbf16>
    %137 = vector.shape_cast %136 : vector<1x32x256xbf16> to vector<32x256xbf16>
    %138 = vector.broadcast %1 : vector<1x256xbf16> to vector<32x256xbf16>
    %139 = arith.mulf %137, %138 : vector<32x256xbf16>
    %c64_138 = arith.constant 64 : index
    %c0_139 = arith.constant 0 : index
    %140 = vector.load %arg18[%c64_138, %c0_139] : memref<288x512xbf16, #tpu.memory_space<vmem>>, vector<32x256xbf16>
    tpu.vector_store %arg18[%c64_138, %c0_139], %139 {strides = array<i32>} : memref<288x512xbf16, #tpu.memory_space<vmem>>, vector<32x256xbf16>,
    %c0_140 = arith.constant 0 : index
    %c0_141 = arith.constant 0 : index
    %c127_142 = arith.constant 127 : index
    %141 = vector.load %arg17[%c0_140, %c0_141, %c127_142] : memref<2x32x512xbf16, #tpu.memory_space<vmem>>, vector<1x32x256xbf16>
    %142 = vector.shape_cast %141 : vector<1x32x256xbf16> to vector<32x256xbf16>
    %143 = vector.broadcast %0 : vector<1x256xbf16> to vector<32x256xbf16>
    %144 = arith.mulf %142, %143 : vector<32x256xbf16>
    %c96_143 = arith.constant 96 : index
    %c0_144 = arith.constant 0 : index
    %145 = vector.load %arg18[%c96_143, %c0_144] : memref<288x512xbf16, #tpu.memory_space<vmem>>, vector<32x256xbf16>
    tpu.vector_store %arg18[%c96_143, %c0_144], %144 {strides = array<i32>} : memref<288x512xbf16, #tpu.memory_space<vmem>>, vector<32x256xbf16>,
    %c0_145 = arith.constant 0 : index
    %c0_146 = arith.constant 0 : index
    %c128_147 = arith.constant 128 : index
    %146 = vector.load %arg17[%c0_145, %c0_146, %c128_147] : memref<2x32x512xbf16, #tpu.memory_space<vmem>>, vector<1x32x256xbf16>
    %147 = vector.shape_cast %146 : vector<1x32x256xbf16> to vector<32x256xbf16>
    %c128_148 = arith.constant 128 : index
    %c0_149 = arith.constant 0 : index
    %148 = vector.load %arg18[%c128_148, %c0_149] : memref<288x512xbf16, #tpu.memory_space<vmem>>, vector<32x256xbf16>
    tpu.vector_store %arg18[%c128_148, %c0_149], %147 {strides = array<i32>} : memref<288x512xbf16, #tpu.memory_space<vmem>>, vector<32x256xbf16>,
    %c0_150 = arith.constant 0 : index
    %c0_151 = arith.constant 0 : index
    %c129_152 = arith.constant 129 : index
    %149 = vector.load %arg17[%c0_150, %c0_151, %c129_152] : memref<2x32x512xbf16, #tpu.memory_space<vmem>>, vector<1x32x256xbf16>
    %150 = vector.shape_cast %149 : vector<1x32x256xbf16> to vector<32x256xbf16>
    %151 = vector.broadcast %1 : vector<1x256xbf16> to vector<32x256xbf16>
    %152 = arith.mulf %150, %151 : vector<32x256xbf16>
    %c160 = arith.constant 160 : index
    %c0_153 = arith.constant 0 : index
    %153 = vector.load %arg18[%c160, %c0_153] : memref<288x512xbf16, #tpu.memory_space<vmem>>, vector<32x256xbf16>
    tpu.vector_store %arg18[%c160, %c0_153], %152 {strides = array<i32>} : memref<288x512xbf16, #tpu.memory_space<vmem>>, vector<32x256xbf16>,
    %c0_154 = arith.constant 0 : index
    %c0_155 = arith.constant 0 : index
    %c143_156 = arith.constant 143 : index
    %154 = vector.load %arg17[%c0_154, %c0_155, %c143_156] : memref<2x32x512xbf16, #tpu.memory_space<vmem>>, vector<1x32x256xbf16>
    %155 = vector.shape_cast %154 : vector<1x32x256xbf16> to vector<32x256xbf16>
    %156 = vector.broadcast %0 : vector<1x256xbf16> to vector<32x256xbf16>
    %157 = arith.mulf %155, %156 : vector<32x256xbf16>
    %c192 = arith.constant 192 : index
    %c0_157 = arith.constant 0 : index
    %158 = vector.load %arg18[%c192, %c0_157] : memref<288x512xbf16, #tpu.memory_space<vmem>>, vector<32x256xbf16>
    tpu.vector_store %arg18[%c192, %c0_157], %157 {strides = array<i32>} : memref<288x512xbf16, #tpu.memory_space<vmem>>, vector<32x256xbf16>,
    %c0_158 = arith.constant 0 : index
    %c0_159 = arith.constant 0 : index
    %c144_160 = arith.constant 144 : index
    %159 = vector.load %arg17[%c0_158, %c0_159, %c144_160] : memref<2x32x512xbf16, #tpu.memory_space<vmem>>, vector<1x32x256xbf16>
    %160 = vector.shape_cast %159 : vector<1x32x256xbf16> to vector<32x256xbf16>
    %c224 = arith.constant 224 : index
    %c0_161 = arith.constant 0 : index
    %161 = vector.load %arg18[%c224, %c0_161] : memref<288x512xbf16, #tpu.memory_space<vmem>>, vector<32x256xbf16>
    tpu.vector_store %arg18[%c224, %c0_161], %160 {strides = array<i32>} : memref<288x512xbf16, #tpu.memory_space<vmem>>, vector<32x256xbf16>,
    %c0_162 = arith.constant 0 : index
    %c0_163 = arith.constant 0 : index
    %c145_164 = arith.constant 145 : index
    %162 = vector.load %arg17[%c0_162, %c0_163, %c145_164] : memref<2x32x512xbf16, #tpu.memory_space<vmem>>, vector<1x32x256xbf16>
    %163 = vector.shape_cast %162 : vector<1x32x256xbf16> to vector<32x256xbf16>
    %164 = vector.broadcast %1 : vector<1x256xbf16> to vector<32x256xbf16>
    %165 = arith.mulf %163, %164 : vector<32x256xbf16>
    %c256_165 = arith.constant 256 : index
    %c0_166 = arith.constant 0 : index
    %166 = vector.load %arg18[%c256_165, %c0_166] : memref<288x512xbf16, #tpu.memory_space<vmem>>, vector<32x256xbf16>
    tpu.vector_store %arg18[%c256_165, %c0_166], %165 {strides = array<i32>} : memref<288x512xbf16, #tpu.memory_space<vmem>>, vector<32x256xbf16>,
    %c1_167 = arith.constant 1 : index
    %c0_168 = arith.constant 0 : index
    %c111_169 = arith.constant 111 : index
    %167 = vector.load %arg17[%c1_167, %c0_168, %c111_169] : memref<2x32x512xbf16, #tpu.memory_space<vmem>>, vector<1x32x256xbf16>
    %168 = vector.shape_cast %167 : vector<1x32x256xbf16> to vector<32x256xbf16>
    %169 = vector.broadcast %0 : vector<1x256xbf16> to vector<32x256xbf16>
    %170 = arith.mulf %168, %169 : vector<32x256xbf16>
    %c0_170 = arith.constant 0 : index
    %c256_171 = arith.constant 256 : index
    %171 = vector.load %arg18[%c0_170, %c256_171] : memref<288x512xbf16, #tpu.memory_space<vmem>>, vector<32x256xbf16>
    tpu.vector_store %arg18[%c0_170, %c256_171], %170 {strides = array<i32>} : memref<288x512xbf16, #tpu.memory_space<vmem>>, vector<32x256xbf16>,
    %c1_172 = arith.constant 1 : index
    %c0_173 = arith.constant 0 : index
    %c112_174 = arith.constant 112 : index
    %172 = vector.load %arg17[%c1_172, %c0_173, %c112_174] : memref<2x32x512xbf16, #tpu.memory_space<vmem>>, vector<1x32x256xbf16>
    %173 = vector.shape_cast %172 : vector<1x32x256xbf16> to vector<32x256xbf16>
    %c32_175 = arith.constant 32 : index
    %c256_176 = arith.constant 256 : index
    %174 = vector.load %arg18[%c32_175, %c256_176] : memref<288x512xbf16, #tpu.memory_space<vmem>>, vector<32x256xbf16>
    tpu.vector_store %arg18[%c32_175, %c256_176], %173 {strides = array<i32>} : memref<288x512xbf16, #tpu.memory_space<vmem>>, vector<32x256xbf16>,
    %c1_177 = arith.constant 1 : index
    %c0_178 = arith.constant 0 : index
    %c113_179 = arith.constant 113 : index
    %175 = vector.load %arg17[%c1_177, %c0_178, %c113_179] : memref<2x32x512xbf16, #tpu.memory_space<vmem>>, vector<1x32x256xbf16>
    %176 = vector.shape_cast %175 : vector<1x32x256xbf16> to vector<32x256xbf16>
    %177 = vector.broadcast %1 : vector<1x256xbf16> to vector<32x256xbf16>
    %178 = arith.mulf %176, %177 : vector<32x256xbf16>
    %c64_180 = arith.constant 64 : index
    %c256_181 = arith.constant 256 : index
    %179 = vector.load %arg18[%c64_180, %c256_181] : memref<288x512xbf16, #tpu.memory_space<vmem>>, vector<32x256xbf16>
    tpu.vector_store %arg18[%c64_180, %c256_181], %178 {strides = array<i32>} : memref<288x512xbf16, #tpu.memory_space<vmem>>, vector<32x256xbf16>,
    %c1_182 = arith.constant 1 : index
    %c0_183 = arith.constant 0 : index
    %c127_184 = arith.constant 127 : index
    %180 = vector.load %arg17[%c1_182, %c0_183, %c127_184] : memref<2x32x512xbf16, #tpu.memory_space<vmem>>, vector<1x32x256xbf16>
    %181 = vector.shape_cast %180 : vector<1x32x256xbf16> to vector<32x256xbf16>
    %182 = vector.broadcast %0 : vector<1x256xbf16> to vector<32x256xbf16>
    %183 = arith.mulf %181, %182 : vector<32x256xbf16>
    %c96_185 = arith.constant 96 : index
    %c256_186 = arith.constant 256 : index
    %184 = vector.load %arg18[%c96_185, %c256_186] : memref<288x512xbf16, #tpu.memory_space<vmem>>, vector<32x256xbf16>
    tpu.vector_store %arg18[%c96_185, %c256_186], %183 {strides = array<i32>} : memref<288x512xbf16, #tpu.memory_space<vmem>>, vector<32x256xbf16>,
    %c1_187 = arith.constant 1 : index
    %c0_188 = arith.constant 0 : index
    %c128_189 = arith.constant 128 : index
    %185 = vector.load %arg17[%c1_187, %c0_188, %c128_189] : memref<2x32x512xbf16, #tpu.memory_space<vmem>>, vector<1x32x256xbf16>
    %186 = vector.shape_cast %185 : vector<1x32x256xbf16> to vector<32x256xbf16>
    %c128_190 = arith.constant 128 : index
    %c256_191 = arith.constant 256 : index
    %187 = vector.load %arg18[%c128_190, %c256_191] : memref<288x512xbf16, #tpu.memory_space<vmem>>, vector<32x256xbf16>
    tpu.vector_store %arg18[%c128_190, %c256_191], %186 {strides = array<i32>} : memref<288x512xbf16, #tpu.memory_space<vmem>>, vector<32x256xbf16>,
    %c1_192 = arith.constant 1 : index
    %c0_193 = arith.constant 0 : index
    %c129_194 = arith.constant 129 : index
    %188 = vector.load %arg17[%c1_192, %c0_193, %c129_194] : memref<2x32x512xbf16, #tpu.memory_space<vmem>>, vector<1x32x256xbf16>
    %189 = vector.shape_cast %188 : vector<1x32x256xbf16> to vector<32x256xbf16>
    %190 = vector.broadcast %1 : vector<1x256xbf16> to vector<32x256xbf16>
    %191 = arith.mulf %189, %190 : vector<32x256xbf16>
    %c160_195 = arith.constant 160 : index
    %c256_196 = arith.constant 256 : index
    %192 = vector.load %arg18[%c160_195, %c256_196] : memref<288x512xbf16, #tpu.memory_space<vmem>>, vector<32x256xbf16>
    tpu.vector_store %arg18[%c160_195, %c256_196], %191 {strides = array<i32>} : memref<288x512xbf16, #tpu.memory_space<vmem>>, vector<32x256xbf16>,
    %c1_197 = arith.constant 1 : index
    %c0_198 = arith.constant 0 : index
    %c143_199 = arith.constant 143 : index
    %193 = vector.load %arg17[%c1_197, %c0_198, %c143_199] : memref<2x32x512xbf16, #tpu.memory_space<vmem>>, vector<1x32x256xbf16>
    %194 = vector.shape_cast %193 : vector<1x32x256xbf16> to vector<32x256xbf16>
    %195 = vector.broadcast %0 : vector<1x256xbf16> to vector<32x256xbf16>
    %196 = arith.mulf %194, %195 : vector<32x256xbf16>
    %c192_200 = arith.constant 192 : index
    %c256_201 = arith.constant 256 : index
    %197 = vector.load %arg18[%c192_200, %c256_201] : memref<288x512xbf16, #tpu.memory_space<vmem>>, vector<32x256xbf16>
    tpu.vector_store %arg18[%c192_200, %c256_201], %196 {strides = array<i32>} : memref<288x512xbf16, #tpu.memory_space<vmem>>, vector<32x256xbf16>,
    %c1_202 = arith.constant 1 : index
    %c0_203 = arith.constant 0 : index
    %c144_204 = arith.constant 144 : index
    %198 = vector.load %arg17[%c1_202, %c0_203, %c144_204] : memref<2x32x512xbf16, #tpu.memory_space<vmem>>, vector<1x32x256xbf16>
    %199 = vector.shape_cast %198 : vector<1x32x256xbf16> to vector<32x256xbf16>
    %c224_205 = arith.constant 224 : index
    %c256_206 = arith.constant 256 : index
    %200 = vector.load %arg18[%c224_205, %c256_206] : memref<288x512xbf16, #tpu.memory_space<vmem>>, vector<32x256xbf16>
    tpu.vector_store %arg18[%c224_205, %c256_206], %199 {strides = array<i32>} : memref<288x512xbf16, #tpu.memory_space<vmem>>, vector<32x256xbf16>,
    %c1_207 = arith.constant 1 : index
    %c0_208 = arith.constant 0 : index
    %c145_209 = arith.constant 145 : index
    %201 = vector.load %arg17[%c1_207, %c0_208, %c145_209] : memref<2x32x512xbf16, #tpu.memory_space<vmem>>, vector<1x32x256xbf16>
    %202 = vector.shape_cast %201 : vector<1x32x256xbf16> to vector<32x256xbf16>
    %203 = vector.broadcast %1 : vector<1x256xbf16> to vector<32x256xbf16>
    %204 = arith.mulf %202, %203 : vector<32x256xbf16>
    %c256_210 = arith.constant 256 : index
    %c256_211 = arith.constant 256 : index
    %205 = vector.load %arg18[%c256_210, %c256_211] : memref<288x512xbf16, #tpu.memory_space<vmem>>, vector<32x256xbf16>
    tpu.vector_store %arg18[%c256_210, %c256_211], %204 {strides = array<i32>} : memref<288x512xbf16, #tpu.memory_space<vmem>>, vector<32x256xbf16>,
    %c0_212 = arith.constant 0 : index
    %c0_213 = arith.constant 0 : index
    %206 = vector.load %arg5[%c0_212, %c0_213] : memref<32x288xbf16, #tpu.memory_space<vmem>>, vector<32x288xbf16>
    %c0_214 = arith.constant 0 : index
    %c0_215 = arith.constant 0 : index
    %207 = vector.load %arg18[%c0_214, %c0_215] : memref<288x512xbf16, #tpu.memory_space<vmem>>, vector<288x512xbf16>
    %cst_216 = arith.constant dense<0.000000e+00> : vector<32x512xf32>
    %208 = tpu.matmul %206, %207, %cst_216 {dimension_numbers = #tpu.dot_dimension_numbers<[1], [0], [0], [1], [0, 0, 1, 1], [], []>} : vector<32x288xbf16>, vector<288x512xbf16>, vector<32x512xf32> -> vector<32x512xf32>
    %c0_217 = arith.constant 0 : index
    %c0_218 = arith.constant 0 : index
    %209 = vector.load %arg6[%c0_217, %c0_218] : memref<32x1xf32, #tpu.memory_space<vmem>>, vector<32x1xf32>
    %210 = vector.broadcast %209 : vector<32x1xf32> to vector<32x512xf32>
    %211 = arith.mulf %208, %210 : vector<32x512xf32>
    %c0_219 = arith.constant 0 : index
    %c0_220 = arith.constant 0 : index
    %212 = vector.load %arg7[%c0_219, %c0_220] : memref<32x1xf32, #tpu.memory_space<vmem>>, vector<32x1xf32>
    %213 = vector.broadcast %212 : vector<32x1xf32> to vector<32x512xf32>
    %214 = arith.addf %211, %213 : vector<32x512xf32>
    %215 = vector.extract_strided_slice %214 {offsets = [0, 0], sizes = [32, 256], strides = [1, 1]} : vector<32x512xf32> to vector<32x256xf32>
    %cst_221 = arith.constant dense<0.000000e+00> : vector<32xf32>
    %216 = vector.multi_reduction <add>, %215, %cst_221 [1] : vector<32x256xf32> to vector<32xf32>
    %217 = vector.shape_cast %216 : vector<32xf32> to vector<32x1xf32>
    %cst_222 = arith.constant 2.560000e+02 : f32
    %218 = vector.broadcast %cst_222 : f32 to vector<32x1xf32>
    %219 = arith.divf %217, %218 : vector<32x1xf32>
    %c0_223 = arith.constant 0 : index
    %c0_224 = arith.constant 0 : index
    %220 = vector.load %arg8[%c0_223, %c0_224] : memref<32x2xf32, #tpu.memory_space<vmem>>, vector<32x2xf32>
    %221 = vector.broadcast %219 : vector<32x1xf32> to vector<32x2xf32>
    %222 = arith.mulf %220, %221 : vector<32x2xf32>
    %cst_225 = arith.constant dense<0.000000e+00> : vector<2xf32>
    %223 = vector.multi_reduction <add>, %222, %cst_225 [0] : vector<32x2xf32> to vector<2xf32>
    %224 = vector.shape_cast %223 : vector<2xf32> to vector<1x2xf32>
    %cst_226 = arith.constant 0.000000e+00 : f32
    %225 = vector.broadcast %cst_226 : f32 to vector<1x2xf32>
    %226 = arith.maximumf %224, %225 : vector<1x2xf32>
    %c0_227 = arith.constant 0 : index
    %c0_228 = arith.constant 0 : index
    %227 = vector.load %arg9[%c0_227, %c0_228] : memref<32x2xf32, #tpu.memory_space<vmem>>, vector<32x2xf32>
    %228 = vector.broadcast %226 : vector<1x2xf32> to vector<32x2xf32>
    %229 = arith.mulf %227, %228 : vector<32x2xf32>
    %cst_229 = arith.constant dense<0.000000e+00> : vector<32xf32>
    %230 = vector.multi_reduction <add>, %229, %cst_229 [1] : vector<32x2xf32> to vector<32xf32>
    %231 = vector.shape_cast %230 : vector<32xf32> to vector<32x1xf32>
    %232 = arith.negf %231 : vector<32x1xf32>
    %233 = math.exp %232 : vector<32x1xf32>
    %cst_230 = arith.constant 1.000000e+00 : f32
    %234 = vector.broadcast %cst_230 : f32 to vector<32x1xf32>
    %235 = arith.addf %234, %233 : vector<32x1xf32>
    %236 = arith.divf %234, %235 : vector<32x1xf32>
    %237 = vector.extract_strided_slice %117 {offsets = [0, 0], sizes = [32, 256], strides = [1, 1]} : vector<32x512xf32> to vector<32x256xf32>
    %238 = vector.broadcast %236 : vector<32x1xf32> to vector<32x256xf32>
    %239 = arith.mulf %215, %238 : vector<32x256xf32>
    %240 = arith.addf %239, %237 : vector<32x256xf32>
    %cst_231 = arith.constant 0.000000e+00 : f32
    %241 = vector.broadcast %cst_231 : f32 to vector<32x256xf32>
    %242 = arith.maximumf %240, %241 : vector<32x256xf32>
    %c0_232 = arith.constant 0 : index
    %c0_233 = arith.constant 0 : index
    %c0_234 = arith.constant 0 : index
    %243 = vector.load %arg15[%c0_232, %c0_233, %c0_234] : memref<2x32x256xf32, #tpu.memory_space<vmem>>, vector<1x32x256xf32>
    %244 = vector.shape_cast %243 : vector<1x32x256xf32> to vector<32x256xf32>
    %245 = vector.shape_cast %242 : vector<32x256xf32> to vector<1x32x256xf32>
    tpu.vector_store %arg15[%c0_232, %c0_233, %c0_234], %245 {strides = array<i32>} : memref<2x32x256xf32, #tpu.memory_space<vmem>>, vector<1x32x256xf32>,
    %246 = vector.extract_strided_slice %214 {offsets = [0, 256], sizes = [32, 256], strides = [1, 1]} : vector<32x512xf32> to vector<32x256xf32>
    %cst_235 = arith.constant dense<0.000000e+00> : vector<32xf32>
    %247 = vector.multi_reduction <add>, %246, %cst_235 [1] : vector<32x256xf32> to vector<32xf32>
    %248 = vector.shape_cast %247 : vector<32xf32> to vector<32x1xf32>
    %cst_236 = arith.constant 2.560000e+02 : f32
    %249 = vector.broadcast %cst_236 : f32 to vector<32x1xf32>
    %250 = arith.divf %248, %249 : vector<32x1xf32>
    %c0_237 = arith.constant 0 : index
    %c0_238 = arith.constant 0 : index
    %251 = vector.load %arg8[%c0_237, %c0_238] : memref<32x2xf32, #tpu.memory_space<vmem>>, vector<32x2xf32>
    %252 = vector.broadcast %250 : vector<32x1xf32> to vector<32x2xf32>
    %253 = arith.mulf %251, %252 : vector<32x2xf32>
    %cst_239 = arith.constant dense<0.000000e+00> : vector<2xf32>
    %254 = vector.multi_reduction <add>, %253, %cst_239 [0] : vector<32x2xf32> to vector<2xf32>
    %255 = vector.shape_cast %254 : vector<2xf32> to vector<1x2xf32>
    %cst_240 = arith.constant 0.000000e+00 : f32
    %256 = vector.broadcast %cst_240 : f32 to vector<1x2xf32>
    %257 = arith.maximumf %255, %256 : vector<1x2xf32>
    %c0_241 = arith.constant 0 : index
    %c0_242 = arith.constant 0 : index
    %258 = vector.load %arg9[%c0_241, %c0_242] : memref<32x2xf32, #tpu.memory_space<vmem>>, vector<32x2xf32>
    %259 = vector.broadcast %257 : vector<1x2xf32> to vector<32x2xf32>
    %260 = arith.mulf %258, %259 : vector<32x2xf32>
    %cst_243 = arith.constant dense<0.000000e+00> : vector<32xf32>
    %261 = vector.multi_reduction <add>, %260, %cst_243 [1] : vector<32x2xf32> to vector<32xf32>
    %262 = vector.shape_cast %261 : vector<32xf32> to vector<32x1xf32>
    %263 = arith.negf %262 : vector<32x1xf32>
    %264 = math.exp %263 : vector<32x1xf32>
    %cst_244 = arith.constant 1.000000e+00 : f32
    %265 = vector.broadcast %cst_244 : f32 to vector<32x1xf32>
    %266 = arith.addf %265, %264 : vector<32x1xf32>
    %267 = arith.divf %265, %266 : vector<32x1xf32>
    %268 = vector.extract_strided_slice %117 {offsets = [0, 256], sizes = [32, 256], strides = [1, 1]} : vector<32x512xf32> to vector<32x256xf32>
    %269 = vector.broadcast %267 : vector<32x1xf32> to vector<32x256xf32>
    %270 = arith.mulf %246, %269 : vector<32x256xf32>
    %271 = arith.addf %270, %268 : vector<32x256xf32>
    %cst_245 = arith.constant 0.000000e+00 : f32
    %272 = vector.broadcast %cst_245 : f32 to vector<32x256xf32>
    %273 = arith.maximumf %271, %272 : vector<32x256xf32>
    %c1_246 = arith.constant 1 : index
    %c0_247 = arith.constant 0 : index
    %c0_248 = arith.constant 0 : index
    %274 = vector.load %arg15[%c1_246, %c0_247, %c0_248] : memref<2x32x256xf32, #tpu.memory_space<vmem>>, vector<1x32x256xf32>
    %275 = vector.shape_cast %274 : vector<1x32x256xf32> to vector<32x256xf32>
    %276 = vector.shape_cast %273 : vector<32x256xf32> to vector<1x32x256xf32>
    tpu.vector_store %arg15[%c1_246, %c0_247, %c0_248], %276 {strides = array<i32>} : memref<2x32x256xf32, #tpu.memory_space<vmem>>, vector<1x32x256xf32>,
    return
  }
  func.func @transform_0(%arg0: i32) -> (i32, i32, i32) {
    %c0_i32 = arith.constant 0 : i32
    %c0_i32_0 = arith.constant 0 : i32
    %c0_i32_1 = arith.constant 0 : i32
    return %arg0, %c0_i32, %c0_i32_0 : i32, i32, i32
  }
  func.func @transform_1(%arg0: i32) -> (i32, i32) {
    %c0_i32 = arith.constant 0 : i32
    %c0_i32_0 = arith.constant 0 : i32
    %c0_i32_1 = arith.constant 0 : i32
    return %c0_i32, %c0_i32_0 : i32, i32
  }
  func.func @transform_2(%arg0: i32) -> (i32, i32) {
    %c0_i32 = arith.constant 0 : i32
    %c0_i32_0 = arith.constant 0 : i32
    %c0_i32_1 = arith.constant 0 : i32
    return %c0_i32, %c0_i32_0 : i32, i32
  }
  func.func @transform_3(%arg0: i32) -> (i32, i32) {
    %c0_i32 = arith.constant 0 : i32
    %c0_i32_0 = arith.constant 0 : i32
    %c0_i32_1 = arith.constant 0 : i32
    return %c0_i32, %c0_i32_0 : i32, i32
  }
  func.func @transform_4(%arg0: i32) -> (i32, i32) {
    %c0_i32 = arith.constant 0 : i32
    %c0_i32_0 = arith.constant 0 : i32
    %c0_i32_1 = arith.constant 0 : i32
    return %c0_i32, %c0_i32_0 : i32, i32
  }
  func.func @transform_5(%arg0: i32) -> (i32, i32) {
    %c0_i32 = arith.constant 0 : i32
    %c0_i32_0 = arith.constant 0 : i32
    %c0_i32_1 = arith.constant 0 : i32
    return %c0_i32, %c0_i32_0 : i32, i32
  }
  func.func @transform_6(%arg0: i32) -> (i32, i32) {
    %c0_i32 = arith.constant 0 : i32
    %c0_i32_0 = arith.constant 0 : i32
    %c0_i32_1 = arith.constant 0 : i32
    return %c0_i32, %c0_i32_0 : i32, i32
  }
  func.func @transform_7(%arg0: i32) -> (i32, i32) {
    %c0_i32 = arith.constant 0 : i32
    %c0_i32_0 = arith.constant 0 : i32
    %c0_i32_1 = arith.constant 0 : i32
    return %c0_i32, %c0_i32_0 : i32, i32
  }
  func.func @transform_8(%arg0: i32) -> (i32, i32) {
    %c0_i32 = arith.constant 0 : i32
    %c0_i32_0 = arith.constant 0 : i32
    %c0_i32_1 = arith.constant 0 : i32
    return %c0_i32, %c0_i32_0 : i32, i32
  }
  func.func @transform_9(%arg0: i32) -> (i32, i32) {
    %c0_i32 = arith.constant 0 : i32
    %c0_i32_0 = arith.constant 0 : i32
    %c0_i32_1 = arith.constant 0 : i32
    return %c0_i32, %c0_i32_0 : i32, i32
  }
  func.func @transform_10(%arg0: i32) -> (i32, i32) {
    %c0_i32 = arith.constant 0 : i32
    %c0_i32_0 = arith.constant 0 : i32
    %c0_i32_1 = arith.constant 0 : i32
    return %c0_i32, %c0_i32_0 : i32, i32
  }
  func.func @transform_11(%arg0: i32) -> (i32, i32) {
    %c0_i32 = arith.constant 0 : i32
    %c0_i32_0 = arith.constant 0 : i32
    %c0_i32_1 = arith.constant 0 : i32
    return %c0_i32, %c0_i32_0 : i32, i32
  }
  func.func @transform_12(%arg0: i32) -> (i32, i32) {
    %c0_i32 = arith.constant 0 : i32
    %c0_i32_0 = arith.constant 0 : i32
    %c0_i32_1 = arith.constant 0 : i32
    return %c0_i32, %c0_i32_0 : i32, i32
  }
  func.func @transform_13(%arg0: i32) -> (i32, i32) {
    %c0_i32 = arith.constant 0 : i32
    %c0_i32_0 = arith.constant 0 : i32
    %c0_i32_1 = arith.constant 0 : i32
    return %c0_i32, %c0_i32_0 : i32, i32
  }
  func.func @transform_14(%arg0: i32) -> (i32, i32, i32) {
    %c0_i32 = arith.constant 0 : i32
    %c0_i32_0 = arith.constant 0 : i32
    %c0_i32_1 = arith.constant 0 : i32
    return %arg0, %c0_i32, %c0_i32_0 : i32, i32, i32
  }
}

</mosaic_0001>

<llo_original>
// kernel: residual_block_forward.1
$region0: #{residual_block_forward.1}
  #allocation0 [shape = 'u32[]', space=smem, size = 0x4, offset = 0x4, fixed_abs, tag = 'smem constant byte address 0x4 - core index']
  #allocation1 [shape = 'u32[72,128]{1,0:T(1,128)}', space=vmem, size = 0x9000, scoped, tag = 'internal scratch']
  #allocation2 [shape = 'bf16[2,16,512]{2,1,0:T(8,128)(2,1)}', space=vmem, size = 0x8000, scoped, tag = 'scratch operand']
  #allocation3 [shape = 'bf16[2,32,512]{2,1,0:T(8,128)(2,1)}', space=vmem, size = 0x10000, scoped, tag = 'scratch operand']
  #allocation4 [shape = 'bf16[288,512]{1,0:T(8,128)(2,1)}', space=vmem, size = 0x48000, scoped, tag = 'scratch operand']
  %s0 = inlined_call_operand.vmem [shape: f32[2,16,256], index: 0, kind: input, shape index: {}]
  %s1 = inlined_call_operand.vmem [shape: bf16[32,144], index: 1, kind: input, shape index: {}]
  %s2 = inlined_call_operand.vmem [shape: f32[32,1], index: 2, kind: input, shape index: {}]
  %s3 = inlined_call_operand.vmem [shape: f32[32,1], index: 3, kind: input, shape index: {}]
  %s4 = inlined_call_operand.vmem [shape: bf16[32,288], index: 4, kind: input, shape index: {}]
  %s5 = inlined_call_operand.vmem [shape: f32[32,1], index: 5, kind: input, shape index: {}]
  %s6 = inlined_call_operand.vmem [shape: f32[32,1], index: 6, kind: input, shape index: {}]
  %s7 = inlined_call_operand.vmem [shape: f32[32,2], index: 7, kind: input, shape index: {}]
  %s8 = inlined_call_operand.vmem [shape: f32[32,2], index: 8, kind: input, shape index: {}]
  %s9 = inlined_call_operand.vmem [shape: bf16[1,256], index: 9, kind: input, shape index: {}]
  %s10 = inlined_call_operand.vmem [shape: bf16[1,256], index: 10, kind: input, shape index: {}]
  %s11 = inlined_call_operand.vmem [shape: bf16[32,16], index: 11, kind: input, shape index: {}]
  %s12 = inlined_call_operand.vmem [shape: f32[32,1], index: 12, kind: input, shape index: {}]
  %s13 = inlined_call_operand.vmem [shape: f32[32,1], index: 13, kind: input, shape index: {}]
  %s14 = inlined_call_operand.vmem [shape: f32[2,32,256], index: 14, kind: output, shape index: {}]
  %s15 = sld [smem:[#allocation0]]
  $region66: #{residual_block_forward.1} parent=0
    _
  %s17 = ssub.s32 1, %s15
  %s18 = scalar_select 0, %s17, %s15
  // Predicated region
  $region2: #{residual_block_forward.1} parent=0 // pred_check
    _
  $region3: #{residual_block_forward.1} parent=0 // pred_check_branch
    %20 = sbr.rel (0) target = $region5
  $region4: #{residual_block_forward.1} parent=0 // pred_region
    _
  $region5: #{residual_block_forward.1} parent=0 // pred_fallthru
    _
  // Predicated region
  $region6: #{residual_block_forward.1} parent=0 // pred_check
    _
  $region7: #{residual_block_forward.1} parent=0 // pred_check_branch
    %22 = sbr.rel (0) target = $region9
  $region8: #{residual_block_forward.1} parent=0 // pred_region
    _
  $region9: #{residual_block_forward.1} parent=0 // pred_fallthru
    _
  // Predicated region
  $region10: #{residual_block_forward.1} parent=0 // pred_check
    _
  $region11: #{residual_block_forward.1} parent=0 // pred_check_branch
    %24 = sbr.rel (0) target = $region13
  $region12: #{residual_block_forward.1} parent=0 // pred_region
    _
  $region13: #{residual_block_forward.1} parent=0 // pred_fallthru
    _
  // Predicated region
  $region14: #{residual_block_forward.1} parent=0 // pred_check
    _
  $region15: #{residual_block_forward.1} parent=0 // pred_check_branch
    %26 = sbr.rel (0) target = $region17
  $region16: #{residual_block_forward.1} parent=0 // pred_region
    _
  $region17: #{residual_block_forward.1} parent=0 // pred_fallthru
    _
  // Predicated region
  $region18: #{residual_block_forward.1} parent=0 // pred_check
    _
  $region19: #{residual_block_forward.1} parent=0 // pred_check_branch
    %28 = sbr.rel (0) target = $region21
  $region20: #{residual_block_forward.1} parent=0 // pred_region
    _
  $region21: #{residual_block_forward.1} parent=0 // pred_fallthru
    _
  // Predicated region
  $region22: #{residual_block_forward.1} parent=0 // pred_check
    _
  $region23: #{residual_block_forward.1} parent=0 // pred_check_branch
    %30 = sbr.rel (0) target = $region25
  $region24: #{residual_block_forward.1} parent=0 // pred_region
    _
  $region25: #{residual_block_forward.1} parent=0 // pred_fallthru
    _
  // Predicated region
  $region26: #{residual_block_forward.1} parent=0 // pred_check
    _
  $region27: #{residual_block_forward.1} parent=0 // pred_check_branch
    %32 = sbr.rel (0) target = $region29
  $region28: #{residual_block_forward.1} parent=0 // pred_region
    _
  $region29: #{residual_block_forward.1} parent=0 // pred_fallthru
    _
  // Predicated region
  $region30: #{residual_block_forward.1} parent=0 // pred_check
    _
  $region31: #{residual_block_forward.1} parent=0 // pred_check_branch
    %34 = sbr.rel (0) target = $region33
  $region32: #{residual_block_forward.1} parent=0 // pred_region
    _
  $region33: #{residual_block_forward.1} parent=0 // pred_fallthru
    _
  // Predicated region
  $region34: #{residual_block_forward.1} parent=0 // pred_check
    _
  $region35: #{residual_block_forward.1} parent=0 // pred_check_branch
    %36 = sbr.rel (0) target = $region37
  $region36: #{residual_block_forward.1} parent=0 // pred_region
    _
  $region37: #{residual_block_forward.1} parent=0 // pred_fallthru
    _
  // Predicated region
  $region38: #{residual_block_forward.1} parent=0 // pred_check
    _
  $region39: #{residual_block_forward.1} parent=0 // pred_check_branch
    %38 = sbr.rel (0) target = $region41
  $region40: #{residual_block_forward.1} parent=0 // pred_region
    _
  $region41: #{residual_block_forward.1} parent=0 // pred_fallthru
    _
  // Predicated region
  $region42: #{residual_block_forward.1} parent=0 // pred_check
    _
  $region43: #{residual_block_forward.1} parent=0 // pred_check_branch
    %40 = sbr.rel (0) target = $region45
  $region44: #{residual_block_forward.1} parent=0 // pred_region
    _
  $region45: #{residual_block_forward.1} parent=0 // pred_fallthru
    _
  // Predicated region
  $region46: #{residual_block_forward.1} parent=0 // pred_check
    _
  $region47: #{residual_block_forward.1} parent=0 // pred_check_branch
    %42 = sbr.rel (0) target = $region49
  $region48: #{residual_block_forward.1} parent=0 // pred_region
    _
  $region49: #{residual_block_forward.1} parent=0 // pred_fallthru
    _
  // Predicated region
  $region50: #{residual_block_forward.1} parent=0 // pred_check
    _
  $region51: #{residual_block_forward.1} parent=0 // pred_check_branch
    %44 = sbr.rel (0) target = $region53
  $region52: #{residual_block_forward.1} parent=0 // pred_region
    _
  $region53: #{residual_block_forward.1} parent=0 // pred_fallthru
    _
  // Predicated region
  $region54: #{residual_block_forward.1} parent=0 // pred_check
    _
  $region55: #{residual_block_forward.1} parent=0 // pred_check_branch
    %46 = sbr.rel (0) target = $region57
  $region56: #{residual_block_forward.1} parent=0 // pred_region
    _
  $region57: #{residual_block_forward.1} parent=0 // pred_fallthru
    _
  %v48 = vld [vmem:[%s9] sm:$0x3]
  %v49 = vld [vmem:[%s10] sm:$0x3]
  %50 = vst [vmem:[#allocation2] sm:$0xf] 0
  %51 = vst [vmem:[#allocation2 + $0x10] sm:$0xf] 0
  %52 = vst [vmem:[#allocation2 + $0x20] sm:$0xf] 0
  %53 = vst [vmem:[#allocation2 + $0x30] sm:$0xf] 0
  %54 = vst [vmem:[#allocation2 + $0xc] sm:$0xf] 0
  %55 = vst [vmem:[#allocation2 + $0x1c] sm:$0xf] 0
  %56 = vst [vmem:[#allocation2 + $0x2c] sm:$0xf] 0
  %57 = vst [vmem:[#allocation2 + $0x3c] sm:$0xf] 0
  %58 = vst [vmem:[#allocation3] sm:$0xf] 0
  %59 = vst [vmem:[#allocation3 + $0x10] sm:$0xf] 0
  %60 = vst [vmem:[#allocation3 + $0x20] sm:$0xf] 0
  %61 = vst [vmem:[#allocation3 + $0x30] sm:$0xf] 0
  %62 = vst [vmem:[#allocation3 + $0x40] sm:$0xf] 0
  %63 = vst [vmem:[#allocation3 + $0x50] sm:$0xf] 0
  %64 = vst [vmem:[#allocation3 + $0x60] sm:$0xf] 0
  %65 = vst [vmem:[#allocation3 + $0x70] sm:$0xf] 0
  %66 = vst [vmem:[#allocation3 + $0xc] sm:$0xf] 0
  %67 = vst [vmem:[#allocation3 + $0x1c] sm:$0xf] 0
  %68 = vst [vmem:[#allocation3 + $0x2c] sm:$0xf] 0
  %69 = vst [vmem:[#allocation3 + $0x3c] sm:$0xf] 0
  %70 = vst [vmem:[#allocation3 + $0x4c] sm:$0xf] 0
  %71 = vst [vmem:[#allocation3 + $0x5c] sm:$0xf] 0
  %72 = vst [vmem:[#allocation3 + $0x6c] sm:$0xf] 0
  %73 = vst [vmem:[#allocation3 + $0x7c] sm:$0xf] 0
  %v74 = vld [vmem:[%s0] sm:$0xff]
  %v75 = vld [vmem:[%s0 + $0x8] sm:$0xff]
  %v76 = vld [vmem:[%s0 + $0x10] sm:$0xff]
  %v77 = vld [vmem:[%s0 + $0x18] sm:$0xff]
  %v78 = vpack.c.bf16 %v75, %v74
  %v79 = vpack.c.bf16 %v77, %v76
  %80 = vst [vmem:[#allocation2 + $0x4] sm:$0xff] %v78
  %81 = vst [vmem:[#allocation2 + $0x14] sm:$0xff] %v79
  %s82 = scalar_lea.vmem %s0, 32
  %v83 = vld [vmem:[%s82] sm:$0xff]
  %v84 = vld [vmem:[%s82 + $0x8] sm:$0xff]
  %v85 = vld [vmem:[%s82 + $0x10] sm:$0xff]
  %v86 = vld [vmem:[%s82 + $0x18] sm:$0xff]
  %v87 = vpack.c.bf16 %v84, %v83
  %v88 = vpack.c.bf16 %v86, %v85
  %s89 = scalar_lea.vmem [#allocation2], 32
  %90 = vst [vmem:[%s89 + $0x4] sm:$0xff] %v87
  %91 = vst [vmem:[%s89 + $0x14] sm:$0xff] %v88
  %v92 = vld [vmem:[#allocation2] sm:$0xff]
  %v93 = vld [vmem:[#allocation2 + $0x8] sm:$0xf]
  %v94 = vld [vmem:[#allocation2 + $0x10] sm:$0xff]
  %v95 = vld [vmem:[#allocation2 + $0x18] sm:$0xf]
  %97 = vst [vmem:[#allocation1] ss:$9 sm:$0xff] %v48
  %v98 = vld [vmem:[#allocation1] sm:$0xff]
  %v99 = vld [vmem:[#allocation1 + $0x9] sm:$0xff]
  %v100 = vpack.i.b16 %v98, %v98
  %v102 = vperm.slane %v100, 0
  %v103 = vpack.i.b16 %v99, %v99
  %v105 = vperm.slane %v103, 0
  %v106 = vunpack.c.l.bf16 %v92
  %v107 = vunpack.c.h.bf16 %v92
  %v108 = vunpack.c.l.bf16 %v93
  %v109 = vunpack.c.l.bf16 %v94
  %v110 = vunpack.c.h.bf16 %v94
  %v111 = vunpack.c.l.bf16 %v95
  %v112 = vunpack.c.l.bf16 %v102
  %v113 = vunpack.c.l.bf16 %v105
  %116 = vrot.lane.b32.xlu0 %v112, 111
  %v117 = vpop.permute.xlu0 %116
  %118 = vrot.lane.b32.xlu0 %v113, 111
  %v119 = vpop.permute.xlu0 %118
  %vm120 = vcmask 908288
  %v121 = vsel %vm120, %v117, %v119
  %v125 = vmul.f32 %v106, %v117
  %v126 = vmul.f32 %v107, %v121
  %v127 = vmul.f32 %v108, %v119
  %v128 = vmul.f32 %v109, %v117
  %v129 = vmul.f32 %v110, %v121
  %v130 = vmul.f32 %v111, %v119
  %v131 = vpack.c.bf16 %v126, %v125
  %v132 = vpack.c.bf16 %v127, %v127
  %v133 = vpack.c.bf16 %v129, %v128
  %v134 = vpack.c.bf16 %v130, %v130
  %139 = vrot.lane.b32.xlu0 %v131, 17
  %v140 = vpop.permute.xlu0 %139
  %141 = vrot.lane.b32.xlu0 %v132, 17
  %v142 = vpop.permute.xlu0 %141
  %143 = vrot.lane.b32.xlu0 %v133, 17
  %v144 = vpop.permute.xlu0 %143
  %145 = vrot.lane.b32.xlu0 %v134, 17
  %v146 = vpop.permute.xlu0 %145
  %v147 = vrot.slane %v140, 4
  %v148 = vrot.slane %v142, 4
  %v149 = vrot.slane %v144, 4
  %v150 = vrot.slane %v146, 4
  %vm151 = vcmask 1043456
  %v152 = vsel %vm151, %v147, %v148
  %vm153 = vcmask 138240
  %v154 = vsel %vm153, %v140, %v152
  %v155 = vsel %vm151, %v149, %v150
  %v156 = vsel %vm153, %v144, %v155
  %159 = vst [vmem:[#allocation4] sm:$0xff] %v154
  %160 = vst [vmem:[#allocation4 + $0x10] sm:$0xff] %v156
  %v161 = vld [vmem:[#allocation2] sm:$0xff]
  %v162 = vld [vmem:[#allocation2 + $0x8] sm:$0xf]
  %v163 = vld [vmem:[#allocation2 + $0x10] sm:$0xff]
  %v164 = vld [vmem:[#allocation2 + $0x18] sm:$0xf]
  %169 = vrot.lane.b32.xlu0 %v161, 16
  %v170 = vpop.permute.xlu0 %169
  %171 = vrot.lane.b32.xlu0 %v162, 16
  %v172 = vpop.permute.xlu0 %171
  %173 = vrot.lane.b32.xlu0 %v163, 16
  %v174 = vpop.permute.xlu0 %173
  %175 = vrot.lane.b32.xlu0 %v164, 16
  %v176 = vpop.permute.xlu0 %175
  %v177 = vrot.slane %v170, 4
  %v178 = vrot.slane %v172, 4
  %v179 = vrot.slane %v174, 4
  %v180 = vrot.slane %v176, 4
  %v181 = vsel %vm151, %v177, %v178
  %vm182 = vcmask 130048
  %v183 = vsel %vm182, %v170, %v181
  %v184 = vsel %vm151, %v179, %v180
  %v185 = vsel %vm182, %v174, %v184
  %188 = vst [vmem:[#allocation4 + $0x20] sm:$0xff] %v183
  %189 = vst [vmem:[#allocation4 + $0x30] sm:$0xff] %v185
  %v190 = vld [vmem:[#allocation2] sm:$0xff]
  %v191 = vld [vmem:[#allocation2 + $0x8] sm:$0xf]
  %v192 = vld [vmem:[#allocation2 + $0x10] sm:$0xff]
  %v193 = vld [vmem:[#allocation2 + $0x18] sm:$0xf]
  %195 = vst [vmem:[#allocation1] ss:$9 sm:$0xff] %v49
  %v196 = vld [vmem:[#allocation1] sm:$0xff]
  %v197 = vld [vmem:[#allocation1 + $0x9] sm:$0xff]
  %v198 = vpack.i.b16 %v196, %v196
  %v200 = vperm.slane %v198, 0
  %v201 = vpack.i.b16 %v197, %v197
  %v203 = vperm.slane %v201, 0
  %v204 = vunpack.c.l.bf16 %v190
  %v205 = vunpack.c.h.bf16 %v190
  %v206 = vunpack.c.l.bf16 %v191
  %v207 = vunpack.c.l.bf16 %v192
  %v208 = vunpack.c.h.bf16 %v192
  %v209 = vunpack.c.l.bf16 %v193
  %v210 = vunpack.c.l.bf16 %v200
  %v211 = vunpack.c.l.bf16 %v203
  %214 = vrot.lane.b32.xlu0 %v210, 113
  %v215 = vpop.permute.xlu0 %214
  %216 = vrot.lane.b32.xlu0 %v211, 113
  %v217 = vpop.permute.xlu0 %216
  %vm218 = vcmask 924672
  %v219 = vsel %vm218, %v215, %v217
  %v223 = vmul.f32 %v204, %v215
  %v224 = vmul.f32 %v205, %v219
  %v225 = vmul.f32 %v206, %v217
  %v226 = vmul.f32 %v207, %v215
  %v227 = vmul.f32 %v208, %v219
  %v228 = vmul.f32 %v209, %v217
  %v229 = vpack.c.bf16 %v224, %v223
  %v230 = vpack.c.bf16 %v225, %v225
  %v231 = vpack.c.bf16 %v227, %v226
  %v232 = vpack.c.bf16 %v228, %v228
  %237 = vrot.lane.b32.xlu0 %v229, 15
  %v238 = vpop.permute.xlu0 %237
  %239 = vrot.lane.b32.xlu0 %v230, 15
  %v240 = vpop.permute.xlu0 %239
  %241 = vrot.lane.b32.xlu0 %v231, 15
  %v242 = vpop.permute.xlu0 %241
  %243 = vrot.lane.b32.xlu0 %v232, 15
  %v244 = vpop.permute.xlu0 %243
  %v245 = vrot.slane %v238, 4
  %v246 = vrot.slane %v240, 4
  %v247 = vrot.slane %v242, 4
  %v248 = vrot.slane %v244, 4
  %v249 = vsel %vm151, %v245, %v246
  %vm250 = vcmask 121856
  %v251 = vsel %vm250, %v238, %v249
  %v252 = vsel %vm151, %v247, %v248
  %v253 = vsel %vm250, %v242, %v252
  %256 = vst [vmem:[#allocation4 + $0x40] sm:$0xff] %v251
  %257 = vst [vmem:[#allocation4 + $0x50] sm:$0xff] %v253
  %v258 = vld [vmem:[#allocation2] sm:$0xff]
  %v259 = vld [vmem:[#allocation2 + $0x8] sm:$0xf]
  %v260 = vld [vmem:[#allocation2 + $0x10] sm:$0xff]
  %v261 = vld [vmem:[#allocation2 + $0x18] sm:$0xf]
  %v262 = vunpack.c.l.bf16 %v258
  %v263 = vunpack.c.h.bf16 %v258
  %v264 = vunpack.c.l.bf16 %v259
  %v265 = vunpack.c.l.bf16 %v260
  %v266 = vunpack.c.h.bf16 %v260
  %v267 = vunpack.c.l.bf16 %v261
  %268 = vrot.lane.b32.xlu0 %v112, 127
  %v269 = vpop.permute.xlu0 %268
  %270 = vrot.lane.b32.xlu0 %v113, 127
  %v271 = vpop.permute.xlu0 %270
  %vm272 = vcmask 1039360
  %v273 = vsel %vm272, %v269, %v271
  %v277 = vmul.f32 %v262, %v269
  %v278 = vmul.f32 %v263, %v273
  %v279 = vmul.f32 %v264, %v271
  %v280 = vmul.f32 %v265, %v269
  %v281 = vmul.f32 %v266, %v273
  %v282 = vmul.f32 %v267, %v271
  %v283 = vpack.c.bf16 %v278, %v277
  %v284 = vpack.c.bf16 %v279, %v279
  %v285 = vpack.c.bf16 %v281, %v280
  %v286 = vpack.c.bf16 %v282, %v282
  %291 = vrot.lane.b32.xlu0 %v283, 1
  %v292 = vpop.permute.xlu0 %291
  %293 = vrot.lane.b32.xlu0 %v284, 1
  %v294 = vpop.permute.xlu0 %293
  %295 = vrot.lane.b32.xlu0 %v285, 1
  %v296 = vpop.permute.xlu0 %295
  %297 = vrot.lane.b32.xlu0 %v286, 1
  %v298 = vpop.permute.xlu0 %297
  %v299 = vrot.slane %v292, 4
  %v300 = vrot.slane %v294, 4
  %v301 = vrot.slane %v296, 4
  %v302 = vrot.slane %v298, 4
  %v303 = vsel %vm151, %v299, %v300
  %vm304 = vcmask 7168
  %v305 = vsel %vm304, %v292, %v303
  %v306 = vsel %vm151, %v301, %v302
  %v307 = vsel %vm304, %v296, %v306
  %310 = vst [vmem:[#allocation4 + $0x60] sm:$0xff] %v305
  %311 = vst [vmem:[#allocation4 + $0x70] sm:$0xff] %v307
  %v312 = vld [vmem:[#allocation2 + $0x4] sm:$0xff]
  %v313 = vld [vmem:[#allocation2 + $0x14] sm:$0xff]
  %314 = vst [vmem:[#allocation4 + $0x80] sm:$0xff] %v312
  %315 = vst [vmem:[#allocation4 + $0x90] sm:$0xff] %v313
  %v316 = vld [vmem:[#allocation2 + $0x4] sm:$0xff]
  %v317 = vld [vmem:[#allocation2 + $0xc] sm:$0xf]
  %v318 = vld [vmem:[#allocation2 + $0x14] sm:$0xff]
  %v319 = vld [vmem:[#allocation2 + $0x1c] sm:$0xf]
  %v320 = vunpack.c.l.bf16 %v316
  %v321 = vunpack.c.h.bf16 %v316
  %v322 = vunpack.c.l.bf16 %v317
  %v323 = vunpack.c.l.bf16 %v318
  %v324 = vunpack.c.h.bf16 %v318
  %v325 = vunpack.c.l.bf16 %v319
  %326 = vrot.lane.b32.xlu0 %v210, 1
  %v327 = vpop.permute.xlu0 %326
  %328 = vrot.lane.b32.xlu0 %v211, 1
  %v329 = vpop.permute.xlu0 %328
  %vm330 = vcmask 7168
  %v331 = vsel %vm330, %v327, %v329
  %v335 = vmul.f32 %v320, %v327
  %v336 = vmul.f32 %v321, %v331
  %v337 = vmul.f32 %v322, %v329
  %v338 = vmul.f32 %v323, %v327
  %v339 = vmul.f32 %v324, %v331
  %v340 = vmul.f32 %v325, %v329
  %v341 = vpack.c.bf16 %v336, %v335
  %v342 = vpack.c.bf16 %v337, %v337
  %v343 = vpack.c.bf16 %v339, %v338
  %v344 = vpack.c.bf16 %v340, %v340
  %349 = vrot.lane.b32.xlu0 %v341, 127
  %v350 = vpop.permute.xlu0 %349
  %351 = vrot.lane.b32.xlu0 %v342, 127
  %v352 = vpop.permute.xlu0 %351
  %353 = vrot.lane.b32.xlu0 %v343, 127
  %v354 = vpop.permute.xlu0 %353
  %355 = vrot.lane.b32.xlu0 %v344, 127
  %v356 = vpop.permute.xlu0 %355
  %v357 = vrot.slane %v350, 4
  %v358 = vrot.slane %v352, 4
  %v359 = vrot.slane %v354, 4
  %v360 = vrot.slane %v356, 4
  %v361 = vsel %vm151, %v357, %v358
  %vm362 = vcmask 1039360
  %v363 = vsel %vm362, %v350, %v361
  %v364 = vsel %vm151, %v359, %v360
  %v365 = vsel %vm362, %v354, %v364
  %368 = vst [vmem:[#allocation4 + $0xa0] sm:$0xff] %v363
  %369 = vst [vmem:[#allocation4 + $0xb0] sm:$0xff] %v365
  %v370 = vld [vmem:[#allocation2 + $0x4] sm:$0xff]
  %v371 = vld [vmem:[#allocation2 + $0xc] sm:$0xf]
  %v372 = vld [vmem:[#allocation2 + $0x14] sm:$0xff]
  %v373 = vld [vmem:[#allocation2 + $0x1c] sm:$0xf]
  %v374 = vunpack.c.l.bf16 %v370
  %v375 = vunpack.c.h.bf16 %v370
  %v376 = vunpack.c.l.bf16 %v371
  %v377 = vunpack.c.l.bf16 %v372
  %v378 = vunpack.c.h.bf16 %v372
  %v379 = vunpack.c.l.bf16 %v373
  %380 = vrot.lane.b32.xlu0 %v112, 15
  %v381 = vpop.permute.xlu0 %380
  %382 = vrot.lane.b32.xlu0 %v113, 15
  %v383 = vpop.permute.xlu0 %382
  %vm384 = vcmask 121856
  %v385 = vsel %vm384, %v381, %v383
  %v389 = vmul.f32 %v374, %v381
  %v390 = vmul.f32 %v375, %v385
  %v391 = vmul.f32 %v376, %v383
  %v392 = vmul.f32 %v377, %v381
  %v393 = vmul.f32 %v378, %v385
  %v394 = vmul.f32 %v379, %v383
  %v395 = vpack.c.bf16 %v390, %v389
  %v396 = vpack.c.bf16 %v391, %v391
  %v397 = vpack.c.bf16 %v393, %v392
  %v398 = vpack.c.bf16 %v394, %v394
  %403 = vrot.lane.b32.xlu0 %v395, 113
  %v404 = vpop.permute.xlu0 %403
  %405 = vrot.lane.b32.xlu0 %v396, 113
  %v406 = vpop.permute.xlu0 %405
  %407 = vrot.lane.b32.xlu0 %v397, 113
  %v408 = vpop.permute.xlu0 %407
  %409 = vrot.lane.b32.xlu0 %v398, 113
  %v410 = vpop.permute.xlu0 %409
  %v411 = vrot.slane %v404, 4
  %v412 = vrot.slane %v406, 4
  %v413 = vrot.slane %v408, 4
  %v414 = vrot.slane %v410, 4
  %v415 = vsel %vm151, %v411, %v412
  %vm416 = vcmask 924672
  %v417 = vsel %vm416, %v404, %v415
  %v418 = vsel %vm151, %v413, %v414
  %v419 = vsel %vm416, %v408, %v418
  %422 = vst [vmem:[#allocation4 + $0xc0] sm:$0xff] %v417
  %423 = vst [vmem:[#allocation4 + $0xd0] sm:$0xff] %v419
  %v424 = vld [vmem:[#allocation2 + $0x4] sm:$0xff]
  %v425 = vld [vmem:[#allocation2 + $0xc] sm:$0xf]
  %v426 = vld [vmem:[#allocation2 + $0x14] sm:$0xff]
  %v427 = vld [vmem:[#allocation2 + $0x1c] sm:$0xf]
  %432 = vrot.lane.b32.xlu0 %v424, 112
  %v433 = vpop.permute.xlu0 %432
  %434 = vrot.lane.b32.xlu0 %v425, 112
  %v435 = vpop.permute.xlu0 %434
  %436 = vrot.lane.b32.xlu0 %v426, 112
  %v437 = vpop.permute.xlu0 %436
  %438 = vrot.lane.b32.xlu0 %v427, 112
  %v439 = vpop.permute.xlu0 %438
  %v440 = vrot.slane %v433, 4
  %v441 = vrot.slane %v435, 4
  %v442 = vrot.slane %v437, 4
  %v443 = vrot.slane %v439, 4
  %v444 = vsel %vm151, %v440, %v441
  %vm445 = vcmask 916480
  %v446 = vsel %vm445, %v433, %v444
  %v447 = vsel %vm151, %v442, %v443
  %v448 = vsel %vm445, %v437, %v447
  %451 = vst [vmem:[#allocation4 + $0xe0] sm:$0xff] %v446
  %452 = vst [vmem:[#allocation4 + $0xf0] sm:$0xff] %v448
  %v453 = vld [vmem:[#allocation2 + $0x4] sm:$0xff]
  %v454 = vld [vmem:[#allocation2 + $0xc] sm:$0xf]
  %v455 = vld [vmem:[#allocation2 + $0x14] sm:$0xff]
  %v456 = vld [vmem:[#allocation2 + $0x1c] sm:$0xf]
  %v457 = vunpack.c.l.bf16 %v453
  %v458 = vunpack.c.h.bf16 %v453
  %v459 = vunpack.c.l.bf16 %v454
  %v460 = vunpack.c.l.bf16 %v455
  %v461 = vunpack.c.h.bf16 %v455
  %v462 = vunpack.c.l.bf16 %v456
  %463 = vrot.lane.b32.xlu0 %v210, 17
  %v464 = vpop.permute.xlu0 %463
  %465 = vrot.lane.b32.xlu0 %v211, 17
  %v466 = vpop.permute.xlu0 %465
  %vm467 = vcmask 138240
  %v468 = vsel %vm467, %v464, %v466
  %v472 = vmul.f32 %v457, %v464
  %v473 = vmul.f32 %v458, %v468
  %v474 = vmul.f32 %v459, %v466
  %v475 = vmul.f32 %v460, %v464
  %v476 = vmul.f32 %v461, %v468
  %v477 = vmul.f32 %v462, %v466
  %v478 = vpack.c.bf16 %v473, %v472
  %v479 = vpack.c.bf16 %v474, %v474
  %v480 = vpack.c.bf16 %v476, %v475
  %v481 = vpack.c.bf16 %v477, %v477
  %486 = vrot.lane.b32.xlu0 %v478, 111
  %v487 = vpop.permute.xlu0 %486
  %488 = vrot.lane.b32.xlu0 %v479, 111
  %v489 = vpop.permute.xlu0 %488
  %490 = vrot.lane.b32.xlu0 %v480, 111
  %v491 = vpop.permute.xlu0 %490
  %492 = vrot.lane.b32.xlu0 %v481, 111
  %v493 = vpop.permute.xlu0 %492
  %v494 = vrot.slane %v487, 4
  %v495 = vrot.slane %v489, 4
  %v496 = vrot.slane %v491, 4
  %v497 = vrot.slane %v493, 4
  %v498 = vsel %vm151, %v494, %v495
  %vm499 = vcmask 908288
  %v500 = vsel %vm499, %v487, %v498
  %v501 = vsel %vm151, %v496, %v497
  %v502 = vsel %vm499, %v491, %v501
  %505 = vst [vmem:[#allocation4 + $0x100] sm:$0xff] %v500
  %506 = vst [vmem:[#allocation4 + $0x110] sm:$0xff] %v502
  %v507 = vld [vmem:[%s89] sm:$0xff]
  %v508 = vld [vmem:[%s89 + $0x8] sm:$0xf]
  %v509 = vld [vmem:[%s89 + $0x10] sm:$0xff]
  %v510 = vld [vmem:[%s89 + $0x18] sm:$0xf]
  %v511 = vunpack.c.l.bf16 %v507
  %v512 = vunpack.c.h.bf16 %v507
  %v513 = vunpack.c.l.bf16 %v508
  %v514 = vunpack.c.l.bf16 %v509
  %v515 = vunpack.c.h.bf16 %v509
  %v516 = vunpack.c.l.bf16 %v510
  %v517 = vmul.f32 %v511, %v117
  %v518 = vmul.f32 %v512, %v121
  %v519 = vmul.f32 %v513, %v119
  %v520 = vmul.f32 %v514, %v117
  %v521 = vmul.f32 %v515, %v121
  %v522 = vmul.f32 %v516, %v119
  %v523 = vpack.c.bf16 %v518, %v517
  %v524 = vpack.c.bf16 %v519, %v519
  %v525 = vpack.c.bf16 %v521, %v520
  %v526 = vpack.c.bf16 %v522, %v522
  %531 = vrot.lane.b32.xlu0 %v523, 17
  %v532 = vpop.permute.xlu0 %531
  %533 = vrot.lane.b32.xlu0 %v524, 17
  %v534 = vpop.permute.xlu0 %533
  %535 = vrot.lane.b32.xlu0 %v525, 17
  %v536 = vpop.permute.xlu0 %535
  %537 = vrot.lane.b32.xlu0 %v526, 17
  %v538 = vpop.permute.xlu0 %537
  %v539 = vrot.slane %v532, 4
  %v540 = vrot.slane %v534, 4
  %v541 = vrot.slane %v536, 4
  %v542 = vrot.slane %v538, 4
  %v543 = vsel %vm151, %v539, %v540
  %v544 = vsel %vm153, %v532, %v543
  %v545 = vsel %vm151, %v541, %v542
  %v546 = vsel %vm153, %v536, %v545
  %549 = vst [vmem:[#allocation4 + $0x8] sm:$0xff] %v544
  %550 = vst [vmem:[#allocation4 + $0x18] sm:$0xff] %v546
  %v551 = vld [vmem:[%s89] sm:$0xff]
  %v552 = vld [vmem:[%s89 + $0x8] sm:$0xf]
  %v553 = vld [vmem:[%s89 + $0x10] sm:$0xff]
  %v554 = vld [vmem:[%s89 + $0x18] sm:$0xf]
  %559 = vrot.lane.b32.xlu0 %v551, 16
  %v560 = vpop.permute.xlu0 %559
  %561 = vrot.lane.b32.xlu0 %v552, 16
  %v562 = vpop.permute.xlu0 %561
  %563 = vrot.lane.b32.xlu0 %v553, 16
  %v564 = vpop.permute.xlu0 %563
  %565 = vrot.lane.b32.xlu0 %v554, 16
  %v566 = vpop.permute.xlu0 %565
  %v567 = vrot.slane %v560, 4
  %v568 = vrot.slane %v562, 4
  %v569 = vrot.slane %v564, 4
  %v570 = vrot.slane %v566, 4
  %v571 = vsel %vm151, %v567, %v568
  %v572 = vsel %vm182, %v560, %v571
  %v573 = vsel %vm151, %v569, %v570
  %v574 = vsel %vm182, %v564, %v573
  %577 = vst [vmem:[#allocation4 + $0x28] sm:$0xff] %v572
  %578 = vst [vmem:[#allocation4 + $0x38] sm:$0xff] %v574
  %v579 = vld [vmem:[%s89] sm:$0xff]
  %v580 = vld [vmem:[%s89 + $0x8] sm:$0xf]
  %v581 = vld [vmem:[%s89 + $0x10] sm:$0xff]
  %v582 = vld [vmem:[%s89 + $0x18] sm:$0xf]
  %v583 = vunpack.c.l.bf16 %v579
  %v584 = vunpack.c.h.bf16 %v579
  %v585 = vunpack.c.l.bf16 %v580
  %v586 = vunpack.c.l.bf16 %v581
  %v587 = vunpack.c.h.bf16 %v581
  %v588 = vunpack.c.l.bf16 %v582
  %v589 = vmul.f32 %v583, %v215
  %v590 = vmul.f32 %v584, %v219
  %v591 = vmul.f32 %v585, %v217
  %v592 = vmul.f32 %v586, %v215
  %v593 = vmul.f32 %v587, %v219
  %v594 = vmul.f32 %v588, %v217
  %v595 = vpack.c.bf16 %v590, %v589
  %v596 = vpack.c.bf16 %v591, %v591
  %v597 = vpack.c.bf16 %v593, %v592
  %v598 = vpack.c.bf16 %v594, %v594
  %603 = vrot.lane.b32.xlu0 %v595, 15
  %v604 = vpop.permute.xlu0 %603
  %605 = vrot.lane.b32.xlu0 %v596, 15
  %v606 = vpop.permute.xlu0 %605
  %607 = vrot.lane.b32.xlu0 %v597, 15
  %v608 = vpop.permute.xlu0 %607
  %609 = vrot.lane.b32.xlu0 %v598, 15
  %v610 = vpop.permute.xlu0 %609
  %v611 = vrot.slane %v604, 4
  %v612 = vrot.slane %v606, 4
  %v613 = vrot.slane %v608, 4
  %v614 = vrot.slane %v610, 4
  %v615 = vsel %vm151, %v611, %v612
  %v616 = vsel %vm250, %v604, %v615
  %v617 = vsel %vm151, %v613, %v614
  %v618 = vsel %vm250, %v608, %v617
  %621 = vst [vmem:[#allocation4 + $0x48] sm:$0xff] %v616
  %622 = vst [vmem:[#allocation4 + $0x58] sm:$0xff] %v618
  %v623 = vld [vmem:[%s89] sm:$0xff]
  %v624 = vld [vmem:[%s89 + $0x8] sm:$0xf]
  %v625 = vld [vmem:[%s89 + $0x10] sm:$0xff]
  %v626 = vld [vmem:[%s89 + $0x18] sm:$0xf]
  %v627 = vunpack.c.l.bf16 %v623
  %v628 = vunpack.c.h.bf16 %v623
  %v629 = vunpack.c.l.bf16 %v624
  %v630 = vunpack.c.l.bf16 %v625
  %v631 = vunpack.c.h.bf16 %v625
  %v632 = vunpack.c.l.bf16 %v626
  %v633 = vmul.f32 %v627, %v269
  %v634 = vmul.f32 %v628, %v273
  %v635 = vmul.f32 %v629, %v271
  %v636 = vmul.f32 %v630, %v269
  %v637 = vmul.f32 %v631, %v273
  %v638 = vmul.f32 %v632, %v271
  %v639 = vpack.c.bf16 %v634, %v633
  %v640 = vpack.c.bf16 %v635, %v635
  %v641 = vpack.c.bf16 %v637, %v636
  %v642 = vpack.c.bf16 %v638, %v638
  %647 = vrot.lane.b32.xlu0 %v639, 1
  %v648 = vpop.permute.xlu0 %647
  %649 = vrot.lane.b32.xlu0 %v640, 1
  %v650 = vpop.permute.xlu0 %649
  %651 = vrot.lane.b32.xlu0 %v641, 1
  %v652 = vpop.permute.xlu0 %651
  %653 = vrot.lane.b32.xlu0 %v642, 1
  %v654 = vpop.permute.xlu0 %653
  %v655 = vrot.slane %v648, 4
  %v656 = vrot.slane %v650, 4
  %v657 = vrot.slane %v652, 4
  %v658 = vrot.slane %v654, 4
  %v659 = vsel %vm151, %v655, %v656
  %v660 = vsel %vm304, %v648, %v659
  %v661 = vsel %vm151, %v657, %v658
  %v662 = vsel %vm304, %v652, %v661
  %665 = vst [vmem:[#allocation4 + $0x68] sm:$0xff] %v660
  %666 = vst [vmem:[#allocation4 + $0x78] sm:$0xff] %v662
  %v667 = vld [vmem:[%s89 + $0x4] sm:$0xff]
  %v668 = vld [vmem:[%s89 + $0x14] sm:$0xff]
  %669 = vst [vmem:[#allocation4 + $0x88] sm:$0xff] %v667
  %670 = vst [vmem:[#allocation4 + $0x98] sm:$0xff] %v668
  %v671 = vld [vmem:[%s89 + $0x4] sm:$0xff]
  %v672 = vld [vmem:[%s89 + $0xc] sm:$0xf]
  %v673 = vld [vmem:[%s89 + $0x14] sm:$0xff]
  %v674 = vld [vmem:[%s89 + $0x1c] sm:$0xf]
  %v675 = vunpack.c.l.bf16 %v671
  %v676 = vunpack.c.h.bf16 %v671
  %v677 = vunpack.c.l.bf16 %v672
  %v678 = vunpack.c.l.bf16 %v673
  %v679 = vunpack.c.h.bf16 %v673
  %v680 = vunpack.c.l.bf16 %v674
  %v681 = vmul.f32 %v675, %v327
  %v682 = vmul.f32 %v676, %v331
  %v683 = vmul.f32 %v677, %v329
  %v684 = vmul.f32 %v678, %v327
  %v685 = vmul.f32 %v679, %v331
  %v686 = vmul.f32 %v680, %v329
  %v687 = vpack.c.bf16 %v682, %v681
  %v688 = vpack.c.bf16 %v683, %v683
  %v689 = vpack.c.bf16 %v685, %v684
  %v690 = vpack.c.bf16 %v686, %v686
  %695 = vrot.lane.b32.xlu0 %v687, 127
  %v696 = vpop.permute.xlu0 %695
  %697 = vrot.lane.b32.xlu0 %v688, 127
  %v698 = vpop.permute.xlu0 %697
  %699 = vrot.lane.b32.xlu0 %v689, 127
  %v700 = vpop.permute.xlu0 %699
  %701 = vrot.lane.b32.xlu0 %v690, 127
  %v702 = vpop.permute.xlu0 %701
  %v703 = vrot.slane %v696, 4
  %v704 = vrot.slane %v698, 4
  %v705 = vrot.slane %v700, 4
  %v706 = vrot.slane %v702, 4
  %v707 = vsel %vm151, %v703, %v704
  %v708 = vsel %vm362, %v696, %v707
  %v709 = vsel %vm151, %v705, %v706
  %v710 = vsel %vm362, %v700, %v709
  %713 = vst [vmem:[#allocation4 + $0xa8] sm:$0xff] %v708
  %714 = vst [vmem:[#allocation4 + $0xb8] sm:$0xff] %v710
  %v715 = vld [vmem:[%s89 + $0x4] sm:$0xff]
  %v716 = vld [vmem:[%s89 + $0xc] sm:$0xf]
  %v717 = vld [vmem:[%s89 + $0x14] sm:$0xff]
  %v718 = vld [vmem:[%s89 + $0x1c] sm:$0xf]
  %v719 = vunpack.c.l.bf16 %v715
  %v720 = vunpack.c.h.bf16 %v715
  %v721 = vunpack.c.l.bf16 %v716
  %v722 = vunpack.c.l.bf16 %v717
  %v723 = vunpack.c.h.bf16 %v717
  %v724 = vunpack.c.l.bf16 %v718
  %v725 = vmul.f32 %v719, %v381
  %v726 = vmul.f32 %v720, %v385
  %v727 = vmul.f32 %v721, %v383
  %v728 = vmul.f32 %v722, %v381
  %v729 = vmul.f32 %v723, %v385
  %v730 = vmul.f32 %v724, %v383
  %v731 = vpack.c.bf16 %v726, %v725
  %v732 = vpack.c.bf16 %v727, %v727
  %v733 = vpack.c.bf16 %v729, %v728
  %v734 = vpack.c.bf16 %v730, %v730
  %739 = vrot.lane.b32.xlu0 %v731, 113
  %v740 = vpop.permute.xlu0 %739
  %741 = vrot.lane.b32.xlu0 %v732, 113
  %v742 = vpop.permute.xlu0 %741
  %743 = vrot.lane.b32.xlu0 %v733, 113
  %v744 = vpop.permute.xlu0 %743
  %745 = vrot.lane.b32.xlu0 %v734, 113
  %v746 = vpop.permute.xlu0 %745
  %v747 = vrot.slane %v740, 4
  %v748 = vrot.slane %v742, 4
  %v749 = vrot.slane %v744, 4
  %v750 = vrot.slane %v746, 4
  %v751 = vsel %vm151, %v747, %v748
  %v752 = vsel %vm416, %v740, %v751
  %v753 = vsel %vm151, %v749, %v750
  %v754 = vsel %vm416, %v744, %v753
  %757 = vst [vmem:[#allocation4 + $0xc8] sm:$0xff] %v752
  %758 = vst [vmem:[#allocation4 + $0xd8] sm:$0xff] %v754
  %v759 = vld [vmem:[%s89 + $0x4] sm:$0xff]
  %v760 = vld [vmem:[%s89 + $0xc] sm:$0xf]
  %v761 = vld [vmem:[%s89 + $0x14] sm:$0xff]
  %v762 = vld [vmem:[%s89 + $0x1c] sm:$0xf]
  %767 = vrot.lane.b32.xlu0 %v759, 112
  %v768 = vpop.permute.xlu0 %767
  %769 = vrot.lane.b32.xlu0 %v760, 112
  %v770 = vpop.permute.xlu0 %769
  %771 = vrot.lane.b32.xlu0 %v761, 112
  %v772 = vpop.permute.xlu0 %771
  %773 = vrot.lane.b32.xlu0 %v762, 112
  %v774 = vpop.permute.xlu0 %773
  %v775 = vrot.slane %v768, 4
  %v776 = vrot.slane %v770, 4
  %v777 = vrot.slane %v772, 4
  %v778 = vrot.slane %v774, 4
  %v779 = vsel %vm151, %v775, %v776
  %v780 = vsel %vm445, %v768, %v779
  %v781 = vsel %vm151, %v777, %v778
  %v782 = vsel %vm445, %v772, %v781
  %785 = vst [vmem:[#allocation4 + $0xe8] sm:$0xff] %v780
  %786 = vst [vmem:[#allocation4 + $0xf8] sm:$0xff] %v782
  %v787 = vld [vmem:[%s89 + $0x4] sm:$0xff]
  %v788 = vld [vmem:[%s89 + $0xc] sm:$0xf]
  %v789 = vld [vmem:[%s89 + $0x14] sm:$0xff]
  %v790 = vld [vmem:[%s89 + $0x1c] sm:$0xf]
  %v791 = vunpack.c.l.bf16 %v787
  %v792 = vunpack.c.h.bf16 %v787
  %v793 = vunpack.c.l.bf16 %v788
  %v794 = vunpack.c.l.bf16 %v789
  %v795 = vunpack.c.h.bf16 %v789
  %v796 = vunpack.c.l.bf16 %v790
  %v797 = vmul.f32 %v791, %v464
  %v798 = vmul.f32 %v792, %v468
  %v799 = vmul.f32 %v793, %v466
  %v800 = vmul.f32 %v794, %v464
  %v801 = vmul.f32 %v795, %v468
  %v802 = vmul.f32 %v796, %v466
  %v803 = vpack.c.bf16 %v798, %v797
  %v804 = vpack.c.bf16 %v799, %v799
  %v805 = vpack.c.bf16 %v801, %v800
  %v806 = vpack.c.bf16 %v802, %v802
  %811 = vrot.lane.b32.xlu0 %v803, 111
  %v812 = vpop.permute.xlu0 %811
  %813 = vrot.lane.b32.xlu0 %v804, 111
  %v814 = vpop.permute.xlu0 %813
  %815 = vrot.lane.b32.xlu0 %v805, 111
  %v816 = vpop.permute.xlu0 %815
  %817 = vrot.lane.b32.xlu0 %v806, 111
  %v818 = vpop.permute.xlu0 %817
  %v819 = vrot.slane %v812, 4
  %v820 = vrot.slane %v814, 4
  %v821 = vrot.slane %v816, 4
  %v822 = vrot.slane %v818, 4
  %v823 = vsel %vm151, %v819, %v820
  %v824 = vsel %vm499, %v812, %v823
  %v825 = vsel %vm151, %v821, %v822
  %v826 = vsel %vm499, %v816, %v825
  %829 = vst [vmem:[#allocation4 + $0x108] sm:$0xff] %v824
  %830 = vst [vmem:[#allocation4 + $0x118] sm:$0xff] %v826
  %v831 = vld [vmem:[%s1] sm:$0xff]
  %v832 = vld [vmem:[%s1 + $0x8] sm:$0xff]
  %v833 = vld [vmem:[%s1 + $0x10] sm:$0xff]
  %v834 = vld [vmem:[%s1 + $0x18] sm:$0xff]
  %v835 = vld [vmem:[#allocation4] sm:$0xff]
  %v836 = vld [vmem:[#allocation4 + $0x8] sm:$0xff]
  %v837 = vld [vmem:[#allocation4 + $0x10] sm:$0xff]
  %v838 = vld [vmem:[#allocation4 + $0x18] sm:$0xff]
  %v839 = vld [vmem:[#allocation4 + $0x20] sm:$0xff]
  %v840 = vld [vmem:[#allocation4 + $0x28] sm:$0xff]
  %v841 = vld [vmem:[#allocation4 + $0x30] sm:$0xff]
  %v842 = vld [vmem:[#allocation4 + $0x38] sm:$0xff]
  %v843 = vld [vmem:[#allocation4 + $0x40] sm:$0xff]
  %v844 = vld [vmem:[#allocation4 + $0x48] sm:$0xff]
  %v845 = vld [vmem:[#allocation4 + $0x50] sm:$0xff]
  %v846 = vld [vmem:[#allocation4 + $0x58] sm:$0xff]
  %v847 = vld [vmem:[#allocation4 + $0x60] sm:$0xff]
  %v848 = vld [vmem:[#allocation4 + $0x68] sm:$0xff]
  %v849 = vld [vmem:[#allocation4 + $0x70] sm:$0xff]
  %v850 = vld [vmem:[#allocation4 + $0x78] sm:$0xff]
  %v851 = vld [vmem:[#allocation4 + $0x80] sm:$0xff]
  %v852 = vld [vmem:[#allocation4 + $0x88] sm:$0xff]
  %v853 = vld [vmem:[#allocation4 + $0x90] sm:$0xff]
  %v854 = vld [vmem:[#allocation4 + $0x98] sm:$0xff]
  %v855 = vld [vmem:[#allocation4 + $0xa0] sm:$0xff]
  %v856 = vld [vmem:[#allocation4 + $0xa8] sm:$0xff]
  %v857 = vld [vmem:[#allocation4 + $0xb0] sm:$0xff]
  %v858 = vld [vmem:[#allocation4 + $0xb8] sm:$0xff]
  %v859 = vld [vmem:[#allocation4 + $0xc0] sm:$0xff]
  %v860 = vld [vmem:[#allocation4 + $0xc8] sm:$0xff]
  %v861 = vld [vmem:[#allocation4 + $0xd0] sm:$0xff]
  %v862 = vld [vmem:[#allocation4 + $0xd8] sm:$0xff]
  %v863 = vld [vmem:[#allocation4 + $0xe0] sm:$0xff]
  %v864 = vld [vmem:[#allocation4 + $0xe8] sm:$0xff]
  %v865 = vld [vmem:[#allocation4 + $0xf0] sm:$0xff]
  %v866 = vld [vmem:[#allocation4 + $0xf8] sm:$0xff]
  %v867 = vld [vmem:[#allocation4 + $0x100] sm:$0xff]
  %v868 = vld [vmem:[#allocation4 + $0x108] sm:$0xff]
  %v869 = vld [vmem:[#allocation4 + $0x110] sm:$0xff]
  %v870 = vld [vmem:[#allocation4 + $0x118] sm:$0xff]
  %v875 = vunpack.c.l.b16 %v831
  %v876 = vunpack.c.h.b16 %v831
  %v877 = vunpack.c.l.b16 %v832
  %v878 = vunpack.c.h.b16 %v832
  %v879 = vunpack.c.l.b16 %v833
  %v880 = vunpack.c.h.b16 %v833
  %v881 = vunpack.c.l.b16 %v834
  %v882 = vunpack.c.h.b16 %v834
  %v883 = vpack.c.b16 %v877, %v875
  %v884 = vpack.c.b16 %v878, %v876
  %v885 = vpack.c.b16 %v881, %v879
  %v886 = vpack.c.b16 %v882, %v880
  %v925 = vunpack.c.l.b16 %v835
  %v926 = vunpack.c.h.b16 %v835
  %v927 = vunpack.c.l.b16 %v836
  %v928 = vunpack.c.h.b16 %v836
  %v929 = vunpack.c.l.b16 %v837
  %v930 = vunpack.c.h.b16 %v837
  %v931 = vunpack.c.l.b16 %v838
  %v932 = vunpack.c.h.b16 %v838
  %v933 = vunpack.c.l.b16 %v839
  %v934 = vunpack.c.h.b16 %v839
  %v935 = vunpack.c.l.b16 %v840
  %v936 = vunpack.c.h.b16 %v840
  %v937 = vunpack.c.l.b16 %v841
  %v938 = vunpack.c.h.b16 %v841
  %v939 = vunpack.c.l.b16 %v842
  %v940 = vunpack.c.h.b16 %v842
  %v941 = vunpack.c.l.b16 %v843
  %v942 = vunpack.c.h.b16 %v843
  %v943 = vunpack.c.l.b16 %v844
  %v944 = vunpack.c.h.b16 %v844
  %v945 = vunpack.c.l.b16 %v845
  %v946 = vunpack.c.h.b16 %v845
  %v947 = vunpack.c.l.b16 %v846
  %v948 = vunpack.c.h.b16 %v846
  %v949 = vunpack.c.l.b16 %v847
  %v950 = vunpack.c.h.b16 %v847
  %v951 = vunpack.c.l.b16 %v848
  %v952 = vunpack.c.h.b16 %v848
  %v953 = vunpack.c.l.b16 %v849
  %v954 = vunpack.c.h.b16 %v849
  %v955 = vunpack.c.l.b16 %v850
  %v956 = vunpack.c.h.b16 %v850
  %v957 = vunpack.c.l.b16 %v851
  %v958 = vunpack.c.h.b16 %v851
  %v959 = vunpack.c.l.b16 %v852
  %v960 = vunpack.c.h.b16 %v852
  %v961 = vunpack.c.l.b16 %v853
  %v962 = vunpack.c.h.b16 %v853
  %v963 = vunpack.c.l.b16 %v854
  %v964 = vunpack.c.h.b16 %v854
  %v965 = vunpack.c.l.b16 %v855
  %v966 = vunpack.c.h.b16 %v855
  %v967 = vunpack.c.l.b16 %v856
  %v968 = vunpack.c.h.b16 %v856
  %v969 = vunpack.c.l.b16 %v857
  %v970 = vunpack.c.h.b16 %v857
  %v971 = vunpack.c.l.b16 %v858
  %v972 = vunpack.c.h.b16 %v858
  %v973 = vunpack.c.l.b16 %v859
  %v974 = vunpack.c.h.b16 %v859
  %v975 = vunpack.c.l.b16 %v860
  %v976 = vunpack.c.h.b16 %v860
  %v977 = vunpack.c.l.b16 %v861
  %v978 = vunpack.c.h.b16 %v861
  %v979 = vunpack.c.l.b16 %v862
  %v980 = vunpack.c.h.b16 %v862
  %v981 = vunpack.c.l.b16 %v863
  %v982 = vunpack.c.h.b16 %v863
  %v983 = vunpack.c.l.b16 %v864
  %v984 = vunpack.c.h.b16 %v864
  %v985 = vunpack.c.l.b16 %v865
  %v986 = vunpack.c.h.b16 %v865
  %v987 = vunpack.c.l.b16 %v866
  %v988 = vunpack.c.h.b16 %v866
  %v989 = vunpack.c.l.b16 %v867
  %v990 = vunpack.c.h.b16 %v867
  %v991 = vunpack.c.l.b16 %v868
  %v992 = vunpack.c.h.b16 %v868
  %v993 = vunpack.c.l.b16 %v869
  %v994 = vunpack.c.h.b16 %v869
  %v995 = vunpack.c.l.b16 %v870
  %v996 = vunpack.c.h.b16 %v870
  %v997 = vpack.c.b16 %v929, %v925
  %v998 = vpack.c.b16 %v930, %v926
  %v999 = vpack.c.b16 %v931, %v927
  %v1000 = vpack.c.b16 %v932, %v928
  %v1001 = vpack.c.b16 %v937, %v933
  %v1002 = vpack.c.b16 %v938, %v934
  %v1003 = vpack.c.b16 %v939, %v935
  %v1004 = vpack.c.b16 %v940, %v936
  %v1005 = vpack.c.b16 %v945, %v941
  %v1006 = vpack.c.b16 %v946, %v942
  %v1007 = vpack.c.b16 %v947, %v943
  %v1008 = vpack.c.b16 %v948, %v944
  %v1009 = vpack.c.b16 %v953, %v949
  %v1010 = vpack.c.b16 %v954, %v950
  %v1011 = vpack.c.b16 %v955, %v951
  %v1012 = vpack.c.b16 %v956, %v952
  %v1013 = vpack.c.b16 %v961, %v957
  %v1014 = vpack.c.b16 %v962, %v958
  %v1015 = vpack.c.b16 %v963, %v959
  %v1016 = vpack.c.b16 %v964, %v960
  %v1017 = vpack.c.b16 %v969, %v965
  %v1018 = vpack.c.b16 %v970, %v966
  %v1019 = vpack.c.b16 %v971, %v967
  %v1020 = vpack.c.b16 %v972, %v968
  %v1021 = vpack.c.b16 %v977, %v973
  %v1022 = vpack.c.b16 %v978, %v974
  %v1023 = vpack.c.b16 %v979, %v975
  %v1024 = vpack.c.b16 %v980, %v976
  %v1025 = vpack.c.b16 %v985, %v981
  %v1026 = vpack.c.b16 %v986, %v982
  %v1027 = vpack.c.b16 %v987, %v983
  %v1028 = vpack.c.b16 %v988, %v984
  %v1029 = vpack.c.b16 %v993, %v989
  %v1030 = vpack.c.b16 %v994, %v990
  %v1031 = vpack.c.b16 %v995, %v991
  %v1032 = vpack.c.b16 %v996, %v992
  %vm1069 = vcmask 130048
  %v1071 = vsel %vm1069, %v884, 0
  %v1074 = vsel %vm1069, %v886, 0
  %1076 = vmatpush.bf16.msra.mxu0 %v1025
  %1077 = vmatpush.bf16.msra.mxu0 %v1021
  %1078 = vmatpush.bf16.msra.mxu0 %v1017
  %1079 = vmatpush.bf16.msra.mxu0 %v1013
  %1080 = vmatpush.bf16.msra.mxu0 %v1009
  %1081 = vmatpush.bf16.msra.mxu0 %v1005
  %1082 = vmatpush.bf16.msra.mxu0 %v1001
  %1083 = vmatpush.bf16.msra.mxu0 %v997
  %1084 = vmatmul.bf16.gmra.mxu0 %v883
  %v1085 = vpop.f32.mrf.mxu0
  %v1086 = vadd.f32 0.0, %v1085
  %v1087 = vpop.f32.mrf.mxu0
  %v1088 = vadd.f32 0.0, %v1087
  %1089 = vmatmul.bf16.gmra.mxu0 %v885
  %v1090 = vpop.f32.mrf.mxu0
  %v1091 = vadd.f32 0.0, %v1090
  %v1092 = vpop.f32.mrf.mxu0
  %v1093 = vadd.f32 0.0, %v1092
  %1094 = vdwg.mxu0
  %1095 = vmatpush.bf16.msra.mxu0 0
  %1096 = vmatpush.bf16.msra.mxu0 0
  %1097 = vmatpush.bf16.msra.mxu0 0
  %1098 = vmatpush.bf16.msra.mxu0 0
  %1099 = vmatpush.bf16.msra.mxu0 0
  %1100 = vmatpush.bf16.msra.mxu0 0
  %1101 = vmatpush.bf16.msra.mxu0 0
  %1102 = vmatpush.bf16.msra.mxu0 %v1029
  %1103 = vmatmul.bf16.gmra.mxu0 %v1071
  %v1104 = vpop.f32.mrf.mxu0
  %v1105 = vadd.f32 %v1086, %v1104
  %v1106 = vpop.f32.mrf.mxu0
  %v1107 = vadd.f32 %v1088, %v1106
  %1108 = vmatmul.bf16.gmra.mxu0 %v1074
  %v1109 = vpop.f32.mrf.mxu0
  %v1110 = vadd.f32 %v1091, %v1109
  %v1111 = vpop.f32.mrf.mxu0
  %v1112 = vadd.f32 %v1093, %v1111
  %1113 = vdwg.mxu0
  %1114 = vmatpush.bf16.msra.mxu0 %v1026
  %1115 = vmatpush.bf16.msra.mxu0 %v1022
  %1116 = vmatpush.bf16.msra.mxu0 %v1018
  %1117 = vmatpush.bf16.msra.mxu0 %v1014
  %1118 = vmatpush.bf16.msra.mxu0 %v1010
  %1119 = vmatpush.bf16.msra.mxu0 %v1006
  %1120 = vmatpush.bf16.msra.mxu0 %v1002
  %1121 = vmatpush.bf16.msra.mxu0 %v998
  %1122 = vmatmul.bf16.gmra.mxu0 %v883
  %v1123 = vpop.f32.mrf.mxu0
  %v1124 = vadd.f32 0.0, %v1123
  %v1125 = vpop.f32.mrf.mxu0
  %v1126 = vadd.f32 0.0, %v1125
  %1127 = vmatmul.bf16.gmra.mxu0 %v885
  %v1128 = vpop.f32.mrf.mxu0
  %v1129 = vadd.f32 0.0, %v1128
  %v1130 = vpop.f32.mrf.mxu0
  %v1131 = vadd.f32 0.0, %v1130
  %1132 = vdwg.mxu0
  %1133 = vmatpush.bf16.msra.mxu0 0
  %1134 = vmatpush.bf16.msra.mxu0 0
  %1135 = vmatpush.bf16.msra.mxu0 0
  %1136 = vmatpush.bf16.msra.mxu0 0
  %1137 = vmatpush.bf16.msra.mxu0 0
  %1138 = vmatpush.bf16.msra.mxu0 0
  %1139 = vmatpush.bf16.msra.mxu0 0
  %1140 = vmatpush.bf16.msra.mxu0 %v1030
  %1141 = vmatmul.bf16.gmra.mxu0 %v1071
  %v1142 = vpop.f32.mrf.mxu0
  %v1143 = vadd.f32 %v1124, %v1142
  %v1144 = vpop.f32.mrf.mxu0
  %v1145 = vadd.f32 %v1126, %v1144
  %1146 = vmatmul.bf16.gmra.mxu0 %v1074
  %v1147 = vpop.f32.mrf.mxu0
  %v1148 = vadd.f32 %v1129, %v1147
  %v1149 = vpop.f32.mrf.mxu0
  %v1150 = vadd.f32 %v1131, %v1149
  %1151 = vdwg.mxu0
  %1152 = vmatpush.bf16.msra.mxu0 %v1027
  %1153 = vmatpush.bf16.msra.mxu0 %v1023
  %1154 = vmatpush.bf16.msra.mxu0 %v1019
  %1155 = vmatpush.bf16.msra.mxu0 %v1015
  %1156 = vmatpush.bf16.msra.mxu0 %v1011
  %1157 = vmatpush.bf16.msra.mxu0 %v1007
  %1158 = vmatpush.bf16.msra.mxu0 %v1003
  %1159 = vmatpush.bf16.msra.mxu0 %v999
  %1160 = vmatmul.bf16.gmra.mxu0 %v883
  %v1161 = vpop.f32.mrf.mxu0
  %v1162 = vadd.f32 0.0, %v1161
  %v1163 = vpop.f32.mrf.mxu0
  %v1164 = vadd.f32 0.0, %v1163
  %1165 = vmatmul.bf16.gmra.mxu0 %v885
  %v1166 = vpop.f32.mrf.mxu0
  %v1167 = vadd.f32 0.0, %v1166
  %v1168 = vpop.f32.mrf.mxu0
  %v1169 = vadd.f32 0.0, %v1168
  %1170 = vdwg.mxu0
  %1171 = vmatpush.bf16.msra.mxu0 0
  %1172 = vmatpush.bf16.msra.mxu0 0
  %1173 = vmatpush.bf16.msra.mxu0 0
  %1174 = vmatpush.bf16.msra.mxu0 0
  %1175 = vmatpush.bf16.msra.mxu0 0
  %1176 = vmatpush.bf16.msra.mxu0 0
  %1177 = vmatpush.bf16.msra.mxu0 0
  %1178 = vmatpush.bf16.msra.mxu0 %v1031
  %1179 = vmatmul.bf16.gmra.mxu0 %v1071
  %v1180 = vpop.f32.mrf.mxu0
  %v1181 = vadd.f32 %v1162, %v1180
  %v1182 = vpop.f32.mrf.mxu0
  %v1183 = vadd.f32 %v1164, %v1182
  %1184 = vmatmul.bf16.gmra.mxu0 %v1074
  %v1185 = vpop.f32.mrf.mxu0
  %v1186 = vadd.f32 %v1167, %v1185
  %v1187 = vpop.f32.mrf.mxu0
  %v1188 = vadd.f32 %v1169, %v1187
  %1189 = vdwg.mxu0
  %1190 = vmatpush.bf16.msra.mxu0 %v1028
  %1191 = vmatpush.bf16.msra.mxu0 %v1024
  %1192 = vmatpush.bf16.msra.mxu0 %v1020
  %1193 = vmatpush.bf16.msra.mxu0 %v1016
  %1194 = vmatpush.bf16.msra.mxu0 %v1012
  %1195 = vmatpush.bf16.msra.mxu0 %v1008
  %1196 = vmatpush.bf16.msra.mxu0 %v1004
  %1197 = vmatpush.bf16.msra.mxu0 %v1000
  %1198 = vmatmul.bf16.gmra.mxu0 %v883
  %v1199 = vpop.f32.mrf.mxu0
  %v1200 = vadd.f32 0.0, %v1199
  %v1201 = vpop.f32.mrf.mxu0
  %v1202 = vadd.f32 0.0, %v1201
  %1203 = vmatmul.bf16.gmra.mxu0 %v885
  %v1204 = vpop.f32.mrf.mxu0
  %v1205 = vadd.f32 0.0, %v1204
  %v1206 = vpop.f32.mrf.mxu0
  %v1207 = vadd.f32 0.0, %v1206
  %1208 = vdwg.mxu0
  %1209 = vmatpush.bf16.msra.mxu0 0
  %1210 = vmatpush.bf16.msra.mxu0 0
  %1211 = vmatpush.bf16.msra.mxu0 0
  %1212 = vmatpush.bf16.msra.mxu0 0
  %1213 = vmatpush.bf16.msra.mxu0 0
  %1214 = vmatpush.bf16.msra.mxu0 0
  %1215 = vmatpush.bf16.msra.mxu0 0
  %1216 = vmatpush.bf16.msra.mxu0 %v1032
  %1217 = vmatmul.bf16.gmra.mxu0 %v1071
  %v1218 = vpop.f32.mrf.mxu0
  %v1219 = vadd.f32 %v1200, %v1218
  %v1220 = vpop.f32.mrf.mxu0
  %v1221 = vadd.f32 %v1202, %v1220
  %1222 = vmatmul.bf16.gmra.mxu0 %v1074
  %v1223 = vpop.f32.mrf.mxu0
  %v1224 = vadd.f32 %v1205, %v1223
  %v1225 = vpop.f32.mrf.mxu0
  %v1226 = vadd.f32 %v1207, %v1225
  %1227 = vdwg.mxu0
  %v1228 = vld [vmem:[%s2] sm:$0xff]
  %v1229 = vld [vmem:[%s2 + $0x8] sm:$0xff]
  %v1230 = vld [vmem:[%s2 + $0x10] sm:$0xff]
  %v1231 = vld [vmem:[%s2 + $0x18] sm:$0xff]
  %1233 = vset.pattern.permute.xlu0 0
  %1234 = vperm.xlu0 %1233, %v1228
  %v1235 = vpop.permute.xlu0 %1234
  %1238 = vset.pattern.permute.xlu0 0
  %1239 = vperm.xlu0 %1238, %v1229
  %v1240 = vpop.permute.xlu0 %1239
  %1243 = vset.pattern.permute.xlu0 0
  %1244 = vperm.xlu0 %1243, %v1230
  %v1245 = vpop.permute.xlu0 %1244
  %1248 = vset.pattern.permute.xlu0 0
  %1249 = vperm.xlu0 %1248, %v1231
  %v1250 = vpop.permute.xlu0 %1249
  %v1252 = vmul.f32 %v1105, %v1235
  %v1253 = vmul.f32 %v1143, %v1235
  %v1254 = vmul.f32 %v1181, %v1235
  %v1255 = vmul.f32 %v1219, %v1235
  %v1256 = vmul.f32 %v1107, %v1240
  %v1257 = vmul.f32 %v1145, %v1240
  %v1258 = vmul.f32 %v1183, %v1240
  %v1259 = vmul.f32 %v1221, %v1240
  %v1260 = vmul.f32 %v1110, %v1245
  %v1261 = vmul.f32 %v1148, %v1245
  %v1262 = vmul.f32 %v1186, %v1245
  %v1263 = vmul.f32 %v1224, %v1245
  %v1264 = vmul.f32 %v1112, %v1250
  %v1265 = vmul.f32 %v1150, %v1250
  %v1266 = vmul.f32 %v1188, %v1250
  %v1267 = vmul.f32 %v1226, %v1250
  %v1268 = vld [vmem:[%s3] sm:$0xff]
  %v1269 = vld [vmem:[%s3 + $0x8] sm:$0xff]
  %v1270 = vld [vmem:[%s3 + $0x10] sm:$0xff]
  %v1271 = vld [vmem:[%s3 + $0x18] sm:$0xff]
  %1273 = vset.pattern.permute.xlu0 0
  %1274 = vperm.xlu0 %1273, %v1268
  %v1275 = vpop.permute.xlu0 %1274
  %1278 = vset.pattern.permute.xlu0 0
  %1279 = vperm.xlu0 %1278, %v1269
  %v1280 = vpop.permute.xlu0 %1279
  %1283 = vset.pattern.permute.xlu0 0
  %1284 = vperm.xlu0 %1283, %v1270
  %v1285 = vpop.permute.xlu0 %1284
  %1288 = vset.pattern.permute.xlu0 0
  %1289 = vperm.xlu0 %1288, %v1271
  %v1290 = vpop.permute.xlu0 %1289
  %v1292 = vadd.f32 %v1252, %v1275
  %v1293 = vadd.f32 %v1253, %v1275
  %v1294 = vadd.f32 %v1254, %v1275
  %v1295 = vadd.f32 %v1255, %v1275
  %v1296 = vadd.f32 %v1256, %v1280
  %v1297 = vadd.f32 %v1257, %v1280
  %v1298 = vadd.f32 %v1258, %v1280
  %v1299 = vadd.f32 %v1259, %v1280
  %v1300 = vadd.f32 %v1260, %v1285
  %v1301 = vadd.f32 %v1261, %v1285
  %v1302 = vadd.f32 %v1262, %v1285
  %v1303 = vadd.f32 %v1263, %v1285
  %v1304 = vadd.f32 %v1264, %v1290
  %v1305 = vadd.f32 %v1265, %v1290
  %v1306 = vadd.f32 %v1266, %v1290
  %v1307 = vadd.f32 %v1267, %v1290
  %v1308 = vmax.f32 %v1292, 0.0
  %v1309 = vmax.f32 %v1293, 0.0
  %v1310 = vmax.f32 %v1294, 0.0
  %v1311 = vmax.f32 %v1295, 0.0
  %v1312 = vmax.f32 %v1296, 0.0
  %v1313 = vmax.f32 %v1297, 0.0
  %v1314 = vmax.f32 %v1298, 0.0
  %v1315 = vmax.f32 %v1299, 0.0
  %v1316 = vmax.f32 %v1300, 0.0
  %v1317 = vmax.f32 %v1301, 0.0
  %v1318 = vmax.f32 %v1302, 0.0
  %v1319 = vmax.f32 %v1303, 0.0
  %v1320 = vmax.f32 %v1304, 0.0
  %v1321 = vmax.f32 %v1305, 0.0
  %v1322 = vmax.f32 %v1306, 0.0
  %v1323 = vmax.f32 %v1307, 0.0
  %v1324 = vld [vmem:[%s11] sm:$0xf]
  %v1325 = vld [vmem:[%s11 + $0x4] sm:$0xf]
  %v1326 = vld [vmem:[%s11 + $0x8] sm:$0xf]
  %v1327 = vld [vmem:[%s11 + $0xc] sm:$0xf]
  %v1328 = vld [vmem:[#allocation4 + $0x80] sm:$0xff]
  %v1329 = vld [vmem:[#allocation4 + $0x88] sm:$0xff]
  %v1330 = vld [vmem:[#allocation4 + $0x90] sm:$0xff]
  %v1331 = vld [vmem:[#allocation4 + $0x98] sm:$0xff]
  %v1336 = vunpack.c.l.b16 %v1324
  %v1337 = vunpack.c.l.b16 %v1325
  %v1338 = vunpack.c.l.b16 %v1326
  %v1339 = vunpack.c.l.b16 %v1327
  %v1340 = vpack.c.b16 %v1337, %v1336
  %v1341 = vpack.c.b16 %v1339, %v1338
  %v1346 = vunpack.c.l.b16 %v1328
  %v1347 = vunpack.c.h.b16 %v1328
  %v1348 = vunpack.c.l.b16 %v1329
  %v1349 = vunpack.c.h.b16 %v1329
  %v1350 = vunpack.c.l.b16 %v1330
  %v1351 = vunpack.c.h.b16 %v1330
  %v1352 = vunpack.c.l.b16 %v1331
  %v1353 = vunpack.c.h.b16 %v1331
  %v1354 = vpack.c.b16 %v1350, %v1346
  %v1355 = vpack.c.b16 %v1351, %v1347
  %v1356 = vpack.c.b16 %v1352, %v1348
  %v1357 = vpack.c.b16 %v1353, %v1349
  %v1363 = vsel %vm1069, %v1340, 0
  %v1366 = vsel %vm1069, %v1341, 0
  %1368 = vmatpush.bf16.msra.mxu0 0
  %1369 = vmatpush.bf16.msra.mxu0 0
  %1370 = vmatpush.bf16.msra.mxu0 0
  %1371 = vmatpush.bf16.msra.mxu0 0
  %1372 = vmatpush.bf16.msra.mxu0 0
  %1373 = vmatpush.bf16.msra.mxu0 0
  %1374 = vmatpush.bf16.msra.mxu0 0
  %1375 = vmatpush.bf16.msra.mxu0 %v1354
  %1376 = vmatmul.bf16.gmra.mxu0 %v1363
  %v1377 = vpop.f32.mrf.mxu0
  %v1378 = vadd.f32 0.0, %v1377
  %v1379 = vpop.f32.mrf.mxu0
  %v1380 = vadd.f32 0.0, %v1379
  %1381 = vmatmul.bf16.gmra.mxu0 %v1366
  %v1382 = vpop.f32.mrf.mxu0
  %v1383 = vadd.f32 0.0, %v1382
  %v1384 = vpop.f32.mrf.mxu0
  %v1385 = vadd.f32 0.0, %v1384
  %1386 = vdwg.mxu0
  %1387 = vmatpush.bf16.msra.mxu0 0
  %1388 = vmatpush.bf16.msra.mxu0 0
  %1389 = vmatpush.bf16.msra.mxu0 0
  %1390 = vmatpush.bf16.msra.mxu0 0
  %1391 = vmatpush.bf16.msra.mxu0 0
  %1392 = vmatpush.bf16.msra.mxu0 0
  %1393 = vmatpush.bf16.msra.mxu0 0
  %1394 = vmatpush.bf16.msra.mxu0 %v1355
  %1395 = vmatmul.bf16.gmra.mxu0 %v1363
  %v1396 = vpop.f32.mrf.mxu0
  %v1397 = vadd.f32 0.0, %v1396
  %v1398 = vpop.f32.mrf.mxu0
  %v1399 = vadd.f32 0.0, %v1398
  %1400 = vmatmul.bf16.gmra.mxu0 %v1366
  %v1401 = vpop.f32.mrf.mxu0
  %v1402 = vadd.f32 0.0, %v1401
  %v1403 = vpop.f32.mrf.mxu0
  %v1404 = vadd.f32 0.0, %v1403
  %1405 = vdwg.mxu0
  %1406 = vmatpush.bf16.msra.mxu0 0
  %1407 = vmatpush.bf16.msra.mxu0 0
  %1408 = vmatpush.bf16.msra.mxu0 0
  %1409 = vmatpush.bf16.msra.mxu0 0
  %1410 = vmatpush.bf16.msra.mxu0 0
  %1411 = vmatpush.bf16.msra.mxu0 0
  %1412 = vmatpush.bf16.msra.mxu0 0
  %1413 = vmatpush.bf16.msra.mxu0 %v1356
  %1414 = vmatmul.bf16.gmra.mxu0 %v1363
  %v1415 = vpop.f32.mrf.mxu0
  %v1416 = vadd.f32 0.0, %v1415
  %v1417 = vpop.f32.mrf.mxu0
  %v1418 = vadd.f32 0.0, %v1417
  %1419 = vmatmul.bf16.gmra.mxu0 %v1366
  %v1420 = vpop.f32.mrf.mxu0
  %v1421 = vadd.f32 0.0, %v1420
  %v1422 = vpop.f32.mrf.mxu0
  %v1423 = vadd.f32 0.0, %v1422
  %1424 = vdwg.mxu0
  %1425 = vmatpush.bf16.msra.mxu0 0
  %1426 = vmatpush.bf16.msra.mxu0 0
  %1427 = vmatpush.bf16.msra.mxu0 0
  %1428 = vmatpush.bf16.msra.mxu0 0
  %1429 = vmatpush.bf16.msra.mxu0 0
  %1430 = vmatpush.bf16.msra.mxu0 0
  %1431 = vmatpush.bf16.msra.mxu0 0
  %1432 = vmatpush.bf16.msra.mxu0 %v1357
  %1433 = vmatmul.bf16.gmra.mxu0 %v1363
  %v1434 = vpop.f32.mrf.mxu0
  %v1435 = vadd.f32 0.0, %v1434
  %v1436 = vpop.f32.mrf.mxu0
  %v1437 = vadd.f32 0.0, %v1436
  %1438 = vmatmul.bf16.gmra.mxu0 %v1366
  %v1439 = vpop.f32.mrf.mxu0
  %v1440 = vadd.f32 0.0, %v1439
  %v1441 = vpop.f32.mrf.mxu0
  %v1442 = vadd.f32 0.0, %v1441
  %1443 = vdwg.mxu0
  %v1444 = vld [vmem:[%s12] sm:$0xff]
  %v1445 = vld [vmem:[%s12 + $0x8] sm:$0xff]
  %v1446 = vld [vmem:[%s12 + $0x10] sm:$0xff]
  %v1447 = vld [vmem:[%s12 + $0x18] sm:$0xff]
  %1449 = vset.pattern.permute.xlu0 0
  %1450 = vperm.xlu0 %1449, %v1444
  %v1451 = vpop.permute.xlu0 %1450
  %1454 = vset.pattern.permute.xlu0 0
  %1455 = vperm.xlu0 %1454, %v1445
  %v1456 = vpop.permute.xlu0 %1455
  %1459 = vset.pattern.permute.xlu0 0
  %1460 = vperm.xlu0 %1459, %v1446
  %v1461 = vpop.permute.xlu0 %1460
  %1464 = vset.pattern.permute.xlu0 0
  %1465 = vperm.xlu0 %1464, %v1447
  %v1466 = vpop.permute.xlu0 %1465
  %v1468 = vmul.f32 %v1378, %v1451
  %v1469 = vmul.f32 %v1397, %v1451
  %v1470 = vmul.f32 %v1416, %v1451
  %v1471 = vmul.f32 %v1435, %v1451
  %v1472 = vmul.f32 %v1380, %v1456
  %v1473 = vmul.f32 %v1399, %v1456
  %v1474 = vmul.f32 %v1418, %v1456
  %v1475 = vmul.f32 %v1437, %v1456
  %v1476 = vmul.f32 %v1383, %v1461
  %v1477 = vmul.f32 %v1402, %v1461
  %v1478 = vmul.f32 %v1421, %v1461
  %v1479 = vmul.f32 %v1440, %v1461
  %v1480 = vmul.f32 %v1385, %v1466
  %v1481 = vmul.f32 %v1404, %v1466
  %v1482 = vmul.f32 %v1423, %v1466
  %v1483 = vmul.f32 %v1442, %v1466
  %v1484 = vld [vmem:[%s13] sm:$0xff]
  %v1485 = vld [vmem:[%s13 + $0x8] sm:$0xff]
  %v1486 = vld [vmem:[%s13 + $0x10] sm:$0xff]
  %v1487 = vld [vmem:[%s13 + $0x18] sm:$0xff]
  %1489 = vset.pattern.permute.xlu0 0
  %1490 = vperm.xlu0 %1489, %v1484
  %v1491 = vpop.permute.xlu0 %1490
  %1494 = vset.pattern.permute.xlu0 0
  %1495 = vperm.xlu0 %1494, %v1485
  %v1496 = vpop.permute.xlu0 %1495
  %1499 = vset.pattern.permute.xlu0 0
  %1500 = vperm.xlu0 %1499, %v1486
  %v1501 = vpop.permute.xlu0 %1500
  %1504 = vset.pattern.permute.xlu0 0
  %1505 = vperm.xlu0 %1504, %v1487
  %v1506 = vpop.permute.xlu0 %1505
  %v1508 = vadd.f32 %v1468, %v1491
  %v1509 = vadd.f32 %v1469, %v1491
  %v1510 = vadd.f32 %v1470, %v1491
  %v1511 = vadd.f32 %v1471, %v1491
  %v1512 = vadd.f32 %v1472, %v1496
  %v1513 = vadd.f32 %v1473, %v1496
  %v1514 = vadd.f32 %v1474, %v1496
  %v1515 = vadd.f32 %v1475, %v1496
  %v1516 = vadd.f32 %v1476, %v1501
  %v1517 = vadd.f32 %v1477, %v1501
  %v1518 = vadd.f32 %v1478, %v1501
  %v1519 = vadd.f32 %v1479, %v1501
  %v1520 = vadd.f32 %v1480, %v1506
  %v1521 = vadd.f32 %v1481, %v1506
  %v1522 = vadd.f32 %v1482, %v1506
  %v1523 = vadd.f32 %v1483, %v1506
  %v1524 = vpack.c.bf16 %v1309, %v1308
  %v1525 = vpack.c.bf16 %v1313, %v1312
  %v1526 = vpack.c.bf16 %v1317, %v1316
  %v1527 = vpack.c.bf16 %v1321, %v1320
  %1528 = vst [vmem:[#allocation3 + $0x4] sm:$0xff] %v1524
  %1529 = vst [vmem:[#allocation3 + $0x14] sm:$0xff] %v1525
  %1530 = vst [vmem:[#allocation3 + $0x24] sm:$0xff] %v1526
  %1531 = vst [vmem:[#allocation3 + $0x34] sm:$0xff] %v1527
  %v1532 = vpack.c.bf16 %v1311, %v1310
  %v1533 = vpack.c.bf16 %v1315, %v1314
  %v1534 = vpack.c.bf16 %v1319, %v1318
  %v1535 = vpack.c.bf16 %v1323, %v1322
  %s1536 = scalar_lea.vmem [#allocation3], 64
  %1537 = vst [vmem:[%s1536 + $0x4] sm:$0xff] %v1532
  %1538 = vst [vmem:[%s1536 + $0x14] sm:$0xff] %v1533
  %1539 = vst [vmem:[%s1536 + $0x24] sm:$0xff] %v1534
  %1540 = vst [vmem:[%s1536 + $0x34] sm:$0xff] %v1535
  %v1541 = vld [vmem:[#allocation3] sm:$0xff]
  %v1542 = vld [vmem:[#allocation3 + $0x8] sm:$0xf]
  %v1543 = vld [vmem:[#allocation3 + $0x10] sm:$0xff]
  %v1544 = vld [vmem:[#allocation3 + $0x18] sm:$0xf]
  %v1545 = vld [vmem:[#allocation3 + $0x20] sm:$0xff]
  %v1546 = vld [vmem:[#allocation3 + $0x28] sm:$0xf]
  %v1547 = vld [vmem:[#allocation3 + $0x30] sm:$0xff]
  %v1548 = vld [vmem:[#allocation3 + $0x38] sm:$0xf]
  %1549 = vst [vmem:[#allocation1] ss:$9 sm:$0xff] %v48
  %v1550 = vld [vmem:[#allocation1] sm:$0xff]
  %v1551 = vld [vmem:[#allocation1 + $0x9] sm:$0xff]
  %v1552 = vpack.i.b16 %v1550, %v1550
  %v1554 = vperm.slane %v1552, 0
  %v1555 = vpack.i.b16 %v1551, %v1551
  %v1557 = vperm.slane %v1555, 0
  %v1558 = vunpack.c.l.bf16 %v1541
  %v1559 = vunpack.c.h.bf16 %v1541
  %v1560 = vunpack.c.l.bf16 %v1542
  %v1561 = vunpack.c.l.bf16 %v1543
  %v1562 = vunpack.c.h.bf16 %v1543
  %v1563 = vunpack.c.l.bf16 %v1544
  %v1564 = vunpack.c.l.bf16 %v1545
  %v1565 = vunpack.c.h.bf16 %v1545
  %v1566 = vunpack.c.l.bf16 %v1546
  %v1567 = vunpack.c.l.bf16 %v1547
  %v1568 = vunpack.c.h.bf16 %v1547
  %v1569 = vunpack.c.l.bf16 %v1548
  %v1570 = vunpack.c.l.bf16 %v1554
  %v1571 = vunpack.c.l.bf16 %v1557
  %1574 = vrot.lane.b32.xlu0 %v1570, 111
  %v1575 = vpop.permute.xlu0 %1574
  %1576 = vrot.lane.b32.xlu0 %v1571, 111
  %v1577 = vpop.permute.xlu0 %1576
  %v1578 = vsel %vm120, %v1575, %v1577
  %v1582 = vmul.f32 %v1558, %v1575
  %v1583 = vmul.f32 %v1559, %v1578
  %v1584 = vmul.f32 %v1560, %v1577
  %v1585 = vmul.f32 %v1561, %v1575
  %v1586 = vmul.f32 %v1562, %v1578
  %v1587 = vmul.f32 %v1563, %v1577
  %v1588 = vmul.f32 %v1564, %v1575
  %v1589 = vmul.f32 %v1565, %v1578
  %v1590 = vmul.f32 %v1566, %v1577
  %v1591 = vmul.f32 %v1567, %v1575
  %v1592 = vmul.f32 %v1568, %v1578
  %v1593 = vmul.f32 %v1569, %v1577
  %v1594 = vpack.c.bf16 %v1583, %v1582
  %v1595 = vpack.c.bf16 %v1584, %v1584
  %v1596 = vpack.c.bf16 %v1586, %v1585
  %v1597 = vpack.c.bf16 %v1587, %v1587
  %v1598 = vpack.c.bf16 %v1589, %v1588
  %v1599 = vpack.c.bf16 %v1590, %v1590
  %v1600 = vpack.c.bf16 %v1592, %v1591
  %v1601 = vpack.c.bf16 %v1593, %v1593
  %1610 = vrot.lane.b32.xlu0 %v1594, 17
  %v1611 = vpop.permute.xlu0 %1610
  %1612 = vrot.lane.b32.xlu0 %v1595, 17
  %v1613 = vpop.permute.xlu0 %1612
  %1614 = vrot.lane.b32.xlu0 %v1596, 17
  %v1615 = vpop.permute.xlu0 %1614
  %1616 = vrot.lane.b32.xlu0 %v1597, 17
  %v1617 = vpop.permute.xlu0 %1616
  %1618 = vrot.lane.b32.xlu0 %v1598, 17
  %v1619 = vpop.permute.xlu0 %1618
  %1620 = vrot.lane.b32.xlu0 %v1599, 17
  %v1621 = vpop.permute.xlu0 %1620
  %1622 = vrot.lane.b32.xlu0 %v1600, 17
  %v1623 = vpop.permute.xlu0 %1622
  %1624 = vrot.lane.b32.xlu0 %v1601, 17
  %v1625 = vpop.permute.xlu0 %1624
  %v1626 = vrot.slane %v1611, 4
  %v1627 = vrot.slane %v1613, 4
  %v1628 = vrot.slane %v1615, 4
  %v1629 = vrot.slane %v1617, 4
  %v1630 = vrot.slane %v1619, 4
  %v1631 = vrot.slane %v1621, 4
  %v1632 = vrot.slane %v1623, 4
  %v1633 = vrot.slane %v1625, 4
  %v1634 = vsel %vm151, %v1626, %v1627
  %v1635 = vsel %vm153, %v1611, %v1634
  %v1636 = vsel %vm151, %v1628, %v1629
  %v1637 = vsel %vm153, %v1615, %v1636
  %v1638 = vsel %vm151, %v1630, %v1631
  %v1639 = vsel %vm153, %v1619, %v1638
  %v1640 = vsel %vm151, %v1632, %v1633
  %v1641 = vsel %vm153, %v1623, %v1640
  %1646 = vst [vmem:[#allocation4] sm:$0xff] %v1635
  %1647 = vst [vmem:[#allocation4 + $0x10] sm:$0xff] %v1637
  %1648 = vst [vmem:[#allocation4 + $0x20] sm:$0xff] %v1639
  %1649 = vst [vmem:[#allocation4 + $0x30] sm:$0xff] %v1641
  %v1650 = vld [vmem:[#allocation3] sm:$0xff]
  %v1651 = vld [vmem:[#allocation3 + $0x8] sm:$0xf]
  %v1652 = vld [vmem:[#allocation3 + $0x10] sm:$0xff]
  %v1653 = vld [vmem:[#allocation3 + $0x18] sm:$0xf]
  %v1654 = vld [vmem:[#allocation3 + $0x20] sm:$0xff]
  %v1655 = vld [vmem:[#allocation3 + $0x28] sm:$0xf]
  %v1656 = vld [vmem:[#allocation3 + $0x30] sm:$0xff]
  %v1657 = vld [vmem:[#allocation3 + $0x38] sm:$0xf]
  %1666 = vrot.lane.b32.xlu0 %v1650, 16
  %v1667 = vpop.permute.xlu0 %1666
  %1668 = vrot.lane.b32.xlu0 %v1651, 16
  %v1669 = vpop.permute.xlu0 %1668
  %1670 = vrot.lane.b32.xlu0 %v1652, 16
  %v1671 = vpop.permute.xlu0 %1670
  %1672 = vrot.lane.b32.xlu0 %v1653, 16
  %v1673 = vpop.permute.xlu0 %1672
  %1674 = vrot.lane.b32.xlu0 %v1654, 16
  %v1675 = vpop.permute.xlu0 %1674
  %1676 = vrot.lane.b32.xlu0 %v1655, 16
  %v1677 = vpop.permute.xlu0 %1676
  %1678 = vrot.lane.b32.xlu0 %v1656, 16
  %v1679 = vpop.permute.xlu0 %1678
  %1680 = vrot.lane.b32.xlu0 %v1657, 16
  %v1681 = vpop.permute.xlu0 %1680
  %v1682 = vrot.slane %v1667, 4
  %v1683 = vrot.slane %v1669, 4
  %v1684 = vrot.slane %v1671, 4
  %v1685 = vrot.slane %v1673, 4
  %v1686 = vrot.slane %v1675, 4
  %v1687 = vrot.slane %v1677, 4
  %v1688 = vrot.slane %v1679, 4
  %v1689 = vrot.slane %v1681, 4
  %v1690 = vsel %vm151, %v1682, %v1683
  %v1691 = vsel %vm182, %v1667, %v1690
  %v1692 = vsel %vm151, %v1684, %v1685
  %v1693 = vsel %vm182, %v1671, %v1692
  %v1694 = vsel %vm151, %v1686, %v1687
  %v1695 = vsel %vm182, %v1675, %v1694
  %v1696 = vsel %vm151, %v1688, %v1689
  %v1697 = vsel %vm182, %v1679, %v1696
  %1702 = vst [vmem:[#allocation4 + $0x40] sm:$0xff] %v1691
  %1703 = vst [vmem:[#allocation4 + $0x50] sm:$0xff] %v1693
  %1704 = vst [vmem:[#allocation4 + $0x60] sm:$0xff] %v1695
  %1705 = vst [vmem:[#allocation4 + $0x70] sm:$0xff] %v1697
  %v1706 = vld [vmem:[#allocation3] sm:$0xff]
  %v1707 = vld [vmem:[#allocation3 + $0x8] sm:$0xf]
  %v1708 = vld [vmem:[#allocation3 + $0x10] sm:$0xff]
  %v1709 = vld [vmem:[#allocation3 + $0x18] sm:$0xf]
  %v1710 = vld [vmem:[#allocation3 + $0x20] sm:$0xff]
  %v1711 = vld [vmem:[#allocation3 + $0x28] sm:$0xf]
  %v1712 = vld [vmem:[#allocation3 + $0x30] sm:$0xff]
  %v1713 = vld [vmem:[#allocation3 + $0x38] sm:$0xf]
  %1714 = vst [vmem:[#allocation1] ss:$9 sm:$0xff] %v49
  %v1715 = vld [vmem:[#allocation1] sm:$0xff]
  %v1716 = vld [vmem:[#allocation1 + $0x9] sm:$0xff]
  %v1717 = vpack.i.b16 %v1715, %v1715
  %v1719 = vperm.slane %v1717, 0
  %v1720 = vpack.i.b16 %v1716, %v1716
  %v1722 = vperm.slane %v1720, 0
  %v1723 = vunpack.c.l.bf16 %v1706
  %v1724 = vunpack.c.h.bf16 %v1706
  %v1725 = vunpack.c.l.bf16 %v1707
  %v1726 = vunpack.c.l.bf16 %v1708
  %v1727 = vunpack.c.h.bf16 %v1708
  %v1728 = vunpack.c.l.bf16 %v1709
  %v1729 = vunpack.c.l.bf16 %v1710
  %v1730 = vunpack.c.h.bf16 %v1710
  %v1731 = vunpack.c.l.bf16 %v1711
  %v1732 = vunpack.c.l.bf16 %v1712
  %v1733 = vunpack.c.h.bf16 %v1712
  %v1734 = vunpack.c.l.bf16 %v1713
  %v1735 = vunpack.c.l.bf16 %v1719
  %v1736 = vunpack.c.l.bf16 %v1722
  %1739 = vrot.lane.b32.xlu0 %v1735, 113
  %v1740 = vpop.permute.xlu0 %1739
  %1741 = vrot.lane.b32.xlu0 %v1736, 113
  %v1742 = vpop.permute.xlu0 %1741
  %v1743 = vsel %vm218, %v1740, %v1742
  %v1747 = vmul.f32 %v1723, %v1740
  %v1748 = vmul.f32 %v1724, %v1743
  %v1749 = vmul.f32 %v1725, %v1742
  %v1750 = vmul.f32 %v1726, %v1740
  %v1751 = vmul.f32 %v1727, %v1743
  %v1752 = vmul.f32 %v1728, %v1742
  %v1753 = vmul.f32 %v1729, %v1740
  %v1754 = vmul.f32 %v1730, %v1743
  %v1755 = vmul.f32 %v1731, %v1742
  %v1756 = vmul.f32 %v1732, %v1740
  %v1757 = vmul.f32 %v1733, %v1743
  %v1758 = vmul.f32 %v1734, %v1742
  %v1759 = vpack.c.bf16 %v1748, %v1747
  %v1760 = vpack.c.bf16 %v1749, %v1749
  %v1761 = vpack.c.bf16 %v1751, %v1750
  %v1762 = vpack.c.bf16 %v1752, %v1752
  %v1763 = vpack.c.bf16 %v1754, %v1753
  %v1764 = vpack.c.bf16 %v1755, %v1755
  %v1765 = vpack.c.bf16 %v1757, %v1756
  %v1766 = vpack.c.bf16 %v1758, %v1758
  %1775 = vrot.lane.b32.xlu0 %v1759, 15
  %v1776 = vpop.permute.xlu0 %1775
  %1777 = vrot.lane.b32.xlu0 %v1760, 15
  %v1778 = vpop.permute.xlu0 %1777
  %1779 = vrot.lane.b32.xlu0 %v1761, 15
  %v1780 = vpop.permute.xlu0 %1779
  %1781 = vrot.lane.b32.xlu0 %v1762, 15
  %v1782 = vpop.permute.xlu0 %1781
  %1783 = vrot.lane.b32.xlu0 %v1763, 15
  %v1784 = vpop.permute.xlu0 %1783
  %1785 = vrot.lane.b32.xlu0 %v1764, 15
  %v1786 = vpop.permute.xlu0 %1785
  %1787 = vrot.lane.b32.xlu0 %v1765, 15
  %v1788 = vpop.permute.xlu0 %1787
  %1789 = vrot.lane.b32.xlu0 %v1766, 15
  %v1790 = vpop.permute.xlu0 %1789
  %v1791 = vrot.slane %v1776, 4
  %v1792 = vrot.slane %v1778, 4
  %v1793 = vrot.slane %v1780, 4
  %v1794 = vrot.slane %v1782, 4
  %v1795 = vrot.slane %v1784, 4
  %v1796 = vrot.slane %v1786, 4
  %v1797 = vrot.slane %v1788, 4
  %v1798 = vrot.slane %v1790, 4
  %v1799 = vsel %vm151, %v1791, %v1792
  %v1800 = vsel %vm250, %v1776, %v1799
  %v1801 = vsel %vm151, %v1793, %v1794
  %v1802 = vsel %vm250, %v1780, %v1801
  %v1803 = vsel %vm151, %v1795, %v1796
  %v1804 = vsel %vm250, %v1784, %v1803
  %v1805 = vsel %vm151, %v1797, %v1798
  %v1806 = vsel %vm250, %v1788, %v1805
  %1811 = vst [vmem:[#allocation4 + $0x80] sm:$0xff] %v1800
  %1812 = vst [vmem:[#allocation4 + $0x90] sm:$0xff] %v1802
  %1813 = vst [vmem:[#allocation4 + $0xa0] sm:$0xff] %v1804
  %1814 = vst [vmem:[#allocation4 + $0xb0] sm:$0xff] %v1806
  %v1815 = vld [vmem:[#allocation3] sm:$0xff]
  %v1816 = vld [vmem:[#allocation3 + $0x8] sm:$0xf]
  %v1817 = vld [vmem:[#allocation3 + $0x10] sm:$0xff]
  %v1818 = vld [vmem:[#allocation3 + $0x18] sm:$0xf]
  %v1819 = vld [vmem:[#allocation3 + $0x20] sm:$0xff]
  %v1820 = vld [vmem:[#allocation3 + $0x28] sm:$0xf]
  %v1821 = vld [vmem:[#allocation3 + $0x30] sm:$0xff]
  %v1822 = vld [vmem:[#allocation3 + $0x38] sm:$0xf]
  %v1823 = vunpack.c.l.bf16 %v1815
  %v1824 = vunpack.c.h.bf16 %v1815
  %v1825 = vunpack.c.l.bf16 %v1816
  %v1826 = vunpack.c.l.bf16 %v1817
  %v1827 = vunpack.c.h.bf16 %v1817
  %v1828 = vunpack.c.l.bf16 %v1818
  %v1829 = vunpack.c.l.bf16 %v1819
  %v1830 = vunpack.c.h.bf16 %v1819
  %v1831 = vunpack.c.l.bf16 %v1820
  %v1832 = vunpack.c.l.bf16 %v1821
  %v1833 = vunpack.c.h.bf16 %v1821
  %v1834 = vunpack.c.l.bf16 %v1822
  %1835 = vrot.lane.b32.xlu0 %v1570, 127
  %v1836 = vpop.permute.xlu0 %1835
  %1837 = vrot.lane.b32.xlu0 %v1571, 127
  %v1838 = vpop.permute.xlu0 %1837
  %v1839 = vsel %vm272, %v1836, %v1838
  %v1843 = vmul.f32 %v1823, %v1836
  %v1844 = vmul.f32 %v1824, %v1839
  %v1845 = vmul.f32 %v1825, %v1838
  %v1846 = vmul.f32 %v1826, %v1836
  %v1847 = vmul.f32 %v1827, %v1839
  %v1848 = vmul.f32 %v1828, %v1838
  %v1849 = vmul.f32 %v1829, %v1836
  %v1850 = vmul.f32 %v1830, %v1839
  %v1851 = vmul.f32 %v1831, %v1838
  %v1852 = vmul.f32 %v1832, %v1836
  %v1853 = vmul.f32 %v1833, %v1839
  %v1854 = vmul.f32 %v1834, %v1838
  %v1855 = vpack.c.bf16 %v1844, %v1843
  %v1856 = vpack.c.bf16 %v1845, %v1845
  %v1857 = vpack.c.bf16 %v1847, %v1846
  %v1858 = vpack.c.bf16 %v1848, %v1848
  %v1859 = vpack.c.bf16 %v1850, %v1849
  %v1860 = vpack.c.bf16 %v1851, %v1851
  %v1861 = vpack.c.bf16 %v1853, %v1852
  %v1862 = vpack.c.bf16 %v1854, %v1854
  %1871 = vrot.lane.b32.xlu0 %v1855, 1
  %v1872 = vpop.permute.xlu0 %1871
  %1873 = vrot.lane.b32.xlu0 %v1856, 1
  %v1874 = vpop.permute.xlu0 %1873
  %1875 = vrot.lane.b32.xlu0 %v1857, 1
  %v1876 = vpop.permute.xlu0 %1875
  %1877 = vrot.lane.b32.xlu0 %v1858, 1
  %v1878 = vpop.permute.xlu0 %1877
  %1879 = vrot.lane.b32.xlu0 %v1859, 1
  %v1880 = vpop.permute.xlu0 %1879
  %1881 = vrot.lane.b32.xlu0 %v1860, 1
  %v1882 = vpop.permute.xlu0 %1881
  %1883 = vrot.lane.b32.xlu0 %v1861, 1
  %v1884 = vpop.permute.xlu0 %1883
  %1885 = vrot.lane.b32.xlu0 %v1862, 1
  %v1886 = vpop.permute.xlu0 %1885
  %v1887 = vrot.slane %v1872, 4
  %v1888 = vrot.slane %v1874, 4
  %v1889 = vrot.slane %v1876, 4
  %v1890 = vrot.slane %v1878, 4
  %v1891 = vrot.slane %v1880, 4
  %v1892 = vrot.slane %v1882, 4
  %v1893 = vrot.slane %v1884, 4
  %v1894 = vrot.slane %v1886, 4
  %v1895 = vsel %vm151, %v1887, %v1888
  %v1896 = vsel %vm304, %v1872, %v1895
  %v1897 = vsel %vm151, %v1889, %v1890
  %v1898 = vsel %vm304, %v1876, %v1897
  %v1899 = vsel %vm151, %v1891, %v1892
  %v1900 = vsel %vm304, %v1880, %v1899
  %v1901 = vsel %vm151, %v1893, %v1894
  %v1902 = vsel %vm304, %v1884, %v1901
  %1907 = vst [vmem:[#allocation4 + $0xc0] sm:$0xff] %v1896
  %1908 = vst [vmem:[#allocation4 + $0xd0] sm:$0xff] %v1898
  %1909 = vst [vmem:[#allocation4 + $0xe0] sm:$0xff] %v1900
  %1910 = vst [vmem:[#allocation4 + $0xf0] sm:$0xff] %v1902
  %v1911 = vld [vmem:[#allocation3 + $0x4] sm:$0xff]
  %v1912 = vld [vmem:[#allocation3 + $0x14] sm:$0xff]
  %v1913 = vld [vmem:[#allocation3 + $0x24] sm:$0xff]
  %v1914 = vld [vmem:[#allocation3 + $0x34] sm:$0xff]
  %1915 = vst [vmem:[#allocation4 + $0x100] sm:$0xff] %v1911
  %1916 = vst [vmem:[#allocation4 + $0x110] sm:$0xff] %v1912
  %1917 = vst [vmem:[#allocation4 + $0x120] sm:$0xff] %v1913
  %1918 = vst [vmem:[#allocation4 + $0x130] sm:$0xff] %v1914
  %v1919 = vld [vmem:[#allocation3 + $0x4] sm:$0xff]
  %v1920 = vld [vmem:[#allocation3 + $0xc] sm:$0xf]
  %v1921 = vld [vmem:[#allocation3 + $0x14] sm:$0xff]
  %v1922 = vld [vmem:[#allocation3 + $0x1c] sm:$0xf]
  %v1923 = vld [vmem:[#allocation3 + $0x24] sm:$0xff]
  %v1924 = vld [vmem:[#allocation3 + $0x2c] sm:$0xf]
  %v1925 = vld [vmem:[#allocation3 + $0x34] sm:$0xff]
  %v1926 = vld [vmem:[#allocation3 + $0x3c] sm:$0xf]
  %v1927 = vunpack.c.l.bf16 %v1919
  %v1928 = vunpack.c.h.bf16 %v1919
  %v1929 = vunpack.c.l.bf16 %v1920
  %v1930 = vunpack.c.l.bf16 %v1921
  %v1931 = vunpack.c.h.bf16 %v1921
  %v1932 = vunpack.c.l.bf16 %v1922
  %v1933 = vunpack.c.l.bf16 %v1923
  %v1934 = vunpack.c.h.bf16 %v1923
  %v1935 = vunpack.c.l.bf16 %v1924
  %v1936 = vunpack.c.l.bf16 %v1925
  %v1937 = vunpack.c.h.bf16 %v1925
  %v1938 = vunpack.c.l.bf16 %v1926
  %1939 = vrot.lane.b32.xlu0 %v1735, 1
  %v1940 = vpop.permute.xlu0 %1939
  %1941 = vrot.lane.b32.xlu0 %v1736, 1
  %v1942 = vpop.permute.xlu0 %1941
  %v1943 = vsel %vm330, %v1940, %v1942
  %v1947 = vmul.f32 %v1927, %v1940
  %v1948 = vmul.f32 %v1928, %v1943
  %v1949 = vmul.f32 %v1929, %v1942
  %v1950 = vmul.f32 %v1930, %v1940
  %v1951 = vmul.f32 %v1931, %v1943
  %v1952 = vmul.f32 %v1932, %v1942
  %v1953 = vmul.f32 %v1933, %v1940
  %v1954 = vmul.f32 %v1934, %v1943
  %v1955 = vmul.f32 %v1935, %v1942
  %v1956 = vmul.f32 %v1936, %v1940
  %v1957 = vmul.f32 %v1937, %v1943
  %v1958 = vmul.f32 %v1938, %v1942
  %v1959 = vpack.c.bf16 %v1948, %v1947
  %v1960 = vpack.c.bf16 %v1949, %v1949
  %v1961 = vpack.c.bf16 %v1951, %v1950
  %v1962 = vpack.c.bf16 %v1952, %v1952
  %v1963 = vpack.c.bf16 %v1954, %v1953
  %v1964 = vpack.c.bf16 %v1955, %v1955
  %v1965 = vpack.c.bf16 %v1957, %v1956
  %v1966 = vpack.c.bf16 %v1958, %v1958
  %1975 = vrot.lane.b32.xlu0 %v1959, 127
  %v1976 = vpop.permute.xlu0 %1975
  %1977 = vrot.lane.b32.xlu0 %v1960, 127
  %v1978 = vpop.permute.xlu0 %1977
  %1979 = vrot.lane.b32.xlu0 %v1961, 127
  %v1980 = vpop.permute.xlu0 %1979
  %1981 = vrot.lane.b32.xlu0 %v1962, 127
  %v1982 = vpop.permute.xlu0 %1981
  %1983 = vrot.lane.b32.xlu0 %v1963, 127
  %v1984 = vpop.permute.xlu0 %1983
  %1985 = vrot.lane.b32.xlu0 %v1964, 127
  %v1986 = vpop.permute.xlu0 %1985
  %1987 = vrot.lane.b32.xlu0 %v1965, 127
  %v1988 = vpop.permute.xlu0 %1987
  %1989 = vrot.lane.b32.xlu0 %v1966, 127
  %v1990 = vpop.permute.xlu0 %1989
  %v1991 = vrot.slane %v1976, 4
  %v1992 = vrot.slane %v1978, 4
  %v1993 = vrot.slane %v1980, 4
  %v1994 = vrot.slane %v1982, 4
  %v1995 = vrot.slane %v1984, 4
  %v1996 = vrot.slane %v1986, 4
  %v1997 = vrot.slane %v1988, 4
  %v1998 = vrot.slane %v1990, 4
  %v1999 = vsel %vm151, %v1991, %v1992
  %v2000 = vsel %vm362, %v1976, %v1999
  %v2001 = vsel %vm151, %v1993, %v1994
  %v2002 = vsel %vm362, %v1980, %v2001
  %v2003 = vsel %vm151, %v1995, %v1996
  %v2004 = vsel %vm362, %v1984, %v2003
  %v2005 = vsel %vm151, %v1997, %v1998
  %v2006 = vsel %vm362, %v1988, %v2005
  %2011 = vst [vmem:[#allocation4 + $0x140] sm:$0xff] %v2000
  %2012 = vst [vmem:[#allocation4 + $0x150] sm:$0xff] %v2002
  %2013 = vst [vmem:[#allocation4 + $0x160] sm:$0xff] %v2004
  %2014 = vst [vmem:[#allocation4 + $0x170] sm:$0xff] %v2006
  %v2015 = vld [vmem:[#allocation3 + $0x4] sm:$0xff]
  %v2016 = vld [vmem:[#allocation3 + $0xc] sm:$0xf]
  %v2017 = vld [vmem:[#allocation3 + $0x14] sm:$0xff]
  %v2018 = vld [vmem:[#allocation3 + $0x1c] sm:$0xf]
  %v2019 = vld [vmem:[#allocation3 + $0x24] sm:$0xff]
  %v2020 = vld [vmem:[#allocation3 + $0x2c] sm:$0xf]
  %v2021 = vld [vmem:[#allocation3 + $0x34] sm:$0xff]
  %v2022 = vld [vmem:[#allocation3 + $0x3c] sm:$0xf]
  %v2023 = vunpack.c.l.bf16 %v2015
  %v2024 = vunpack.c.h.bf16 %v2015
  %v2025 = vunpack.c.l.bf16 %v2016
  %v2026 = vunpack.c.l.bf16 %v2017
  %v2027 = vunpack.c.h.bf16 %v2017
  %v2028 = vunpack.c.l.bf16 %v2018
  %v2029 = vunpack.c.l.bf16 %v2019
  %v2030 = vunpack.c.h.bf16 %v2019
  %v2031 = vunpack.c.l.bf16 %v2020
  %v2032 = vunpack.c.l.bf16 %v2021
  %v2033 = vunpack.c.h.bf16 %v2021
  %v2034 = vunpack.c.l.bf16 %v2022
  %2035 = vrot.lane.b32.xlu0 %v1570, 15
  %v2036 = vpop.permute.xlu0 %2035
  %2037 = vrot.lane.b32.xlu0 %v1571, 15
  %v2038 = vpop.permute.xlu0 %2037
  %v2039 = vsel %vm384, %v2036, %v2038
  %v2043 = vmul.f32 %v2023, %v2036
  %v2044 = vmul.f32 %v2024, %v2039
  %v2045 = vmul.f32 %v2025, %v2038
  %v2046 = vmul.f32 %v2026, %v2036
  %v2047 = vmul.f32 %v2027, %v2039
  %v2048 = vmul.f32 %v2028, %v2038
  %v2049 = vmul.f32 %v2029, %v2036
  %v2050 = vmul.f32 %v2030, %v2039
  %v2051 = vmul.f32 %v2031, %v2038
  %v2052 = vmul.f32 %v2032, %v2036
  %v2053 = vmul.f32 %v2033, %v2039
  %v2054 = vmul.f32 %v2034, %v2038
  %v2055 = vpack.c.bf16 %v2044, %v2043
  %v2056 = vpack.c.bf16 %v2045, %v2045
  %v2057 = vpack.c.bf16 %v2047, %v2046
  %v2058 = vpack.c.bf16 %v2048, %v2048
  %v2059 = vpack.c.bf16 %v2050, %v2049
  %v2060 = vpack.c.bf16 %v2051, %v2051
  %v2061 = vpack.c.bf16 %v2053, %v2052
  %v2062 = vpack.c.bf16 %v2054, %v2054
  %2071 = vrot.lane.b32.xlu0 %v2055, 113
  %v2072 = vpop.permute.xlu0 %2071
  %2073 = vrot.lane.b32.xlu0 %v2056, 113
  %v2074 = vpop.permute.xlu0 %2073
  %2075 = vrot.lane.b32.xlu0 %v2057, 113
  %v2076 = vpop.permute.xlu0 %2075
  %2077 = vrot.lane.b32.xlu0 %v2058, 113
  %v2078 = vpop.permute.xlu0 %2077
  %2079 = vrot.lane.b32.xlu0 %v2059, 113
  %v2080 = vpop.permute.xlu0 %2079
  %2081 = vrot.lane.b32.xlu0 %v2060, 113
  %v2082 = vpop.permute.xlu0 %2081
  %2083 = vrot.lane.b32.xlu0 %v2061, 113
  %v2084 = vpop.permute.xlu0 %2083
  %2085 = vrot.lane.b32.xlu0 %v2062, 113
  %v2086 = vpop.permute.xlu0 %2085
  %v2087 = vrot.slane %v2072, 4
  %v2088 = vrot.slane %v2074, 4
  %v2089 = vrot.slane %v2076, 4
  %v2090 = vrot.slane %v2078, 4
  %v2091 = vrot.slane %v2080, 4
  %v2092 = vrot.slane %v2082, 4
  %v2093 = vrot.slane %v2084, 4
  %v2094 = vrot.slane %v2086, 4
  %v2095 = vsel %vm151, %v2087, %v2088
  %v2096 = vsel %vm416, %v2072, %v2095
  %v2097 = vsel %vm151, %v2089, %v2090
  %v2098 = vsel %vm416, %v2076, %v2097
  %v2099 = vsel %vm151, %v2091, %v2092
  %v2100 = vsel %vm416, %v2080, %v2099
  %v2101 = vsel %vm151, %v2093, %v2094
  %v2102 = vsel %vm416, %v2084, %v2101
  %2107 = vst [vmem:[#allocation4 + $0x180] sm:$0xff] %v2096
  %2108 = vst [vmem:[#allocation4 + $0x190] sm:$0xff] %v2098
  %2109 = vst [vmem:[#allocation4 + $0x1a0] sm:$0xff] %v2100
  %2110 = vst [vmem:[#allocation4 + $0x1b0] sm:$0xff] %v2102
  %v2111 = vld [vmem:[#allocation3 + $0x4] sm:$0xff]
  %v2112 = vld [vmem:[#allocation3 + $0xc] sm:$0xf]
  %v2113 = vld [vmem:[#allocation3 + $0x14] sm:$0xff]
  %v2114 = vld [vmem:[#allocation3 + $0x1c] sm:$0xf]
  %v2115 = vld [vmem:[#allocation3 + $0x24] sm:$0xff]
  %v2116 = vld [vmem:[#allocation3 + $0x2c] sm:$0xf]
  %v2117 = vld [vmem:[#allocation3 + $0x34] sm:$0xff]
  %v2118 = vld [vmem:[#allocation3 + $0x3c] sm:$0xf]
  %2127 = vrot.lane.b32.xlu0 %v2111, 112
  %v2128 = vpop.permute.xlu0 %2127
  %2129 = vrot.lane.b32.xlu0 %v2112, 112
  %v2130 = vpop.permute.xlu0 %2129
  %2131 = vrot.lane.b32.xlu0 %v2113, 112
  %v2132 = vpop.permute.xlu0 %2131
  %2133 = vrot.lane.b32.xlu0 %v2114, 112
  %v2134 = vpop.permute.xlu0 %2133
  %2135 = vrot.lane.b32.xlu0 %v2115, 112
  %v2136 = vpop.permute.xlu0 %2135
  %2137 = vrot.lane.b32.xlu0 %v2116, 112
  %v2138 = vpop.permute.xlu0 %2137
  %2139 = vrot.lane.b32.xlu0 %v2117, 112
  %v2140 = vpop.permute.xlu0 %2139
  %2141 = vrot.lane.b32.xlu0 %v2118, 112
  %v2142 = vpop.permute.xlu0 %2141
  %v2143 = vrot.slane %v2128, 4
  %v2144 = vrot.slane %v2130, 4
  %v2145 = vrot.slane %v2132, 4
  %v2146 = vrot.slane %v2134, 4
  %v2147 = vrot.slane %v2136, 4
  %v2148 = vrot.slane %v2138, 4
  %v2149 = vrot.slane %v2140, 4
  %v2150 = vrot.slane %v2142, 4
  %v2151 = vsel %vm151, %v2143, %v2144
  %v2152 = vsel %vm445, %v2128, %v2151
  %v2153 = vsel %vm151, %v2145, %v2146
  %v2154 = vsel %vm445, %v2132, %v2153
  %v2155 = vsel %vm151, %v2147, %v2148
  %v2156 = vsel %vm445, %v2136, %v2155
  %v2157 = vsel %vm151, %v2149, %v2150
  %v2158 = vsel %vm445, %v2140, %v2157
  %2163 = vst [vmem:[#allocation4 + $0x1c0] sm:$0xff] %v2152
  %2164 = vst [vmem:[#allocation4 + $0x1d0] sm:$0xff] %v2154
  %2165 = vst [vmem:[#allocation4 + $0x1e0] sm:$0xff] %v2156
  %2166 = vst [vmem:[#allocation4 + $0x1f0] sm:$0xff] %v2158
  %v2167 = vld [vmem:[#allocation3 + $0x4] sm:$0xff]
  %v2168 = vld [vmem:[#allocation3 + $0xc] sm:$0xf]
  %v2169 = vld [vmem:[#allocation3 + $0x14] sm:$0xff]
  %v2170 = vld [vmem:[#allocation3 + $0x1c] sm:$0xf]
  %v2171 = vld [vmem:[#allocation3 + $0x24] sm:$0xff]
  %v2172 = vld [vmem:[#allocation3 + $0x2c] sm:$0xf]
  %v2173 = vld [vmem:[#allocation3 + $0x34] sm:$0xff]
  %v2174 = vld [vmem:[#allocation3 + $0x3c] sm:$0xf]
  %v2175 = vunpack.c.l.bf16 %v2167
  %v2176 = vunpack.c.h.bf16 %v2167
  %v2177 = vunpack.c.l.bf16 %v2168
  %v2178 = vunpack.c.l.bf16 %v2169
  %v2179 = vunpack.c.h.bf16 %v2169
  %v2180 = vunpack.c.l.bf16 %v2170
  %v2181 = vunpack.c.l.bf16 %v2171
  %v2182 = vunpack.c.h.bf16 %v2171
  %v2183 = vunpack.c.l.bf16 %v2172
  %v2184 = vunpack.c.l.bf16 %v2173
  %v2185 = vunpack.c.h.bf16 %v2173
  %v2186 = vunpack.c.l.bf16 %v2174
  %2187 = vrot.lane.b32.xlu0 %v1735, 17
  %v2188 = vpop.permute.xlu0 %2187
  %2189 = vrot.lane.b32.xlu0 %v1736, 17
  %v2190 = vpop.permute.xlu0 %2189
  %v2191 = vsel %vm467, %v2188, %v2190
  %v2195 = vmul.f32 %v2175, %v2188
  %v2196 = vmul.f32 %v2176, %v2191
  %v2197 = vmul.f32 %v2177, %v2190
  %v2198 = vmul.f32 %v2178, %v2188
  %v2199 = vmul.f32 %v2179, %v2191
  %v2200 = vmul.f32 %v2180, %v2190
  %v2201 = vmul.f32 %v2181, %v2188
  %v2202 = vmul.f32 %v2182, %v2191
  %v2203 = vmul.f32 %v2183, %v2190
  %v2204 = vmul.f32 %v2184, %v2188
  %v2205 = vmul.f32 %v2185, %v2191
  %v2206 = vmul.f32 %v2186, %v2190
  %v2207 = vpack.c.bf16 %v2196, %v2195
  %v2208 = vpack.c.bf16 %v2197, %v2197
  %v2209 = vpack.c.bf16 %v2199, %v2198
  %v2210 = vpack.c.bf16 %v2200, %v2200
  %v2211 = vpack.c.bf16 %v2202, %v2201
  %v2212 = vpack.c.bf16 %v2203, %v2203
  %v2213 = vpack.c.bf16 %v2205, %v2204
  %v2214 = vpack.c.bf16 %v2206, %v2206
  %2223 = vrot.lane.b32.xlu0 %v2207, 111
  %v2224 = vpop.permute.xlu0 %2223
  %2225 = vrot.lane.b32.xlu0 %v2208, 111
  %v2226 = vpop.permute.xlu0 %2225
  %2227 = vrot.lane.b32.xlu0 %v2209, 111
  %v2228 = vpop.permute.xlu0 %2227
  %2229 = vrot.lane.b32.xlu0 %v2210, 111
  %v2230 = vpop.permute.xlu0 %2229
  %2231 = vrot.lane.b32.xlu0 %v2211, 111
  %v2232 = vpop.permute.xlu0 %2231
  %2233 = vrot.lane.b32.xlu0 %v2212, 111
  %v2234 = vpop.permute.xlu0 %2233
  %2235 = vrot.lane.b32.xlu0 %v2213, 111
  %v2236 = vpop.permute.xlu0 %2235
  %2237 = vrot.lane.b32.xlu0 %v2214, 111
  %v2238 = vpop.permute.xlu0 %2237
  %v2239 = vrot.slane %v2224, 4
  %v2240 = vrot.slane %v2226, 4
  %v2241 = vrot.slane %v2228, 4
  %v2242 = vrot.slane %v2230, 4
  %v2243 = vrot.slane %v2232, 4
  %v2244 = vrot.slane %v2234, 4
  %v2245 = vrot.slane %v2236, 4
  %v2246 = vrot.slane %v2238, 4
  %v2247 = vsel %vm151, %v2239, %v2240
  %v2248 = vsel %vm499, %v2224, %v2247
  %v2249 = vsel %vm151, %v2241, %v2242
  %v2250 = vsel %vm499, %v2228, %v2249
  %v2251 = vsel %vm151, %v2243, %v2244
  %v2252 = vsel %vm499, %v2232, %v2251
  %v2253 = vsel %vm151, %v2245, %v2246
  %v2254 = vsel %vm499, %v2236, %v2253
  %2259 = vst [vmem:[#allocation4 + $0x200] sm:$0xff] %v2248
  %2260 = vst [vmem:[#allocation4 + $0x210] sm:$0xff] %v2250
  %2261 = vst [vmem:[#allocation4 + $0x220] sm:$0xff] %v2252
  %2262 = vst [vmem:[#allocation4 + $0x230] sm:$0xff] %v2254
  %v2263 = vld [vmem:[%s1536] sm:$0xff]
  %v2264 = vld [vmem:[%s1536 + $0x8] sm:$0xf]
  %v2265 = vld [vmem:[%s1536 + $0x10] sm:$0xff]
  %v2266 = vld [vmem:[%s1536 + $0x18] sm:$0xf]
  %v2267 = vld [vmem:[%s1536 + $0x20] sm:$0xff]
  %v2268 = vld [vmem:[%s1536 + $0x28] sm:$0xf]
  %v2269 = vld [vmem:[%s1536 + $0x30] sm:$0xff]
  %v2270 = vld [vmem:[%s1536 + $0x38] sm:$0xf]
  %v2271 = vunpack.c.l.bf16 %v2263
  %v2272 = vunpack.c.h.bf16 %v2263
  %v2273 = vunpack.c.l.bf16 %v2264
  %v2274 = vunpack.c.l.bf16 %v2265
  %v2275 = vunpack.c.h.bf16 %v2265
  %v2276 = vunpack.c.l.bf16 %v2266
  %v2277 = vunpack.c.l.bf16 %v2267
  %v2278 = vunpack.c.h.bf16 %v2267
  %v2279 = vunpack.c.l.bf16 %v2268
  %v2280 = vunpack.c.l.bf16 %v2269
  %v2281 = vunpack.c.h.bf16 %v2269
  %v2282 = vunpack.c.l.bf16 %v2270
  %v2283 = vmul.f32 %v2271, %v1575
  %v2284 = vmul.f32 %v2272, %v1578
  %v2285 = vmul.f32 %v2273, %v1577
  %v2286 = vmul.f32 %v2274, %v1575
  %v2287 = vmul.f32 %v2275, %v1578
  %v2288 = vmul.f32 %v2276, %v1577
  %v2289 = vmul.f32 %v2277, %v1575
  %v2290 = vmul.f32 %v2278, %v1578
  %v2291 = vmul.f32 %v2279, %v1577
  %v2292 = vmul.f32 %v2280, %v1575
  %v2293 = vmul.f32 %v2281, %v1578
  %v2294 = vmul.f32 %v2282, %v1577
  %v2295 = vpack.c.bf16 %v2284, %v2283
  %v2296 = vpack.c.bf16 %v2285, %v2285
  %v2297 = vpack.c.bf16 %v2287, %v2286
  %v2298 = vpack.c.bf16 %v2288, %v2288
  %v2299 = vpack.c.bf16 %v2290, %v2289
  %v2300 = vpack.c.bf16 %v2291, %v2291
  %v2301 = vpack.c.bf16 %v2293, %v2292
  %v2302 = vpack.c.bf16 %v2294, %v2294
  %2311 = vrot.lane.b32.xlu0 %v2295, 17
  %v2312 = vpop.permute.xlu0 %2311
  %2313 = vrot.lane.b32.xlu0 %v2296, 17
  %v2314 = vpop.permute.xlu0 %2313
  %2315 = vrot.lane.b32.xlu0 %v2297, 17
  %v2316 = vpop.permute.xlu0 %2315
  %2317 = vrot.lane.b32.xlu0 %v2298, 17
  %v2318 = vpop.permute.xlu0 %2317
  %2319 = vrot.lane.b32.xlu0 %v2299, 17
  %v2320 = vpop.permute.xlu0 %2319
  %2321 = vrot.lane.b32.xlu0 %v2300, 17
  %v2322 = vpop.permute.xlu0 %2321
  %2323 = vrot.lane.b32.xlu0 %v2301, 17
  %v2324 = vpop.permute.xlu0 %2323
  %2325 = vrot.lane.b32.xlu0 %v2302, 17
  %v2326 = vpop.permute.xlu0 %2325
  %v2327 = vrot.slane %v2312, 4
  %v2328 = vrot.slane %v2314, 4
  %v2329 = vrot.slane %v2316, 4
  %v2330 = vrot.slane %v2318, 4
  %v2331 = vrot.slane %v2320, 4
  %v2332 = vrot.slane %v2322, 4
  %v2333 = vrot.slane %v2324, 4
  %v2334 = vrot.slane %v2326, 4
  %v2335 = vsel %vm151, %v2327, %v2328
  %v2336 = vsel %vm153, %v2312, %v2335
  %v2337 = vsel %vm151, %v2329, %v2330
  %v2338 = vsel %vm153, %v2316, %v2337
  %v2339 = vsel %vm151, %v2331, %v2332
  %v2340 = vsel %vm153, %v2320, %v2339
  %v2341 = vsel %vm151, %v2333, %v2334
  %v2342 = vsel %vm153, %v2324, %v2341
  %2347 = vst [vmem:[#allocation4 + $0x8] sm:$0xff] %v2336
  %2348 = vst [vmem:[#allocation4 + $0x18] sm:$0xff] %v2338
  %2349 = vst [vmem:[#allocation4 + $0x28] sm:$0xff] %v2340
  %2350 = vst [vmem:[#allocation4 + $0x38] sm:$0xff] %v2342
  %v2351 = vld [vmem:[%s1536] sm:$0xff]
  %v2352 = vld [vmem:[%s1536 + $0x8] sm:$0xf]
  %v2353 = vld [vmem:[%s1536 + $0x10] sm:$0xff]
  %v2354 = vld [vmem:[%s1536 + $0x18] sm:$0xf]
  %v2355 = vld [vmem:[%s1536 + $0x20] sm:$0xff]
  %v2356 = vld [vmem:[%s1536 + $0x28] sm:$0xf]
  %v2357 = vld [vmem:[%s1536 + $0x30] sm:$0xff]
  %v2358 = vld [vmem:[%s1536 + $0x38] sm:$0xf]
  %2367 = vrot.lane.b32.xlu0 %v2351, 16
  %v2368 = vpop.permute.xlu0 %2367
  %2369 = vrot.lane.b32.xlu0 %v2352, 16
  %v2370 = vpop.permute.xlu0 %2369
  %2371 = vrot.lane.b32.xlu0 %v2353, 16
  %v2372 = vpop.permute.xlu0 %2371
  %2373 = vrot.lane.b32.xlu0 %v2354, 16
  %v2374 = vpop.permute.xlu0 %2373
  %2375 = vrot.lane.b32.xlu0 %v2355, 16
  %v2376 = vpop.permute.xlu0 %2375
  %2377 = vrot.lane.b32.xlu0 %v2356, 16
  %v2378 = vpop.permute.xlu0 %2377
  %2379 = vrot.lane.b32.xlu0 %v2357, 16
  %v2380 = vpop.permute.xlu0 %2379
  %2381 = vrot.lane.b32.xlu0 %v2358, 16
  %v2382 = vpop.permute.xlu0 %2381
  %v2383 = vrot.slane %v2368, 4
  %v2384 = vrot.slane %v2370, 4
  %v2385 = vrot.slane %v2372, 4
  %v2386 = vrot.slane %v2374, 4
  %v2387 = vrot.slane %v2376, 4
  %v2388 = vrot.slane %v2378, 4
  %v2389 = vrot.slane %v2380, 4
  %v2390 = vrot.slane %v2382, 4
  %v2391 = vsel %vm151, %v2383, %v2384
  %v2392 = vsel %vm182, %v2368, %v2391
  %v2393 = vsel %vm151, %v2385, %v2386
  %v2394 = vsel %vm182, %v2372, %v2393
  %v2395 = vsel %vm151, %v2387, %v2388
  %v2396 = vsel %vm182, %v2376, %v2395
  %v2397 = vsel %vm151, %v2389, %v2390
  %v2398 = vsel %vm182, %v2380, %v2397
  %2403 = vst [vmem:[#allocation4 + $0x48] sm:$0xff] %v2392
  %2404 = vst [vmem:[#allocation4 + $0x58] sm:$0xff] %v2394
  %2405 = vst [vmem:[#allocation4 + $0x68] sm:$0xff] %v2396
  %2406 = vst [vmem:[#allocation4 + $0x78] sm:$0xff] %v2398
  %v2407 = vld [vmem:[%s1536] sm:$0xff]
  %v2408 = vld [vmem:[%s1536 + $0x8] sm:$0xf]
  %v2409 = vld [vmem:[%s1536 + $0x10] sm:$0xff]
  %v2410 = vld [vmem:[%s1536 + $0x18] sm:$0xf]
  %v2411 = vld [vmem:[%s1536 + $0x20] sm:$0xff]
  %v2412 = vld [vmem:[%s1536 + $0x28] sm:$0xf]
  %v2413 = vld [vmem:[%s1536 + $0x30] sm:$0xff]
  %v2414 = vld [vmem:[%s1536 + $0x38] sm:$0xf]
  %v2415 = vunpack.c.l.bf16 %v2407
  %v2416 = vunpack.c.h.bf16 %v2407
  %v2417 = vunpack.c.l.bf16 %v2408
  %v2418 = vunpack.c.l.bf16 %v2409
  %v2419 = vunpack.c.h.bf16 %v2409
  %v2420 = vunpack.c.l.bf16 %v2410
  %v2421 = vunpack.c.l.bf16 %v2411
  %v2422 = vunpack.c.h.bf16 %v2411
  %v2423 = vunpack.c.l.bf16 %v2412
  %v2424 = vunpack.c.l.bf16 %v2413
  %v2425 = vunpack.c.h.bf16 %v2413
  %v2426 = vunpack.c.l.bf16 %v2414
  %v2427 = vmul.f32 %v2415, %v1740
  %v2428 = vmul.f32 %v2416, %v1743
  %v2429 = vmul.f32 %v2417, %v1742
  %v2430 = vmul.f32 %v2418, %v1740
  %v2431 = vmul.f32 %v2419, %v1743
  %v2432 = vmul.f32 %v2420, %v1742
  %v2433 = vmul.f32 %v2421, %v1740
  %v2434 = vmul.f32 %v2422, %v1743
  %v2435 = vmul.f32 %v2423, %v1742
  %v2436 = vmul.f32 %v2424, %v1740
  %v2437 = vmul.f32 %v2425, %v1743
  %v2438 = vmul.f32 %v2426, %v1742
  %v2439 = vpack.c.bf16 %v2428, %v2427
  %v2440 = vpack.c.bf16 %v2429, %v2429
  %v2441 = vpack.c.bf16 %v2431, %v2430
  %v2442 = vpack.c.bf16 %v2432, %v2432
  %v2443 = vpack.c.bf16 %v2434, %v2433
  %v2444 = vpack.c.bf16 %v2435, %v2435
  %v2445 = vpack.c.bf16 %v2437, %v2436
  %v2446 = vpack.c.bf16 %v2438, %v2438
  %2455 = vrot.lane.b32.xlu0 %v2439, 15
  %v2456 = vpop.permute.xlu0 %2455
  %2457 = vrot.lane.b32.xlu0 %v2440, 15
  %v2458 = vpop.permute.xlu0 %2457
  %2459 = vrot.lane.b32.xlu0 %v2441, 15
  %v2460 = vpop.permute.xlu0 %2459
  %2461 = vrot.lane.b32.xlu0 %v2442, 15
  %v2462 = vpop.permute.xlu0 %2461
  %2463 = vrot.lane.b32.xlu0 %v2443, 15
  %v2464 = vpop.permute.xlu0 %2463
  %2465 = vrot.lane.b32.xlu0 %v2444, 15
  %v2466 = vpop.permute.xlu0 %2465
  %2467 = vrot.lane.b32.xlu0 %v2445, 15
  %v2468 = vpop.permute.xlu0 %2467
  %2469 = vrot.lane.b32.xlu0 %v2446, 15
  %v2470 = vpop.permute.xlu0 %2469
  %v2471 = vrot.slane %v2456, 4
  %v2472 = vrot.slane %v2458, 4
  %v2473 = vrot.slane %v2460, 4
  %v2474 = vrot.slane %v2462, 4
  %v2475 = vrot.slane %v2464, 4
  %v2476 = vrot.slane %v2466, 4
  %v2477 = vrot.slane %v2468, 4
  %v2478 = vrot.slane %v2470, 4
  %v2479 = vsel %vm151, %v2471, %v2472
  %v2480 = vsel %vm250, %v2456, %v2479
  %v2481 = vsel %vm151, %v2473, %v2474
  %v2482 = vsel %vm250, %v2460, %v2481
  %v2483 = vsel %vm151, %v2475, %v2476
  %v2484 = vsel %vm250, %v2464, %v2483
  %v2485 = vsel %vm151, %v2477, %v2478
  %v2486 = vsel %vm250, %v2468, %v2485
  %2491 = vst [vmem:[#allocation4 + $0x88] sm:$0xff] %v2480
  %2492 = vst [vmem:[#allocation4 + $0x98] sm:$0xff] %v2482
  %2493 = vst [vmem:[#allocation4 + $0xa8] sm:$0xff] %v2484
  %2494 = vst [vmem:[#allocation4 + $0xb8] sm:$0xff] %v2486
  %v2495 = vld [vmem:[%s1536] sm:$0xff]
  %v2496 = vld [vmem:[%s1536 + $0x8] sm:$0xf]
  %v2497 = vld [vmem:[%s1536 + $0x10] sm:$0xff]
  %v2498 = vld [vmem:[%s1536 + $0x18] sm:$0xf]
  %v2499 = vld [vmem:[%s1536 + $0x20] sm:$0xff]
  %v2500 = vld [vmem:[%s1536 + $0x28] sm:$0xf]
  %v2501 = vld [vmem:[%s1536 + $0x30] sm:$0xff]
  %v2502 = vld [vmem:[%s1536 + $0x38] sm:$0xf]
  %v2503 = vunpack.c.l.bf16 %v2495
  %v2504 = vunpack.c.h.bf16 %v2495
  %v2505 = vunpack.c.l.bf16 %v2496
  %v2506 = vunpack.c.l.bf16 %v2497
  %v2507 = vunpack.c.h.bf16 %v2497
  %v2508 = vunpack.c.l.bf16 %v2498
  %v2509 = vunpack.c.l.bf16 %v2499
  %v2510 = vunpack.c.h.bf16 %v2499
  %v2511 = vunpack.c.l.bf16 %v2500
  %v2512 = vunpack.c.l.bf16 %v2501
  %v2513 = vunpack.c.h.bf16 %v2501
  %v2514 = vunpack.c.l.bf16 %v2502
  %v2515 = vmul.f32 %v2503, %v1836
  %v2516 = vmul.f32 %v2504, %v1839
  %v2517 = vmul.f32 %v2505, %v1838
  %v2518 = vmul.f32 %v2506, %v1836
  %v2519 = vmul.f32 %v2507, %v1839
  %v2520 = vmul.f32 %v2508, %v1838
  %v2521 = vmul.f32 %v2509, %v1836
  %v2522 = vmul.f32 %v2510, %v1839
  %v2523 = vmul.f32 %v2511, %v1838
  %v2524 = vmul.f32 %v2512, %v1836
  %v2525 = vmul.f32 %v2513, %v1839
  %v2526 = vmul.f32 %v2514, %v1838
  %v2527 = vpack.c.bf16 %v2516, %v2515
  %v2528 = vpack.c.bf16 %v2517, %v2517
  %v2529 = vpack.c.bf16 %v2519, %v2518
  %v2530 = vpack.c.bf16 %v2520, %v2520
  %v2531 = vpack.c.bf16 %v2522, %v2521
  %v2532 = vpack.c.bf16 %v2523, %v2523
  %v2533 = vpack.c.bf16 %v2525, %v2524
  %v2534 = vpack.c.bf16 %v2526, %v2526
  %2543 = vrot.lane.b32.xlu0 %v2527, 1
  %v2544 = vpop.permute.xlu0 %2543
  %2545 = vrot.lane.b32.xlu0 %v2528, 1
  %v2546 = vpop.permute.xlu0 %2545
  %2547 = vrot.lane.b32.xlu0 %v2529, 1
  %v2548 = vpop.permute.xlu0 %2547
  %2549 = vrot.lane.b32.xlu0 %v2530, 1
  %v2550 = vpop.permute.xlu0 %2549
  %2551 = vrot.lane.b32.xlu0 %v2531, 1
  %v2552 = vpop.permute.xlu0 %2551
  %2553 = vrot.lane.b32.xlu0 %v2532, 1
  %v2554 = vpop.permute.xlu0 %2553
  %2555 = vrot.lane.b32.xlu0 %v2533, 1
  %v2556 = vpop.permute.xlu0 %2555
  %2557 = vrot.lane.b32.xlu0 %v2534, 1
  %v2558 = vpop.permute.xlu0 %2557
  %v2559 = vrot.slane %v2544, 4
  %v2560 = vrot.slane %v2546, 4
  %v2561 = vrot.slane %v2548, 4
  %v2562 = vrot.slane %v2550, 4
  %v2563 = vrot.slane %v2552, 4
  %v2564 = vrot.slane %v2554, 4
  %v2565 = vrot.slane %v2556, 4
  %v2566 = vrot.slane %v2558, 4
  %v2567 = vsel %vm151, %v2559, %v2560
  %v2568 = vsel %vm304, %v2544, %v2567
  %v2569 = vsel %vm151, %v2561, %v2562
  %v2570 = vsel %vm304, %v2548, %v2569
  %v2571 = vsel %vm151, %v2563, %v2564
  %v2572 = vsel %vm304, %v2552, %v2571
  %v2573 = vsel %vm151, %v2565, %v2566
  %v2574 = vsel %vm304, %v2556, %v2573
  %2579 = vst [vmem:[#allocation4 + $0xc8] sm:$0xff] %v2568
  %2580 = vst [vmem:[#allocation4 + $0xd8] sm:$0xff] %v2570
  %2581 = vst [vmem:[#allocation4 + $0xe8] sm:$0xff] %v2572
  %2582 = vst [vmem:[#allocation4 + $0xf8] sm:$0xff] %v2574
  %v2583 = vld [vmem:[%s1536 + $0x4] sm:$0xff]
  %v2584 = vld [vmem:[%s1536 + $0x14] sm:$0xff]
  %v2585 = vld [vmem:[%s1536 + $0x24] sm:$0xff]
  %v2586 = vld [vmem:[%s1536 + $0x34] sm:$0xff]
  %2587 = vst [vmem:[#allocation4 + $0x108] sm:$0xff] %v2583
  %2588 = vst [vmem:[#allocation4 + $0x118] sm:$0xff] %v2584
  %2589 = vst [vmem:[#allocation4 + $0x128] sm:$0xff] %v2585
  %2590 = vst [vmem:[#allocation4 + $0x138] sm:$0xff] %v2586
  %v2591 = vld [vmem:[%s1536 + $0x4] sm:$0xff]
  %v2592 = vld [vmem:[%s1536 + $0xc] sm:$0xf]
  %v2593 = vld [vmem:[%s1536 + $0x14] sm:$0xff]
  %v2594 = vld [vmem:[%s1536 + $0x1c] sm:$0xf]
  %v2595 = vld [vmem:[%s1536 + $0x24] sm:$0xff]
  %v2596 = vld [vmem:[%s1536 + $0x2c] sm:$0xf]
  %v2597 = vld [vmem:[%s1536 + $0x34] sm:$0xff]
  %v2598 = vld [vmem:[%s1536 + $0x3c] sm:$0xf]
  %v2599 = vunpack.c.l.bf16 %v2591
  %v2600 = vunpack.c.h.bf16 %v2591
  %v2601 = vunpack.c.l.bf16 %v2592
  %v2602 = vunpack.c.l.bf16 %v2593
  %v2603 = vunpack.c.h.bf16 %v2593
  %v2604 = vunpack.c.l.bf16 %v2594
  %v2605 = vunpack.c.l.bf16 %v2595
  %v2606 = vunpack.c.h.bf16 %v2595
  %v2607 = vunpack.c.l.bf16 %v2596
  %v2608 = vunpack.c.l.bf16 %v2597
  %v2609 = vunpack.c.h.bf16 %v2597
  %v2610 = vunpack.c.l.bf16 %v2598
  %v2611 = vmul.f32 %v2599, %v1940
  %v2612 = vmul.f32 %v2600, %v1943
  %v2613 = vmul.f32 %v2601, %v1942
  %v2614 = vmul.f32 %v2602, %v1940
  %v2615 = vmul.f32 %v2603, %v1943
  %v2616 = vmul.f32 %v2604, %v1942
  %v2617 = vmul.f32 %v2605, %v1940
  %v2618 = vmul.f32 %v2606, %v1943
  %v2619 = vmul.f32 %v2607, %v1942
  %v2620 = vmul.f32 %v2608, %v1940
  %v2621 = vmul.f32 %v2609, %v1943
  %v2622 = vmul.f32 %v2610, %v1942
  %v2623 = vpack.c.bf16 %v2612, %v2611
  %v2624 = vpack.c.bf16 %v2613, %v2613
  %v2625 = vpack.c.bf16 %v2615, %v2614
  %v2626 = vpack.c.bf16 %v2616, %v2616
  %v2627 = vpack.c.bf16 %v2618, %v2617
  %v2628 = vpack.c.bf16 %v2619, %v2619
  %v2629 = vpack.c.bf16 %v2621, %v2620
  %v2630 = vpack.c.bf16 %v2622, %v2622
  %2639 = vrot.lane.b32.xlu0 %v2623, 127
  %v2640 = vpop.permute.xlu0 %2639
  %2641 = vrot.lane.b32.xlu0 %v2624, 127
  %v2642 = vpop.permute.xlu0 %2641
  %2643 = vrot.lane.b32.xlu0 %v2625, 127
  %v2644 = vpop.permute.xlu0 %2643
  %2645 = vrot.lane.b32.xlu0 %v2626, 127
  %v2646 = vpop.permute.xlu0 %2645
  %2647 = vrot.lane.b32.xlu0 %v2627, 127
  %v2648 = vpop.permute.xlu0 %2647
  %2649 = vrot.lane.b32.xlu0 %v2628, 127
  %v2650 = vpop.permute.xlu0 %2649
  %2651 = vrot.lane.b32.xlu0 %v2629, 127
  %v2652 = vpop.permute.xlu0 %2651
  %2653 = vrot.lane.b32.xlu0 %v2630, 127
  %v2654 = vpop.permute.xlu0 %2653
  %v2655 = vrot.slane %v2640, 4
  %v2656 = vrot.slane %v2642, 4
  %v2657 = vrot.slane %v2644, 4
  %v2658 = vrot.slane %v2646, 4
  %v2659 = vrot.slane %v2648, 4
  %v2660 = vrot.slane %v2650, 4
  %v2661 = vrot.slane %v2652, 4
  %v2662 = vrot.slane %v2654, 4
  %v2663 = vsel %vm151, %v2655, %v2656
  %v2664 = vsel %vm362, %v2640, %v2663
  %v2665 = vsel %vm151, %v2657, %v2658
  %v2666 = vsel %vm362, %v2644, %v2665
  %v2667 = vsel %vm151, %v2659, %v2660
  %v2668 = vsel %vm362, %v2648, %v2667
  %v2669 = vsel %vm151, %v2661, %v2662
  %v2670 = vsel %vm362, %v2652, %v2669
  %2675 = vst [vmem:[#allocation4 + $0x148] sm:$0xff] %v2664
  %2676 = vst [vmem:[#allocation4 + $0x158] sm:$0xff] %v2666
  %2677 = vst [vmem:[#allocation4 + $0x168] sm:$0xff] %v2668
  %2678 = vst [vmem:[#allocation4 + $0x178] sm:$0xff] %v2670
  %v2679 = vld [vmem:[%s1536 + $0x4] sm:$0xff]
  %v2680 = vld [vmem:[%s1536 + $0xc] sm:$0xf]
  %v2681 = vld [vmem:[%s1536 + $0x14] sm:$0xff]
  %v2682 = vld [vmem:[%s1536 + $0x1c] sm:$0xf]
  %v2683 = vld [vmem:[%s1536 + $0x24] sm:$0xff]
  %v2684 = vld [vmem:[%s1536 + $0x2c] sm:$0xf]
  %v2685 = vld [vmem:[%s1536 + $0x34] sm:$0xff]
  %v2686 = vld [vmem:[%s1536 + $0x3c] sm:$0xf]
  %v2687 = vunpack.c.l.bf16 %v2679
  %v2688 = vunpack.c.h.bf16 %v2679
  %v2689 = vunpack.c.l.bf16 %v2680
  %v2690 = vunpack.c.l.bf16 %v2681
  %v2691 = vunpack.c.h.bf16 %v2681
  %v2692 = vunpack.c.l.bf16 %v2682
  %v2693 = vunpack.c.l.bf16 %v2683
  %v2694 = vunpack.c.h.bf16 %v2683
  %v2695 = vunpack.c.l.bf16 %v2684
  %v2696 = vunpack.c.l.bf16 %v2685
  %v2697 = vunpack.c.h.bf16 %v2685
  %v2698 = vunpack.c.l.bf16 %v2686
  %v2699 = vmul.f32 %v2687, %v2036
  %v2700 = vmul.f32 %v2688, %v2039
  %v2701 = vmul.f32 %v2689, %v2038
  %v2702 = vmul.f32 %v2690, %v2036
  %v2703 = vmul.f32 %v2691, %v2039
  %v2704 = vmul.f32 %v2692, %v2038
  %v2705 = vmul.f32 %v2693, %v2036
  %v2706 = vmul.f32 %v2694, %v2039
  %v2707 = vmul.f32 %v2695, %v2038
  %v2708 = vmul.f32 %v2696, %v2036
  %v2709 = vmul.f32 %v2697, %v2039
  %v2710 = vmul.f32 %v2698, %v2038
  %v2711 = vpack.c.bf16 %v2700, %v2699
  %v2712 = vpack.c.bf16 %v2701, %v2701
  %v2713 = vpack.c.bf16 %v2703, %v2702
  %v2714 = vpack.c.bf16 %v2704, %v2704
  %v2715 = vpack.c.bf16 %v2706, %v2705
  %v2716 = vpack.c.bf16 %v2707, %v2707
  %v2717 = vpack.c.bf16 %v2709, %v2708
  %v2718 = vpack.c.bf16 %v2710, %v2710
  %2727 = vrot.lane.b32.xlu0 %v2711, 113
  %v2728 = vpop.permute.xlu0 %2727
  %2729 = vrot.lane.b32.xlu0 %v2712, 113
  %v2730 = vpop.permute.xlu0 %2729
  %2731 = vrot.lane.b32.xlu0 %v2713, 113
  %v2732 = vpop.permute.xlu0 %2731
  %2733 = vrot.lane.b32.xlu0 %v2714, 113
  %v2734 = vpop.permute.xlu0 %2733
  %2735 = vrot.lane.b32.xlu0 %v2715, 113
  %v2736 = vpop.permute.xlu0 %2735
  %2737 = vrot.lane.b32.xlu0 %v2716, 113
  %v2738 = vpop.permute.xlu0 %2737
  %2739 = vrot.lane.b32.xlu0 %v2717, 113
  %v2740 = vpop.permute.xlu0 %2739
  %2741 = vrot.lane.b32.xlu0 %v2718, 113
  %v2742 = vpop.permute.xlu0 %2741
  %v2743 = vrot.slane %v2728, 4
  %v2744 = vrot.slane %v2730, 4
  %v2745 = vrot.slane %v2732, 4
  %v2746 = vrot.slane %v2734, 4
  %v2747 = vrot.slane %v2736, 4
  %v2748 = vrot.slane %v2738, 4
  %v2749 = vrot.slane %v2740, 4
  %v2750 = vrot.slane %v2742, 4
  %v2751 = vsel %vm151, %v2743, %v2744
  %v2752 = vsel %vm416, %v2728, %v2751
  %v2753 = vsel %vm151, %v2745, %v2746
  %v2754 = vsel %vm416, %v2732, %v2753
  %v2755 = vsel %vm151, %v2747, %v2748
  %v2756 = vsel %vm416, %v2736, %v2755
  %v2757 = vsel %vm151, %v2749, %v2750
  %v2758 = vsel %vm416, %v2740, %v2757
  %2763 = vst [vmem:[#allocation4 + $0x188] sm:$0xff] %v2752
  %2764 = vst [vmem:[#allocation4 + $0x198] sm:$0xff] %v2754
  %2765 = vst [vmem:[#allocation4 + $0x1a8] sm:$0xff] %v2756
  %2766 = vst [vmem:[#allocation4 + $0x1b8] sm:$0xff] %v2758
  %v2767 = vld [vmem:[%s1536 + $0x4] sm:$0xff]
  %v2768 = vld [vmem:[%s1536 + $0xc] sm:$0xf]
  %v2769 = vld [vmem:[%s1536 + $0x14] sm:$0xff]
  %v2770 = vld [vmem:[%s1536 + $0x1c] sm:$0xf]
  %v2771 = vld [vmem:[%s1536 + $0x24] sm:$0xff]
  %v2772 = vld [vmem:[%s1536 + $0x2c] sm:$0xf]
  %v2773 = vld [vmem:[%s1536 + $0x34] sm:$0xff]
  %v2774 = vld [vmem:[%s1536 + $0x3c] sm:$0xf]
  %2783 = vrot.lane.b32.xlu0 %v2767, 112
  %v2784 = vpop.permute.xlu0 %2783
  %2785 = vrot.lane.b32.xlu0 %v2768, 112
  %v2786 = vpop.permute.xlu0 %2785
  %2787 = vrot.lane.b32.xlu0 %v2769, 112
  %v2788 = vpop.permute.xlu0 %2787
  %2789 = vrot.lane.b32.xlu0 %v2770, 112
  %v2790 = vpop.permute.xlu0 %2789
  %2791 = vrot.lane.b32.xlu0 %v2771, 112
  %v2792 = vpop.permute.xlu0 %2791
  %2793 = vrot.lane.b32.xlu0 %v2772, 112
  %v2794 = vpop.permute.xlu0 %2793
  %2795 = vrot.lane.b32.xlu0 %v2773, 112
  %v2796 = vpop.permute.xlu0 %2795
  %2797 = vrot.lane.b32.xlu0 %v2774, 112
  %v2798 = vpop.permute.xlu0 %2797
  %v2799 = vrot.slane %v2784, 4
  %v2800 = vrot.slane %v2786, 4
  %v2801 = vrot.slane %v2788, 4
  %v2802 = vrot.slane %v2790, 4
  %v2803 = vrot.slane %v2792, 4
  %v2804 = vrot.slane %v2794, 4
  %v2805 = vrot.slane %v2796, 4
  %v2806 = vrot.slane %v2798, 4
  %v2807 = vsel %vm151, %v2799, %v2800
  %v2808 = vsel %vm445, %v2784, %v2807
  %v2809 = vsel %vm151, %v2801, %v2802
  %v2810 = vsel %vm445, %v2788, %v2809
  %v2811 = vsel %vm151, %v2803, %v2804
  %v2812 = vsel %vm445, %v2792, %v2811
  %v2813 = vsel %vm151, %v2805, %v2806
  %v2814 = vsel %vm445, %v2796, %v2813
  %2819 = vst [vmem:[#allocation4 + $0x1c8] sm:$0xff] %v2808
  %2820 = vst [vmem:[#allocation4 + $0x1d8] sm:$0xff] %v2810
  %2821 = vst [vmem:[#allocation4 + $0x1e8] sm:$0xff] %v2812
  %2822 = vst [vmem:[#allocation4 + $0x1f8] sm:$0xff] %v2814
  %v2823 = vld [vmem:[%s1536 + $0x4] sm:$0xff]
  %v2824 = vld [vmem:[%s1536 + $0xc] sm:$0xf]
  %v2825 = vld [vmem:[%s1536 + $0x14] sm:$0xff]
  %v2826 = vld [vmem:[%s1536 + $0x1c] sm:$0xf]
  %v2827 = vld [vmem:[%s1536 + $0x24] sm:$0xff]
  %v2828 = vld [vmem:[%s1536 + $0x2c] sm:$0xf]
  %v2829 = vld [vmem:[%s1536 + $0x34] sm:$0xff]
  %v2830 = vld [vmem:[%s1536 + $0x3c] sm:$0xf]
  %v2831 = vunpack.c.l.bf16 %v2823
  %v2832 = vunpack.c.h.bf16 %v2823
  %v2833 = vunpack.c.l.bf16 %v2824
  %v2834 = vunpack.c.l.bf16 %v2825
  %v2835 = vunpack.c.h.bf16 %v2825
  %v2836 = vunpack.c.l.bf16 %v2826
  %v2837 = vunpack.c.l.bf16 %v2827
  %v2838 = vunpack.c.h.bf16 %v2827
  %v2839 = vunpack.c.l.bf16 %v2828
  %v2840 = vunpack.c.l.bf16 %v2829
  %v2841 = vunpack.c.h.bf16 %v2829
  %v2842 = vunpack.c.l.bf16 %v2830
  %v2843 = vmul.f32 %v2831, %v2188
  %v2844 = vmul.f32 %v2832, %v2191
  %v2845 = vmul.f32 %v2833, %v2190
  %v2846 = vmul.f32 %v2834, %v2188
  %v2847 = vmul.f32 %v2835, %v2191
  %v2848 = vmul.f32 %v2836, %v2190
  %v2849 = vmul.f32 %v2837, %v2188
  %v2850 = vmul.f32 %v2838, %v2191
  %v2851 = vmul.f32 %v2839, %v2190
  %v2852 = vmul.f32 %v2840, %v2188
  %v2853 = vmul.f32 %v2841, %v2191
  %v2854 = vmul.f32 %v2842, %v2190
  %v2855 = vpack.c.bf16 %v2844, %v2843
  %v2856 = vpack.c.bf16 %v2845, %v2845
  %v2857 = vpack.c.bf16 %v2847, %v2846
  %v2858 = vpack.c.bf16 %v2848, %v2848
  %v2859 = vpack.c.bf16 %v2850, %v2849
  %v2860 = vpack.c.bf16 %v2851, %v2851
  %v2861 = vpack.c.bf16 %v2853, %v2852
  %v2862 = vpack.c.bf16 %v2854, %v2854
  %2871 = vrot.lane.b32.xlu0 %v2855, 111
  %v2872 = vpop.permute.xlu0 %2871
  %2873 = vrot.lane.b32.xlu0 %v2856, 111
  %v2874 = vpop.permute.xlu0 %2873
  %2875 = vrot.lane.b32.xlu0 %v2857, 111
  %v2876 = vpop.permute.xlu0 %2875
  %2877 = vrot.lane.b32.xlu0 %v2858, 111
  %v2878 = vpop.permute.xlu0 %2877
  %2879 = vrot.lane.b32.xlu0 %v2859, 111
  %v2880 = vpop.permute.xlu0 %2879
  %2881 = vrot.lane.b32.xlu0 %v2860, 111
  %v2882 = vpop.permute.xlu0 %2881
  %2883 = vrot.lane.b32.xlu0 %v2861, 111
  %v2884 = vpop.permute.xlu0 %2883
  %2885 = vrot.lane.b32.xlu0 %v2862, 111
  %v2886 = vpop.permute.xlu0 %2885
  %v2887 = vrot.slane %v2872, 4
  %v2888 = vrot.slane %v2874, 4
  %v2889 = vrot.slane %v2876, 4
  %v2890 = vrot.slane %v2878, 4
  %v2891 = vrot.slane %v2880, 4
  %v2892 = vrot.slane %v2882, 4
  %v2893 = vrot.slane %v2884, 4
  %v2894 = vrot.slane %v2886, 4
  %v2895 = vsel %vm151, %v2887, %v2888
  %v2896 = vsel %vm499, %v2872, %v2895
  %v2897 = vsel %vm151, %v2889, %v2890
  %v2898 = vsel %vm499, %v2876, %v2897
  %v2899 = vsel %vm151, %v2891, %v2892
  %v2900 = vsel %vm499, %v2880, %v2899
  %v2901 = vsel %vm151, %v2893, %v2894
  %v2902 = vsel %vm499, %v2884, %v2901
  %2907 = vst [vmem:[#allocation4 + $0x208] sm:$0xff] %v2896
  %2908 = vst [vmem:[#allocation4 + $0x218] sm:$0xff] %v2898
  %2909 = vst [vmem:[#allocation4 + $0x228] sm:$0xff] %v2900
  %2910 = vst [vmem:[#allocation4 + $0x238] sm:$0xff] %v2902
  %v2911 = vld [vmem:[%s4] sm:$0xff]
  %v2912 = vld [vmem:[%s4 + $0x8] sm:$0xf]
  %v2913 = vld [vmem:[%s4 + $0xc] sm:$0xff]
  %v2914 = vld [vmem:[%s4 + $0x14] sm:$0xf]
  %v2915 = vld [vmem:[%s4 + $0x18] sm:$0xff]
  %v2916 = vld [vmem:[%s4 + $0x20] sm:$0xf]
  %v2917 = vld [vmem:[%s4 + $0x24] sm:$0xff]
  %v2918 = vld [vmem:[%s4 + $0x2c] sm:$0xf]
  %v2919 = vld [vmem:[#allocation4] sm:$0xff]
  %v2920 = vld [vmem:[#allocation4 + $0x8] sm:$0xff]
  %v2921 = vld [vmem:[#allocation4 + $0x10] sm:$0xff]
  %v2922 = vld [vmem:[#allocation4 + $0x18] sm:$0xff]
  %v2923 = vld [vmem:[#allocation4 + $0x20] sm:$0xff]
  %v2924 = vld [vmem:[#allocation4 + $0x28] sm:$0xff]
  %v2925 = vld [vmem:[#allocation4 + $0x30] sm:$0xff]
  %v2926 = vld [vmem:[#allocation4 + $0x38] sm:$0xff]
  %v2927 = vld [vmem:[#allocation4 + $0x40] sm:$0xff]
  %v2928 = vld [vmem:[#allocation4 + $0x48] sm:$0xff]
  %v2929 = vld [vmem:[#allocation4 + $0x50] sm:$0xff]
  %v2930 = vld [vmem:[#allocation4 + $0x58] sm:$0xff]
  %v2931 = vld [vmem:[#allocation4 + $0x60] sm:$0xff]
  %v2932 = vld [vmem:[#allocation4 + $0x68] sm:$0xff]
  %v2933 = vld [vmem:[#allocation4 + $0x70] sm:$0xff]
  %v2934 = vld [vmem:[#allocation4 + $0x78] sm:$0xff]
  %v2935 = vld [vmem:[#allocation4 + $0x80] sm:$0xff]
  %v2936 = vld [vmem:[#allocation4 + $0x88] sm:$0xff]
  %v2937 = vld [vmem:[#allocation4 + $0x90] sm:$0xff]
  %v2938 = vld [vmem:[#allocation4 + $0x98] sm:$0xff]
  %v2939 = vld [vmem:[#allocation4 + $0xa0] sm:$0xff]
  %v2940 = vld [vmem:[#allocation4 + $0xa8] sm:$0xff]
  %v2941 = vld [vmem:[#allocation4 + $0xb0] sm:$0xff]
  %v2942 = vld [vmem:[#allocation4 + $0xb8] sm:$0xff]
  %v2943 = vld [vmem:[#allocation4 + $0xc0] sm:$0xff]
  %v2944 = vld [vmem:[#allocation4 + $0xc8] sm:$0xff]
  %v2945 = vld [vmem:[#allocation4 + $0xd0] sm:$0xff]
  %v2946 = vld [vmem:[#allocation4 + $0xd8] sm:$0xff]
  %v2947 = vld [vmem:[#allocation4 + $0xe0] sm:$0xff]
  %v2948 = vld [vmem:[#allocation4 + $0xe8] sm:$0xff]
  %v2949 = vld [vmem:[#allocation4 + $0xf0] sm:$0xff]
  %v2950 = vld [vmem:[#allocation4 + $0xf8] sm:$0xff]
  %v2951 = vld [vmem:[#allocation4 + $0x100] sm:$0xff]
  %v2952 = vld [vmem:[#allocation4 + $0x108] sm:$0xff]
  %v2953 = vld [vmem:[#allocation4 + $0x110] sm:$0xff]
  %v2954 = vld [vmem:[#allocation4 + $0x118] sm:$0xff]
  %v2955 = vld [vmem:[#allocation4 + $0x120] sm:$0xff]
  %v2956 = vld [vmem:[#allocation4 + $0x128] sm:$0xff]
  %v2957 = vld [vmem:[#allocation4 + $0x130] sm:$0xff]
  %v2958 = vld [vmem:[#allocation4 + $0x138] sm:$0xff]
  %v2959 = vld [vmem:[#allocation4 + $0x140] sm:$0xff]
  %v2960 = vld [vmem:[#allocation4 + $0x148] sm:$0xff]
  %v2961 = vld [vmem:[#allocation4 + $0x150] sm:$0xff]
  %v2962 = vld [vmem:[#allocation4 + $0x158] sm:$0xff]
  %v2963 = vld [vmem:[#allocation4 + $0x160] sm:$0xff]
  %v2964 = vld [vmem:[#allocation4 + $0x168] sm:$0xff]
  %v2965 = vld [vmem:[#allocation4 + $0x170] sm:$0xff]
  %v2966 = vld [vmem:[#allocation4 + $0x178] sm:$0xff]
  %v2967 = vld [vmem:[#allocation4 + $0x180] sm:$0xff]
  %v2968 = vld [vmem:[#allocation4 + $0x188] sm:$0xff]
  %v2969 = vld [vmem:[#allocation4 + $0x190] sm:$0xff]
  %v2970 = vld [vmem:[#allocation4 + $0x198] sm:$0xff]
  %v2971 = vld [vmem:[#allocation4 + $0x1a0] sm:$0xff]
  %v2972 = vld [vmem:[#allocation4 + $0x1a8] sm:$0xff]
  %v2973 = vld [vmem:[#allocation4 + $0x1b0] sm:$0xff]
  %v2974 = vld [vmem:[#allocation4 + $0x1b8] sm:$0xff]
  %v2975 = vld [vmem:[#allocation4 + $0x1c0] sm:$0xff]
  %v2976 = vld [vmem:[#allocation4 + $0x1c8] sm:$0xff]
  %v2977 = vld [vmem:[#allocation4 + $0x1d0] sm:$0xff]
  %v2978 = vld [vmem:[#allocation4 + $0x1d8] sm:$0xff]
  %v2979 = vld [vmem:[#allocation4 + $0x1e0] sm:$0xff]
  %v2980 = vld [vmem:[#allocation4 + $0x1e8] sm:$0xff]
  %v2981 = vld [vmem:[#allocation4 + $0x1f0] sm:$0xff]
  %v2982 = vld [vmem:[#allocation4 + $0x1f8] sm:$0xff]
  %v2983 = vld [vmem:[#allocation4 + $0x200] sm:$0xff]
  %v2984 = vld [vmem:[#allocation4 + $0x208] sm:$0xff]
  %v2985 = vld [vmem:[#allocation4 + $0x210] sm:$0xff]
  %v2986 = vld [vmem:[#allocation4 + $0x218] sm:$0xff]
  %v2987 = vld [vmem:[#allocation4 + $0x220] sm:$0xff]
  %v2988 = vld [vmem:[#allocation4 + $0x228] sm:$0xff]
  %v2989 = vld [vmem:[#allocation4 + $0x230] sm:$0xff]
  %v2990 = vld [vmem:[#allocation4 + $0x238] sm:$0xff]
  %v2999 = vunpack.c.l.b16 %v2911
  %v3000 = vunpack.c.h.b16 %v2911
  %v3001 = vunpack.c.l.b16 %v2912
  %v3002 = vunpack.c.l.b16 %v2913
  %v3003 = vunpack.c.h.b16 %v2913
  %v3004 = vunpack.c.l.b16 %v2914
  %v3005 = vunpack.c.l.b16 %v2915
  %v3006 = vunpack.c.h.b16 %v2915
  %v3007 = vunpack.c.l.b16 %v2916
  %v3008 = vunpack.c.l.b16 %v2917
  %v3009 = vunpack.c.h.b16 %v2917
  %v3010 = vunpack.c.l.b16 %v2918
  %v3011 = vpack.c.b16 %v3002, %v2999
  %v3012 = vpack.c.b16 %v3003, %v3000
  %v3013 = vpack.c.b16 %v3004, %v3001
  %v3014 = vpack.c.b16 %v3008, %v3005
  %v3015 = vpack.c.b16 %v3009, %v3006
  %v3016 = vpack.c.b16 %v3010, %v3007
  %v3093 = vunpack.c.l.b16 %v2919
  %v3094 = vunpack.c.h.b16 %v2919
  %v3095 = vunpack.c.l.b16 %v2920
  %v3096 = vunpack.c.h.b16 %v2920
  %v3097 = vunpack.c.l.b16 %v2921
  %v3098 = vunpack.c.h.b16 %v2921
  %v3099 = vunpack.c.l.b16 %v2922
  %v3100 = vunpack.c.h.b16 %v2922
  %v3101 = vunpack.c.l.b16 %v2923
  %v3102 = vunpack.c.h.b16 %v2923
  %v3103 = vunpack.c.l.b16 %v2924
  %v3104 = vunpack.c.h.b16 %v2924
  %v3105 = vunpack.c.l.b16 %v2925
  %v3106 = vunpack.c.h.b16 %v2925
  %v3107 = vunpack.c.l.b16 %v2926
  %v3108 = vunpack.c.h.b16 %v2926
  %v3109 = vunpack.c.l.b16 %v2927
  %v3110 = vunpack.c.h.b16 %v2927
  %v3111 = vunpack.c.l.b16 %v2928
  %v3112 = vunpack.c.h.b16 %v2928
  %v3113 = vunpack.c.l.b16 %v2929
  %v3114 = vunpack.c.h.b16 %v2929
  %v3115 = vunpack.c.l.b16 %v2930
  %v3116 = vunpack.c.h.b16 %v2930
  %v3117 = vunpack.c.l.b16 %v2931
  %v3118 = vunpack.c.h.b16 %v2931
  %v3119 = vunpack.c.l.b16 %v2932
  %v3120 = vunpack.c.h.b16 %v2932
  %v3121 = vunpack.c.l.b16 %v2933
  %v3122 = vunpack.c.h.b16 %v2933
  %v3123 = vunpack.c.l.b16 %v2934
  %v3124 = vunpack.c.h.b16 %v2934
  %v3125 = vunpack.c.l.b16 %v2935
  %v3126 = vunpack.c.h.b16 %v2935
  %v3127 = vunpack.c.l.b16 %v2936
  %v3128 = vunpack.c.h.b16 %v2936
  %v3129 = vunpack.c.l.b16 %v2937
  %v3130 = vunpack.c.h.b16 %v2937
  %v3131 = vunpack.c.l.b16 %v2938
  %v3132 = vunpack.c.h.b16 %v2938
  %v3133 = vunpack.c.l.b16 %v2939
  %v3134 = vunpack.c.h.b16 %v2939
  %v3135 = vunpack.c.l.b16 %v2940
  %v3136 = vunpack.c.h.b16 %v2940
  %v3137 = vunpack.c.l.b16 %v2941
  %v3138 = vunpack.c.h.b16 %v2941
  %v3139 = vunpack.c.l.b16 %v2942
  %v3140 = vunpack.c.h.b16 %v2942
  %v3141 = vunpack.c.l.b16 %v2943
  %v3142 = vunpack.c.h.b16 %v2943
  %v3143 = vunpack.c.l.b16 %v2944
  %v3144 = vunpack.c.h.b16 %v2944
  %v3145 = vunpack.c.l.b16 %v2945
  %v3146 = vunpack.c.h.b16 %v2945
  %v3147 = vunpack.c.l.b16 %v2946
  %v3148 = vunpack.c.h.b16 %v2946
  %v3149 = vunpack.c.l.b16 %v2947
  %v3150 = vunpack.c.h.b16 %v2947
  %v3151 = vunpack.c.l.b16 %v2948
  %v3152 = vunpack.c.h.b16 %v2948
  %v3153 = vunpack.c.l.b16 %v2949
  %v3154 = vunpack.c.h.b16 %v2949
  %v3155 = vunpack.c.l.b16 %v2950
  %v3156 = vunpack.c.h.b16 %v2950
  %v3157 = vunpack.c.l.b16 %v2951
  %v3158 = vunpack.c.h.b16 %v2951
  %v3159 = vunpack.c.l.b16 %v2952
  %v3160 = vunpack.c.h.b16 %v2952
  %v3161 = vunpack.c.l.b16 %v2953
  %v3162 = vunpack.c.h.b16 %v2953
  %v3163 = vunpack.c.l.b16 %v2954
  %v3164 = vunpack.c.h.b16 %v2954
  %v3165 = vunpack.c.l.b16 %v2955
  %v3166 = vunpack.c.h.b16 %v2955
  %v3167 = vunpack.c.l.b16 %v2956
  %v3168 = vunpack.c.h.b16 %v2956
  %v3169 = vunpack.c.l.b16 %v2957
  %v3170 = vunpack.c.h.b16 %v2957
  %v3171 = vunpack.c.l.b16 %v2958
  %v3172 = vunpack.c.h.b16 %v2958
  %v3173 = vunpack.c.l.b16 %v2959
  %v3174 = vunpack.c.h.b16 %v2959
  %v3175 = vunpack.c.l.b16 %v2960
  %v3176 = vunpack.c.h.b16 %v2960
  %v3177 = vunpack.c.l.b16 %v2961
  %v3178 = vunpack.c.h.b16 %v2961
  %v3179 = vunpack.c.l.b16 %v2962
  %v3180 = vunpack.c.h.b16 %v2962
  %v3181 = vunpack.c.l.b16 %v2963
  %v3182 = vunpack.c.h.b16 %v2963
  %v3183 = vunpack.c.l.b16 %v2964
  %v3184 = vunpack.c.h.b16 %v2964
  %v3185 = vunpack.c.l.b16 %v2965
  %v3186 = vunpack.c.h.b16 %v2965
  %v3187 = vunpack.c.l.b16 %v2966
  %v3188 = vunpack.c.h.b16 %v2966
  %v3189 = vunpack.c.l.b16 %v2967
  %v3190 = vunpack.c.h.b16 %v2967
  %v3191 = vunpack.c.l.b16 %v2968
  %v3192 = vunpack.c.h.b16 %v2968
  %v3193 = vunpack.c.l.b16 %v2969
  %v3194 = vunpack.c.h.b16 %v2969
  %v3195 = vunpack.c.l.b16 %v2970
  %v3196 = vunpack.c.h.b16 %v2970
  %v3197 = vunpack.c.l.b16 %v2971
  %v3198 = vunpack.c.h.b16 %v2971
  %v3199 = vunpack.c.l.b16 %v2972
  %v3200 = vunpack.c.h.b16 %v2972
  %v3201 = vunpack.c.l.b16 %v2973
  %v3202 = vunpack.c.h.b16 %v2973
  %v3203 = vunpack.c.l.b16 %v2974
  %v3204 = vunpack.c.h.b16 %v2974
  %v3205 = vunpack.c.l.b16 %v2975
  %v3206 = vunpack.c.h.b16 %v2975
  %v3207 = vunpack.c.l.b16 %v2976
  %v3208 = vunpack.c.h.b16 %v2976
  %v3209 = vunpack.c.l.b16 %v2977
  %v3210 = vunpack.c.h.b16 %v2977
  %v3211 = vunpack.c.l.b16 %v2978
  %v3212 = vunpack.c.h.b16 %v2978
  %v3213 = vunpack.c.l.b16 %v2979
  %v3214 = vunpack.c.h.b16 %v2979
  %v3215 = vunpack.c.l.b16 %v2980
  %v3216 = vunpack.c.h.b16 %v2980
  %v3217 = vunpack.c.l.b16 %v2981
  %v3218 = vunpack.c.h.b16 %v2981
  %v3219 = vunpack.c.l.b16 %v2982
  %v3220 = vunpack.c.h.b16 %v2982
  %v3221 = vunpack.c.l.b16 %v2983
  %v3222 = vunpack.c.h.b16 %v2983
  %v3223 = vunpack.c.l.b16 %v2984
  %v3224 = vunpack.c.h.b16 %v2984
  %v3225 = vunpack.c.l.b16 %v2985
  %v3226 = vunpack.c.h.b16 %v2985
  %v3227 = vunpack.c.l.b16 %v2986
  %v3228 = vunpack.c.h.b16 %v2986
  %v3229 = vunpack.c.l.b16 %v2987
  %v3230 = vunpack.c.h.b16 %v2987
  %v3231 = vunpack.c.l.b16 %v2988
  %v3232 = vunpack.c.h.b16 %v2988
  %v3233 = vunpack.c.l.b16 %v2989
  %v3234 = vunpack.c.h.b16 %v2989
  %v3235 = vunpack.c.l.b16 %v2990
  %v3236 = vunpack.c.h.b16 %v2990
  %v3237 = vpack.c.b16 %v3097, %v3093
  %v3238 = vpack.c.b16 %v3098, %v3094
  %v3239 = vpack.c.b16 %v3099, %v3095
  %v3240 = vpack.c.b16 %v3100, %v3096
  %v3241 = vpack.c.b16 %v3105, %v3101
  %v3242 = vpack.c.b16 %v3106, %v3102
  %v3243 = vpack.c.b16 %v3107, %v3103
  %v3244 = vpack.c.b16 %v3108, %v3104
  %v3245 = vpack.c.b16 %v3113, %v3109
  %v3246 = vpack.c.b16 %v3114, %v3110
  %v3247 = vpack.c.b16 %v3115, %v3111
  %v3248 = vpack.c.b16 %v3116, %v3112
  %v3249 = vpack.c.b16 %v3121, %v3117
  %v3250 = vpack.c.b16 %v3122, %v3118
  %v3251 = vpack.c.b16 %v3123, %v3119
  %v3252 = vpack.c.b16 %v3124, %v3120
  %v3253 = vpack.c.b16 %v3129, %v3125
  %v3254 = vpack.c.b16 %v3130, %v3126
  %v3255 = vpack.c.b16 %v3131, %v3127
  %v3256 = vpack.c.b16 %v3132, %v3128
  %v3257 = vpack.c.b16 %v3137, %v3133
  %v3258 = vpack.c.b16 %v3138, %v3134
  %v3259 = vpack.c.b16 %v3139, %v3135
  %v3260 = vpack.c.b16 %v3140, %v3136
  %v3261 = vpack.c.b16 %v3145, %v3141
  %v3262 = vpack.c.b16 %v3146, %v3142
  %v3263 = vpack.c.b16 %v3147, %v3143
  %v3264 = vpack.c.b16 %v3148, %v3144
  %v3265 = vpack.c.b16 %v3153, %v3149
  %v3266 = vpack.c.b16 %v3154, %v3150
  %v3267 = vpack.c.b16 %v3155, %v3151
  %v3268 = vpack.c.b16 %v3156, %v3152
  %v3269 = vpack.c.b16 %v3161, %v3157
  %v3270 = vpack.c.b16 %v3162, %v3158
  %v3271 = vpack.c.b16 %v3163, %v3159
  %v3272 = vpack.c.b16 %v3164, %v3160
  %v3273 = vpack.c.b16 %v3169, %v3165
  %v3274 = vpack.c.b16 %v3170, %v3166
  %v3275 = vpack.c.b16 %v3171, %v3167
  %v3276 = vpack.c.b16 %v3172, %v3168
  %v3277 = vpack.c.b16 %v3177, %v3173
  %v3278 = vpack.c.b16 %v3178, %v3174
  %v3279 = vpack.c.b16 %v3179, %v3175
  %v3280 = vpack.c.b16 %v3180, %v3176
  %v3281 = vpack.c.b16 %v3185, %v3181
  %v3282 = vpack.c.b16 %v3186, %v3182
  %v3283 = vpack.c.b16 %v3187, %v3183
  %v3284 = vpack.c.b16 %v3188, %v3184
  %v3285 = vpack.c.b16 %v3193, %v3189
  %v3286 = vpack.c.b16 %v3194, %v3190
  %v3287 = vpack.c.b16 %v3195, %v3191
  %v3288 = vpack.c.b16 %v3196, %v3192
  %v3289 = vpack.c.b16 %v3201, %v3197
  %v3290 = vpack.c.b16 %v3202, %v3198
  %v3291 = vpack.c.b16 %v3203, %v3199
  %v3292 = vpack.c.b16 %v3204, %v3200
  %v3293 = vpack.c.b16 %v3209, %v3205
  %v3294 = vpack.c.b16 %v3210, %v3206
  %v3295 = vpack.c.b16 %v3211, %v3207
  %v3296 = vpack.c.b16 %v3212, %v3208
  %v3297 = vpack.c.b16 %v3217, %v3213
  %v3298 = vpack.c.b16 %v3218, %v3214
  %v3299 = vpack.c.b16 %v3219, %v3215
  %v3300 = vpack.c.b16 %v3220, %v3216
  %v3301 = vpack.c.b16 %v3225, %v3221
  %v3302 = vpack.c.b16 %v3226, %v3222
  %v3303 = vpack.c.b16 %v3227, %v3223
  %v3304 = vpack.c.b16 %v3228, %v3224
  %v3305 = vpack.c.b16 %v3233, %v3229
  %v3306 = vpack.c.b16 %v3234, %v3230
  %v3307 = vpack.c.b16 %v3235, %v3231
  %v3308 = vpack.c.b16 %v3236, %v3232
  %vm3381 = vcmask 261120
  %v3383 = vsel %vm3381, %v3013, 0
  %v3386 = vsel %vm3381, %v3016, 0
  %3388 = vmatpush.bf16.msra.mxu0 %v3265
  %3389 = vmatpush.bf16.msra.mxu0 %v3261
  %3390 = vmatpush.bf16.msra.mxu0 %v3257
  %3391 = vmatpush.bf16.msra.mxu0 %v3253
  %3392 = vmatpush.bf16.msra.mxu0 %v3249
  %3393 = vmatpush.bf16.msra.mxu0 %v3245
  %3394 = vmatpush.bf16.msra.mxu0 %v3241
  %3395 = vmatpush.bf16.msra.mxu0 %v3237
  %3396 = vmatmul.bf16.gmra.mxu0 %v3011
  %v3397 = vpop.f32.mrf.mxu0
  %v3398 = vadd.f32 0.0, %v3397
  %v3399 = vpop.f32.mrf.mxu0
  %v3400 = vadd.f32 0.0, %v3399
  %3401 = vmatmul.bf16.gmra.mxu0 %v3014
  %v3402 = vpop.f32.mrf.mxu0
  %v3403 = vadd.f32 0.0, %v3402
  %v3404 = vpop.f32.mrf.mxu0
  %v3405 = vadd.f32 0.0, %v3404
  %3406 = vdwg.mxu0
  %3407 = vmatpush.bf16.msra.mxu0 %v3297
  %3408 = vmatpush.bf16.msra.mxu0 %v3293
  %3409 = vmatpush.bf16.msra.mxu0 %v3289
  %3410 = vmatpush.bf16.msra.mxu0 %v3285
  %3411 = vmatpush.bf16.msra.mxu0 %v3281
  %3412 = vmatpush.bf16.msra.mxu0 %v3277
  %3413 = vmatpush.bf16.msra.mxu0 %v3273
  %3414 = vmatpush.bf16.msra.mxu0 %v3269
  %3415 = vmatmul.bf16.gmra.mxu0 %v3012
  %v3416 = vpop.f32.mrf.mxu0
  %v3417 = vadd.f32 %v3398, %v3416
  %v3418 = vpop.f32.mrf.mxu0
  %v3419 = vadd.f32 %v3400, %v3418
  %3420 = vmatmul.bf16.gmra.mxu0 %v3015
  %v3421 = vpop.f32.mrf.mxu0
  %v3422 = vadd.f32 %v3403, %v3421
  %v3423 = vpop.f32.mrf.mxu0
  %v3424 = vadd.f32 %v3405, %v3423
  %3425 = vdwg.mxu0
  %3426 = vmatpush.bf16.msra.mxu0 0
  %3427 = vmatpush.bf16.msra.mxu0 0
  %3428 = vmatpush.bf16.msra.mxu0 0
  %3429 = vmatpush.bf16.msra.mxu0 0
  %3430 = vmatpush.bf16.msra.mxu0 0
  %3431 = vmatpush.bf16.msra.mxu0 0
  %3432 = vmatpush.bf16.msra.mxu0 %v3305
  %3433 = vmatpush.bf16.msra.mxu0 %v3301
  %3434 = vmatmul.bf16.gmra.mxu0 %v3383
  %v3435 = vpop.f32.mrf.mxu0
  %v3436 = vadd.f32 %v3417, %v3435
  %v3437 = vpop.f32.mrf.mxu0
  %v3438 = vadd.f32 %v3419, %v3437
  %3439 = vmatmul.bf16.gmra.mxu0 %v3386
  %v3440 = vpop.f32.mrf.mxu0
  %v3441 = vadd.f32 %v3422, %v3440
  %v3442 = vpop.f32.mrf.mxu0
  %v3443 = vadd.f32 %v3424, %v3442
  %3444 = vdwg.mxu0
  %3445 = vmatpush.bf16.msra.mxu0 %v3266
  %3446 = vmatpush.bf16.msra.mxu0 %v3262
  %3447 = vmatpush.bf16.msra.mxu0 %v3258
  %3448 = vmatpush.bf16.msra.mxu0 %v3254
  %3449 = vmatpush.bf16.msra.mxu0 %v3250
  %3450 = vmatpush.bf16.msra.mxu0 %v3246
  %3451 = vmatpush.bf16.msra.mxu0 %v3242
  %3452 = vmatpush.bf16.msra.mxu0 %v3238
  %3453 = vmatmul.bf16.gmra.mxu0 %v3011
  %v3454 = vpop.f32.mrf.mxu0
  %v3455 = vadd.f32 0.0, %v3454
  %v3456 = vpop.f32.mrf.mxu0
  %v3457 = vadd.f32 0.0, %v3456
  %3458 = vmatmul.bf16.gmra.mxu0 %v3014
  %v3459 = vpop.f32.mrf.mxu0
  %v3460 = vadd.f32 0.0, %v3459
  %v3461 = vpop.f32.mrf.mxu0
  %v3462 = vadd.f32 0.0, %v3461
  %3463 = vdwg.mxu0
  %3464 = vmatpush.bf16.msra.mxu0 %v3298
  %3465 = vmatpush.bf16.msra.mxu0 %v3294
  %3466 = vmatpush.bf16.msra.mxu0 %v3290
  %3467 = vmatpush.bf16.msra.mxu0 %v3286
  %3468 = vmatpush.bf16.msra.mxu0 %v3282
  %3469 = vmatpush.bf16.msra.mxu0 %v3278
  %3470 = vmatpush.bf16.msra.mxu0 %v3274
  %3471 = vmatpush.bf16.msra.mxu0 %v3270
  %3472 = vmatmul.bf16.gmra.mxu0 %v3012
  %v3473 = vpop.f32.mrf.mxu0
  %v3474 = vadd.f32 %v3455, %v3473
  %v3475 = vpop.f32.mrf.mxu0
  %v3476 = vadd.f32 %v3457, %v3475
  %3477 = vmatmul.bf16.gmra.mxu0 %v3015
  %v3478 = vpop.f32.mrf.mxu0
  %v3479 = vadd.f32 %v3460, %v3478
  %v3480 = vpop.f32.mrf.mxu0
  %v3481 = vadd.f32 %v3462, %v3480
  %3482 = vdwg.mxu0
  %3483 = vmatpush.bf16.msra.mxu0 0
  %3484 = vmatpush.bf16.msra.mxu0 0
  %3485 = vmatpush.bf16.msra.mxu0 0
  %3486 = vmatpush.bf16.msra.mxu0 0
  %3487 = vmatpush.bf16.msra.mxu0 0
  %3488 = vmatpush.bf16.msra.mxu0 0
  %3489 = vmatpush.bf16.msra.mxu0 %v3306
  %3490 = vmatpush.bf16.msra.mxu0 %v3302
  %3491 = vmatmul.bf16.gmra.mxu0 %v3383
  %v3492 = vpop.f32.mrf.mxu0
  %v3493 = vadd.f32 %v3474, %v3492
  %v3494 = vpop.f32.mrf.mxu0
  %v3495 = vadd.f32 %v3476, %v3494
  %3496 = vmatmul.bf16.gmra.mxu0 %v3386
  %v3497 = vpop.f32.mrf.mxu0
  %v3498 = vadd.f32 %v3479, %v3497
  %v3499 = vpop.f32.mrf.mxu0
  %v3500 = vadd.f32 %v3481, %v3499
  %3501 = vdwg.mxu0
  %3502 = vmatpush.bf16.msra.mxu0 %v3267
  %3503 = vmatpush.bf16.msra.mxu0 %v3263
  %3504 = vmatpush.bf16.msra.mxu0 %v3259
  %3505 = vmatpush.bf16.msra.mxu0 %v3255
  %3506 = vmatpush.bf16.msra.mxu0 %v3251
  %3507 = vmatpush.bf16.msra.mxu0 %v3247
  %3508 = vmatpush.bf16.msra.mxu0 %v3243
  %3509 = vmatpush.bf16.msra.mxu0 %v3239
  %3510 = vmatmul.bf16.gmra.mxu0 %v3011
  %v3511 = vpop.f32.mrf.mxu0
  %v3512 = vadd.f32 0.0, %v3511
  %v3513 = vpop.f32.mrf.mxu0
  %v3514 = vadd.f32 0.0, %v3513
  %3515 = vmatmul.bf16.gmra.mxu0 %v3014
  %v3516 = vpop.f32.mrf.mxu0
  %v3517 = vadd.f32 0.0, %v3516
  %v3518 = vpop.f32.mrf.mxu0
  %v3519 = vadd.f32 0.0, %v3518
  %3520 = vdwg.mxu0
  %3521 = vmatpush.bf16.msra.mxu0 %v3299
  %3522 = vmatpush.bf16.msra.mxu0 %v3295
  %3523 = vmatpush.bf16.msra.mxu0 %v3291
  %3524 = vmatpush.bf16.msra.mxu0 %v3287
  %3525 = vmatpush.bf16.msra.mxu0 %v3283
  %3526 = vmatpush.bf16.msra.mxu0 %v3279
  %3527 = vmatpush.bf16.msra.mxu0 %v3275
  %3528 = vmatpush.bf16.msra.mxu0 %v3271
  %3529 = vmatmul.bf16.gmra.mxu0 %v3012
  %v3530 = vpop.f32.mrf.mxu0
  %v3531 = vadd.f32 %v3512, %v3530
  %v3532 = vpop.f32.mrf.mxu0
  %v3533 = vadd.f32 %v3514, %v3532
  %3534 = vmatmul.bf16.gmra.mxu0 %v3015
  %v3535 = vpop.f32.mrf.mxu0
  %v3536 = vadd.f32 %v3517, %v3535
  %v3537 = vpop.f32.mrf.mxu0
  %v3538 = vadd.f32 %v3519, %v3537
  %3539 = vdwg.mxu0
  %3540 = vmatpush.bf16.msra.mxu0 0
  %3541 = vmatpush.bf16.msra.mxu0 0
  %3542 = vmatpush.bf16.msra.mxu0 0
  %3543 = vmatpush.bf16.msra.mxu0 0
  %3544 = vmatpush.bf16.msra.mxu0 0
  %3545 = vmatpush.bf16.msra.mxu0 0
  %3546 = vmatpush.bf16.msra.mxu0 %v3307
  %3547 = vmatpush.bf16.msra.mxu0 %v3303
  %3548 = vmatmul.bf16.gmra.mxu0 %v3383
  %v3549 = vpop.f32.mrf.mxu0
  %v3550 = vadd.f32 %v3531, %v3549
  %v3551 = vpop.f32.mrf.mxu0
  %v3552 = vadd.f32 %v3533, %v3551
  %3553 = vmatmul.bf16.gmra.mxu0 %v3386
  %v3554 = vpop.f32.mrf.mxu0
  %v3555 = vadd.f32 %v3536, %v3554
  %v3556 = vpop.f32.mrf.mxu0
  %v3557 = vadd.f32 %v3538, %v3556
  %3558 = vdwg.mxu0
  %3559 = vmatpush.bf16.msra.mxu0 %v3268
  %3560 = vmatpush.bf16.msra.mxu0 %v3264
  %3561 = vmatpush.bf16.msra.mxu0 %v3260
  %3562 = vmatpush.bf16.msra.mxu0 %v3256
  %3563 = vmatpush.bf16.msra.mxu0 %v3252
  %3564 = vmatpush.bf16.msra.mxu0 %v3248
  %3565 = vmatpush.bf16.msra.mxu0 %v3244
  %3566 = vmatpush.bf16.msra.mxu0 %v3240
  %3567 = vmatmul.bf16.gmra.mxu0 %v3011
  %v3568 = vpop.f32.mrf.mxu0
  %v3569 = vadd.f32 0.0, %v3568
  %v3570 = vpop.f32.mrf.mxu0
  %v3571 = vadd.f32 0.0, %v3570
  %3572 = vmatmul.bf16.gmra.mxu0 %v3014
  %v3573 = vpop.f32.mrf.mxu0
  %v3574 = vadd.f32 0.0, %v3573
  %v3575 = vpop.f32.mrf.mxu0
  %v3576 = vadd.f32 0.0, %v3575
  %3577 = vdwg.mxu0
  %3578 = vmatpush.bf16.msra.mxu0 %v3300
  %3579 = vmatpush.bf16.msra.mxu0 %v3296
  %3580 = vmatpush.bf16.msra.mxu0 %v3292
  %3581 = vmatpush.bf16.msra.mxu0 %v3288
  %3582 = vmatpush.bf16.msra.mxu0 %v3284
  %3583 = vmatpush.bf16.msra.mxu0 %v3280
  %3584 = vmatpush.bf16.msra.mxu0 %v3276
  %3585 = vmatpush.bf16.msra.mxu0 %v3272
  %3586 = vmatmul.bf16.gmra.mxu0 %v3012
  %v3587 = vpop.f32.mrf.mxu0
  %v3588 = vadd.f32 %v3569, %v3587
  %v3589 = vpop.f32.mrf.mxu0
  %v3590 = vadd.f32 %v3571, %v3589
  %3591 = vmatmul.bf16.gmra.mxu0 %v3015
  %v3592 = vpop.f32.mrf.mxu0
  %v3593 = vadd.f32 %v3574, %v3592
  %v3594 = vpop.f32.mrf.mxu0
  %v3595 = vadd.f32 %v3576, %v3594
  %3596 = vdwg.mxu0
  %3597 = vmatpush.bf16.msra.mxu0 0
  %3598 = vmatpush.bf16.msra.mxu0 0
  %3599 = vmatpush.bf16.msra.mxu0 0
  %3600 = vmatpush.bf16.msra.mxu0 0
  %3601 = vmatpush.bf16.msra.mxu0 0
  %3602 = vmatpush.bf16.msra.mxu0 0
  %3603 = vmatpush.bf16.msra.mxu0 %v3308
  %3604 = vmatpush.bf16.msra.mxu0 %v3304
  %3605 = vmatmul.bf16.gmra.mxu0 %v3383
  %v3606 = vpop.f32.mrf.mxu0
  %v3607 = vadd.f32 %v3588, %v3606
  %v3608 = vpop.f32.mrf.mxu0
  %v3609 = vadd.f32 %v3590, %v3608
  %3610 = vmatmul.bf16.gmra.mxu0 %v3386
  %v3611 = vpop.f32.mrf.mxu0
  %v3612 = vadd.f32 %v3593, %v3611
  %v3613 = vpop.f32.mrf.mxu0
  %v3614 = vadd.f32 %v3595, %v3613
  %3615 = vdwg.mxu0
  %v3616 = vld [vmem:[%s5] sm:$0xff]
  %v3617 = vld [vmem:[%s5 + $0x8] sm:$0xff]
  %v3618 = vld [vmem:[%s5 + $0x10] sm:$0xff]
  %v3619 = vld [vmem:[%s5 + $0x18] sm:$0xff]
  %3621 = vset.pattern.permute.xlu0 0
  %3622 = vperm.xlu0 %3621, %v3616
  %v3623 = vpop.permute.xlu0 %3622
  %3626 = vset.pattern.permute.xlu0 0
  %3627 = vperm.xlu0 %3626, %v3617
  %v3628 = vpop.permute.xlu0 %3627
  %3631 = vset.pattern.permute.xlu0 0
  %3632 = vperm.xlu0 %3631, %v3618
  %v3633 = vpop.permute.xlu0 %3632
  %3636 = vset.pattern.permute.xlu0 0
  %3637 = vperm.xlu0 %3636, %v3619
  %v3638 = vpop.permute.xlu0 %3637
  %v3640 = vmul.f32 %v3436, %v3623
  %v3641 = vmul.f32 %v3493, %v3623
  %v3642 = vmul.f32 %v3550, %v3623
  %v3643 = vmul.f32 %v3607, %v3623
  %v3644 = vmul.f32 %v3438, %v3628
  %v3645 = vmul.f32 %v3495, %v3628
  %v3646 = vmul.f32 %v3552, %v3628
  %v3647 = vmul.f32 %v3609, %v3628
  %v3648 = vmul.f32 %v3441, %v3633
  %v3649 = vmul.f32 %v3498, %v3633
  %v3650 = vmul.f32 %v3555, %v3633
  %v3651 = vmul.f32 %v3612, %v3633
  %v3652 = vmul.f32 %v3443, %v3638
  %v3653 = vmul.f32 %v3500, %v3638
  %v3654 = vmul.f32 %v3557, %v3638
  %v3655 = vmul.f32 %v3614, %v3638
  %v3656 = vld [vmem:[%s6] sm:$0xff]
  %v3657 = vld [vmem:[%s6 + $0x8] sm:$0xff]
  %v3658 = vld [vmem:[%s6 + $0x10] sm:$0xff]
  %v3659 = vld [vmem:[%s6 + $0x18] sm:$0xff]
  %3661 = vset.pattern.permute.xlu0 0
  %3662 = vperm.xlu0 %3661, %v3656
  %v3663 = vpop.permute.xlu0 %3662
  %3666 = vset.pattern.permute.xlu0 0
  %3667 = vperm.xlu0 %3666, %v3657
  %v3668 = vpop.permute.xlu0 %3667
  %3671 = vset.pattern.permute.xlu0 0
  %3672 = vperm.xlu0 %3671, %v3658
  %v3673 = vpop.permute.xlu0 %3672
  %3676 = vset.pattern.permute.xlu0 0
  %3677 = vperm.xlu0 %3676, %v3659
  %v3678 = vpop.permute.xlu0 %3677
  %v3680 = vadd.f32 %v3640, %v3663
  %v3681 = vadd.f32 %v3641, %v3663
  %v3682 = vadd.f32 %v3642, %v3663
  %v3683 = vadd.f32 %v3643, %v3663
  %v3684 = vadd.f32 %v3644, %v3668
  %v3685 = vadd.f32 %v3645, %v3668
  %v3686 = vadd.f32 %v3646, %v3668
  %v3687 = vadd.f32 %v3647, %v3668
  %v3688 = vadd.f32 %v3648, %v3673
  %v3689 = vadd.f32 %v3649, %v3673
  %v3690 = vadd.f32 %v3650, %v3673
  %v3691 = vadd.f32 %v3651, %v3673
  %v3692 = vadd.f32 %v3652, %v3678
  %v3693 = vadd.f32 %v3653, %v3678
  %v3694 = vadd.f32 %v3654, %v3678
  %v3695 = vadd.f32 %v3655, %v3678
  %v3696 = vadd.f32 %v3680, %v3681
  %3697 = vadd.xlane.f32.xlu0 %v3696
  %v3698 = vpop.xlane.xlu0 %3697
  %v3699 = vadd.f32 %v3684, %v3685
  %3700 = vadd.xlane.f32.xlu0 %v3699
  %v3701 = vpop.xlane.xlu0 %3700
  %v3702 = vadd.f32 %v3688, %v3689
  %3703 = vadd.xlane.f32.xlu0 %v3702
  %v3704 = vpop.xlane.xlu0 %3703
  %v3705 = vadd.f32 %v3692, %v3693
  %3706 = vadd.xlane.f32.xlu0 %v3705
  %v3707 = vpop.xlane.xlu0 %3706
  %v3708 = vrcp.pop 256.0
  %v3709 = vmul.f32 256.0, %v3708
  %v3710 = vsub.f32 1.0, %v3709
  %v3711 = vmul.f32 %v3708, %v3710
  %v3712 = vadd.f32 %v3708, %v3711
  %vm3713 = vweird.f32 %v3708
  %v3714 = vsel %vm3713, %v3708, %v3712
  %v3715 = vmul.f32 %v3698, %v3714
  %v3716 = vmul.f32 %v3701, %v3714
  %v3717 = vmul.f32 %v3704, %v3714
  %v3718 = vmul.f32 %v3707, %v3714
  %v3719 = vld [vmem:[%s7] sm:$0xff]
  %v3720 = vld [vmem:[%s7 + $0x8] sm:$0xff]
  %v3721 = vld [vmem:[%s7 + $0x10] sm:$0xff]
  %v3722 = vld [vmem:[%s7 + $0x18] sm:$0xff]
  %v3723 = vmul.f32 %v3719, %v3715
  %v3724 = vmul.f32 %v3720, %v3716
  %v3725 = vmul.f32 %v3721, %v3717
  %v3726 = vmul.f32 %v3722, %v3718
  %vm3727 = vcmask 15360
  %v3728 = vsel %vm3727, %v3723, 0.0
  %v3729 = vsel %vm3727, %v3724, 0.0
  %v3730 = vadd.f32 %v3728, %v3729
  %v3731 = vsel %vm3727, %v3725, 0.0
  %v3732 = vadd.f32 %v3730, %v3731
  %v3733 = vsel %vm3727, %v3726, 0.0
  %v3734 = vadd.f32 %v3732, %v3733
  %v3735 = vrot.slane %v3734, 4
  %v3736 = vadd.f32 %v3734, %v3735
  %v3737 = vrot.slane %v3736, 2
  %v3738 = vadd.f32 %v3736, %v3737
  %v3739 = vrot.slane %v3738, 1
  %v3740 = vadd.f32 %v3738, %v3739
  %v3741 = vmax.f32 %v3740, 0.0
  %v3742 = vld [vmem:[%s8] sm:$0xff]
  %v3743 = vld [vmem:[%s8 + $0x8] sm:$0xff]
  %v3744 = vld [vmem:[%s8 + $0x10] sm:$0xff]
  %v3745 = vld [vmem:[%s8 + $0x18] sm:$0xff]
  %v3746 = vmul.f32 %v3742, %v3741
  %v3747 = vmul.f32 %v3743, %v3741
  %v3748 = vmul.f32 %v3744, %v3741
  %v3749 = vmul.f32 %v3745, %v3741
  %v3750 = vsel %vm3727, %v3746, 0.0
  %3751 = vadd.xlane.f32.xlu0 %v3750
  %v3752 = vpop.xlane.xlu0 %3751
  %v3753 = vsel %vm3727, %v3747, 0.0
  %3754 = vadd.xlane.f32.xlu0 %v3753
  %v3755 = vpop.xlane.xlu0 %3754
  %v3756 = vsel %vm3727, %v3748, 0.0
  %3757 = vadd.xlane.f32.xlu0 %v3756
  %v3758 = vpop.xlane.xlu0 %3757
  %v3759 = vsel %vm3727, %v3749, 0.0
  %3760 = vadd.xlane.f32.xlu0 %v3759
  %v3761 = vpop.xlane.xlu0 %3760
  %v3762 = vxor.u32 %v3752, 2147483648
  %v3763 = vxor.u32 %v3755, 2147483648
  %v3764 = vxor.u32 %v3758, 2147483648
  %v3765 = vxor.u32 %v3761, 2147483648
  %v3766 = vmul.f32 %v3762, 1.442695
  %v3767 = vpow.pop %v3766
  %v3768 = vmul.f32 %v3763, 1.442695
  %v3769 = vpow.pop %v3768
  %v3770 = vmul.f32 %v3764, 1.442695
  %v3771 = vpow.pop %v3770
  %v3772 = vmul.f32 %v3765, 1.442695
  %v3773 = vpow.pop %v3772
  %v3774 = vadd.f32 %v3767, 1.0
  %v3775 = vadd.f32 %v3769, 1.0
  %v3776 = vadd.f32 %v3771, 1.0
  %v3777 = vadd.f32 %v3773, 1.0
  %v3778 = vrcp.pop %v3774
  %v3779 = vmul.f32 %v3774, %v3778
  %v3780 = vsub.f32 1.0, %v3779
  %v3781 = vmul.f32 %v3778, %v3780
  %v3782 = vadd.f32 %v3778, %v3781
  %vm3783 = vweird.f32 %v3774
  %vm3784 = vweird.f32 %v3778
  %vm3785 = vmor %vm3783, %vm3784
  %v3786 = vsel %vm3785, %v3778, %v3782
  %v3787 = vand.u32 2147483647, %v3774
  %vm3788 = vcmp.eq.f32.partialorder %v3787, 8.507059e+37
  %v3789 = vand.u32 %v3774, 2147483648
  %v3790 = vor.u32 1.1754944e-38, %v3789
  %v3791 = vsel %vm3788, %v3790, %v3786
  %v3792 = vmul.f32 1.0, %v3791
  %v3793 = vrcp.pop %v3775
  %v3794 = vmul.f32 %v3775, %v3793
  %v3795 = vsub.f32 1.0, %v3794
  %v3796 = vmul.f32 %v3793, %v3795
  %v3797 = vadd.f32 %v3793, %v3796
  %vm3798 = vweird.f32 %v3775
  %vm3799 = vweird.f32 %v3793
  %vm3800 = vmor %vm3798, %vm3799
  %v3801 = vsel %vm3800, %v3793, %v3797
  %v3802 = vand.u32 2147483647, %v3775
  %vm3803 = vcmp.eq.f32.partialorder %v3802, 8.507059e+37
  %v3804 = vand.u32 %v3775, 2147483648
  %v3805 = vor.u32 1.1754944e-38, %v3804
  %v3806 = vsel %vm3803, %v3805, %v3801
  %v3807 = vmul.f32 1.0, %v3806
  %v3808 = vrcp.pop %v3776
  %v3809 = vmul.f32 %v3776, %v3808
  %v3810 = vsub.f32 1.0, %v3809
  %v3811 = vmul.f32 %v3808, %v3810
  %v3812 = vadd.f32 %v3808, %v3811
  %vm3813 = vweird.f32 %v3776
  %vm3814 = vweird.f32 %v3808
  %vm3815 = vmor %vm3813, %vm3814
  %v3816 = vsel %vm3815, %v3808, %v3812
  %v3817 = vand.u32 2147483647, %v3776
  %vm3818 = vcmp.eq.f32.partialorder %v3817, 8.507059e+37
  %v3819 = vand.u32 %v3776, 2147483648
  %v3820 = vor.u32 1.1754944e-38, %v3819
  %v3821 = vsel %vm3818, %v3820, %v3816
  %v3822 = vmul.f32 1.0, %v3821
  %v3823 = vrcp.pop %v3777
  %v3824 = vmul.f32 %v3777, %v3823
  %v3825 = vsub.f32 1.0, %v3824
  %v3826 = vmul.f32 %v3823, %v3825
  %v3827 = vadd.f32 %v3823, %v3826
  %vm3828 = vweird.f32 %v3777
  %vm3829 = vweird.f32 %v3823
  %vm3830 = vmor %vm3828, %vm3829
  %v3831 = vsel %vm3830, %v3823, %v3827
  %v3832 = vand.u32 2147483647, %v3777
  %vm3833 = vcmp.eq.f32.partialorder %v3832, 8.507059e+37
  %v3834 = vand.u32 %v3777, 2147483648
  %v3835 = vor.u32 1.1754944e-38, %v3834
  %v3836 = vsel %vm3833, %v3835, %v3831
  %v3837 = vmul.f32 1.0, %v3836
  %v3838 = vmul.f32 %v3680, %v3792
  %v3839 = vmul.f32 %v3681, %v3792
  %v3840 = vmul.f32 %v3684, %v3807
  %v3841 = vmul.f32 %v3685, %v3807
  %v3842 = vmul.f32 %v3688, %v3822
  %v3843 = vmul.f32 %v3689, %v3822
  %v3844 = vmul.f32 %v3692, %v3837
  %v3845 = vmul.f32 %v3693, %v3837
  %v3846 = vadd.f32 %v3838, %v1508
  %v3847 = vadd.f32 %v3839, %v1509
  %v3848 = vadd.f32 %v3840, %v1512
  %v3849 = vadd.f32 %v3841, %v1513
  %v3850 = vadd.f32 %v3842, %v1516
  %v3851 = vadd.f32 %v3843, %v1517
  %v3852 = vadd.f32 %v3844, %v1520
  %v3853 = vadd.f32 %v3845, %v1521
  %v3854 = vmax.f32 %v3846, 0.0
  %v3855 = vmax.f32 %v3847, 0.0
  %v3856 = vmax.f32 %v3848, 0.0
  %v3857 = vmax.f32 %v3849, 0.0
  %v3858 = vmax.f32 %v3850, 0.0
  %v3859 = vmax.f32 %v3851, 0.0
  %v3860 = vmax.f32 %v3852, 0.0
  %v3861 = vmax.f32 %v3853, 0.0
  %3862 = vst [vmem:[%s14] sm:$0xff] %v3854
  %3863 = vst [vmem:[%s14 + $0x8] sm:$0xff] %v3855
  %3864 = vst [vmem:[%s14 + $0x10] sm:$0xff] %v3856
  %3865 = vst [vmem:[%s14 + $0x18] sm:$0xff] %v3857
  %3866 = vst [vmem:[%s14 + $0x20] sm:$0xff] %v3858
  %3867 = vst [vmem:[%s14 + $0x28] sm:$0xff] %v3859
  %3868 = vst [vmem:[%s14 + $0x30] sm:$0xff] %v3860
  %3869 = vst [vmem:[%s14 + $0x38] sm:$0xff] %v3861
  %v3870 = vadd.f32 %v3682, %v3683
  %3871 = vadd.xlane.f32.xlu0 %v3870
  %v3872 = vpop.xlane.xlu0 %3871
  %v3873 = vadd.f32 %v3686, %v3687
  %3874 = vadd.xlane.f32.xlu0 %v3873
  %v3875 = vpop.xlane.xlu0 %3874
  %v3876 = vadd.f32 %v3690, %v3691
  %3877 = vadd.xlane.f32.xlu0 %v3876
  %v3878 = vpop.xlane.xlu0 %3877
  %v3879 = vadd.f32 %v3694, %v3695
  %3880 = vadd.xlane.f32.xlu0 %v3879
  %v3881 = vpop.xlane.xlu0 %3880
  %v3882 = vmul.f32 %v3872, %v3714
  %v3883 = vmul.f32 %v3875, %v3714
  %v3884 = vmul.f32 %v3878, %v3714
  %v3885 = vmul.f32 %v3881, %v3714
  %v3886 = vld [vmem:[%s7] sm:$0xff]
  %v3887 = vld [vmem:[%s7 + $0x8] sm:$0xff]
  %v3888 = vld [vmem:[%s7 + $0x10] sm:$0xff]
  %v3889 = vld [vmem:[%s7 + $0x18] sm:$0xff]
  %v3890 = vmul.f32 %v3886, %v3882
  %v3891 = vmul.f32 %v3887, %v3883
  %v3892 = vmul.f32 %v3888, %v3884
  %v3893 = vmul.f32 %v3889, %v3885
  %v3894 = vsel %vm3727, %v3890, 0.0
  %v3895 = vsel %vm3727, %v3891, 0.0
  %v3896 = vadd.f32 %v3894, %v3895
  %v3897 = vsel %vm3727, %v3892, 0.0
  %v3898 = vadd.f32 %v3896, %v3897
  %v3899 = vsel %vm3727, %v3893, 0.0
  %v3900 = vadd.f32 %v3898, %v3899
  %v3901 = vrot.slane %v3900, 4
  %v3902 = vadd.f32 %v3900, %v3901
  %v3903 = vrot.slane %v3902, 2
  %v3904 = vadd.f32 %v3902, %v3903
  %v3905 = vrot.slane %v3904, 1
  %v3906 = vadd.f32 %v3904, %v3905
  %v3907 = vmax.f32 %v3906, 0.0
  %v3908 = vld [vmem:[%s8] sm:$0xff]
  %v3909 = vld [vmem:[%s8 + $0x8] sm:$0xff]
  %v3910 = vld [vmem:[%s8 + $0x10] sm:$0xff]
  %v3911 = vld [vmem:[%s8 + $0x18] sm:$0xff]
  %v3912 = vmul.f32 %v3908, %v3907
  %v3913 = vmul.f32 %v3909, %v3907
  %v3914 = vmul.f32 %v3910, %v3907
  %v3915 = vmul.f32 %v3911, %v3907
  %v3916 = vsel %vm3727, %v3912, 0.0
  %3917 = vadd.xlane.f32.xlu0 %v3916
  %v3918 = vpop.xlane.xlu0 %3917
  %v3919 = vsel %vm3727, %v3913, 0.0
  %3920 = vadd.xlane.f32.xlu0 %v3919
  %v3921 = vpop.xlane.xlu0 %3920
  %v3922 = vsel %vm3727, %v3914, 0.0
  %3923 = vadd.xlane.f32.xlu0 %v3922
  %v3924 = vpop.xlane.xlu0 %3923
  %v3925 = vsel %vm3727, %v3915, 0.0
  %3926 = vadd.xlane.f32.xlu0 %v3925
  %v3927 = vpop.xlane.xlu0 %3926
  %v3928 = vxor.u32 %v3918, 2147483648
  %v3929 = vxor.u32 %v3921, 2147483648
  %v3930 = vxor.u32 %v3924, 2147483648
  %v3931 = vxor.u32 %v3927, 2147483648
  %v3932 = vmul.f32 %v3928, 1.442695
  %v3933 = vpow.pop %v3932
  %v3934 = vmul.f32 %v3929, 1.442695
  %v3935 = vpow.pop %v3934
  %v3936 = vmul.f32 %v3930, 1.442695
  %v3937 = vpow.pop %v3936
  %v3938 = vmul.f32 %v3931, 1.442695
  %v3939 = vpow.pop %v3938
  %v3940 = vadd.f32 %v3933, 1.0
  %v3941 = vadd.f32 %v3935, 1.0
  %v3942 = vadd.f32 %v3937, 1.0
  %v3943 = vadd.f32 %v3939, 1.0
  %v3944 = vrcp.pop %v3940
  %v3945 = vmul.f32 %v3940, %v3944
  %v3946 = vsub.f32 1.0, %v3945
  %v3947 = vmul.f32 %v3944, %v3946
  %v3948 = vadd.f32 %v3944, %v3947
  %vm3949 = vweird.f32 %v3940
  %vm3950 = vweird.f32 %v3944
  %vm3951 = vmor %vm3949, %vm3950
  %v3952 = vsel %vm3951, %v3944, %v3948
  %v3953 = vand.u32 2147483647, %v3940
  %vm3954 = vcmp.eq.f32.partialorder %v3953, 8.507059e+37
  %v3955 = vand.u32 %v3940, 2147483648
  %v3956 = vor.u32 1.1754944e-38, %v3955
  %v3957 = vsel %vm3954, %v3956, %v3952
  %v3958 = vmul.f32 1.0, %v3957
  %v3959 = vrcp.pop %v3941
  %v3960 = vmul.f32 %v3941, %v3959
  %v3961 = vsub.f32 1.0, %v3960
  %v3962 = vmul.f32 %v3959, %v3961
  %v3963 = vadd.f32 %v3959, %v3962
  %vm3964 = vweird.f32 %v3941
  %vm3965 = vweird.f32 %v3959
  %vm3966 = vmor %vm3964, %vm3965
  %v3967 = vsel %vm3966, %v3959, %v3963
  %v3968 = vand.u32 2147483647, %v3941
  %vm3969 = vcmp.eq.f32.partialorder %v3968, 8.507059e+37
  %v3970 = vand.u32 %v3941, 2147483648
  %v3971 = vor.u32 1.1754944e-38, %v3970
  %v3972 = vsel %vm3969, %v3971, %v3967
  %v3973 = vmul.f32 1.0, %v3972
  %v3974 = vrcp.pop %v3942
  %v3975 = vmul.f32 %v3942, %v3974
  %v3976 = vsub.f32 1.0, %v3975
  %v3977 = vmul.f32 %v3974, %v3976
  %v3978 = vadd.f32 %v3974, %v3977
  %vm3979 = vweird.f32 %v3942
  %vm3980 = vweird.f32 %v3974
  %vm3981 = vmor %vm3979, %vm3980
  %v3982 = vsel %vm3981, %v3974, %v3978
  %v3983 = vand.u32 2147483647, %v3942
  %vm3984 = vcmp.eq.f32.partialorder %v3983, 8.507059e+37
  %v3985 = vand.u32 %v3942, 2147483648
  %v3986 = vor.u32 1.1754944e-38, %v3985
  %v3987 = vsel %vm3984, %v3986, %v3982
  %v3988 = vmul.f32 1.0, %v3987
  %v3989 = vrcp.pop %v3943
  %v3990 = vmul.f32 %v3943, %v3989
  %v3991 = vsub.f32 1.0, %v3990
  %v3992 = vmul.f32 %v3989, %v3991
  %v3993 = vadd.f32 %v3989, %v3992
  %vm3994 = vweird.f32 %v3943
  %vm3995 = vweird.f32 %v3989
  %vm3996 = vmor %vm3994, %vm3995
  %v3997 = vsel %vm3996, %v3989, %v3993
  %v3998 = vand.u32 2147483647, %v3943
  %vm3999 = vcmp.eq.f32.partialorder %v3998, 8.507059e+37
  %v4000 = vand.u32 %v3943, 2147483648
  %v4001 = vor.u32 1.1754944e-38, %v4000
  %v4002 = vsel %vm3999, %v4001, %v3997
  %v4003 = vmul.f32 1.0, %v4002
  %v4004 = vmul.f32 %v3682, %v3958
  %v4005 = vmul.f32 %v3683, %v3958
  %v4006 = vmul.f32 %v3686, %v3973
  %v4007 = vmul.f32 %v3687, %v3973
  %v4008 = vmul.f32 %v3690, %v3988
  %v4009 = vmul.f32 %v3691, %v3988
  %v4010 = vmul.f32 %v3694, %v4003
  %v4011 = vmul.f32 %v3695, %v4003
  %v4012 = vadd.f32 %v4004, %v1510
  %v4013 = vadd.f32 %v4005, %v1511
  %v4014 = vadd.f32 %v4006, %v1514
  %v4015 = vadd.f32 %v4007, %v1515
  %v4016 = vadd.f32 %v4008, %v1518
  %v4017 = vadd.f32 %v4009, %v1519
  %v4018 = vadd.f32 %v4010, %v1522
  %v4019 = vadd.f32 %v4011, %v1523
  %v4020 = vmax.f32 %v4012, 0.0
  %v4021 = vmax.f32 %v4013, 0.0
  %v4022 = vmax.f32 %v4014, 0.0
  %v4023 = vmax.f32 %v4015, 0.0
  %v4024 = vmax.f32 %v4016, 0.0
  %v4025 = vmax.f32 %v4017, 0.0
  %v4026 = vmax.f32 %v4018, 0.0
  %v4027 = vmax.f32 %v4019, 0.0
  %s4028 = scalar_lea.vmem %s14, 64
  %4029 = vst [vmem:[%s4028] sm:$0xff] %v4020
  %4030 = vst [vmem:[%s4028 + $0x8] sm:$0xff] %v4021
  %4031 = vst [vmem:[%s4028 + $0x10] sm:$0xff] %v4022
  %4032 = vst [vmem:[%s4028 + $0x18] sm:$0xff] %v4023
  %4033 = vst [vmem:[%s4028 + $0x20] sm:$0xff] %v4024
  %4034 = vst [vmem:[%s4028 + $0x28] sm:$0xff] %v4025
  %4035 = vst [vmem:[%s4028 + $0x30] sm:$0xff] %v4026
  %4036 = vst [vmem:[%s4028 + $0x38] sm:$0xff] %v4027
  // Predicated region
  $region58: #{residual_block_forward.1} parent=0 // pred_check
    _
  $region59: #{residual_block_forward.1} parent=0 // pred_check_branch
    %4038 = sbr.rel (0) target = $region61
  $region60: #{residual_block_forward.1} parent=0 // pred_region
    _
  $region61: #{residual_block_forward.1} parent=0 // pred_fallthru
    _
  // Predicated region
  $region62: #{residual_block_forward.1} parent=0 // pred_check
    _
  $region63: #{residual_block_forward.1} parent=0 // pred_check_branch
    %4040 = sbr.rel (0) target = $region65
  $region64: #{residual_block_forward.1} parent=0 // pred_region
    _
  $region65: #{residual_block_forward.1} parent=0 // pred_fallthru
    _

</llo_original>
